<compile_context>
chip_gen: v7x
topology: tpu7x:2x2x1
jax: 0.10.0
libtpu: 0.0.40
codegen_flags: <defaults>
</compile_context>

<pallas_src>
import math

import jax
import jax.numpy as jnp
from jax.experimental import pallas as pl
from jax.experimental.pallas import tpu as pltpu

# ---------------- small synthetic RoBERTa config ----------------
VOCAB = 64
HIDDEN = 32
NUM_HEADS = 4
HEAD_DIM = HIDDEN // NUM_HEADS
FFN = 64
NUM_LAYERS = 2
MAX_POS = 40
NUM_CLASSES = 3
LN_EPS = 1e-5

QKV_PAD = 128          # 3*HIDDEN = 96 padded to one full lane group
CLS_PAD = 128          # NUM_CLASSES = 3 padded to one full lane group


def _layer_norm(x, g, b):
    mu = jnp.mean(x, axis=-1, keepdims=True)
    var = jnp.mean(jnp.square(x - mu), axis=-1, keepdims=True)
    return (x - mu) * jax.lax.rsqrt(var + LN_EPS) * g + b


def _gelu(y):
    # TODO(synk): HF RoBERTa uses exact erf-GELU; tanh approximation used here.
    c = math.sqrt(2.0 / math.pi)
    return 0.5 * y * (1.0 + jnp.tanh(c * (y + 0.044715 * y * y * y)))


# ---------------- fused whole-model kernel ----------------
def _fused_kernel(emb_ref, mask_ref,
                  emb_ln_g_ref, emb_ln_b_ref,
                  wqkv_ref, bqkv_ref, wo_ref, bo_ref,
                  ln1_g_ref, ln1_b_ref,
                  w1_ref, b1_ref, w2_ref, b2_ref,
                  ln2_g_ref, ln2_b_ref,
                  fc_w_ref, fc_b_ref,
                  o_ref):
    # One grid step == one batch element; everything below lives in vregs/VMEM.
    x = emb_ref[0]                                           # (S, H)
    x = _layer_norm(x, emb_ln_g_ref[...], emb_ln_b_ref[...])

    bias = (1.0 - mask_ref[0]) * (-1e9)                      # (1, S) additive key mask
    scale = 1.0 / math.sqrt(HEAD_DIM)

    for li in range(NUM_LAYERS):                             # static unroll (2 layers)
        # Fused QKV projection, 128-lane-dense output.
        qkv = jnp.dot(x, wqkv_ref[li],
                      preferred_element_type=jnp.float32) + bqkv_ref[li]   # (S, 128)
        q = qkv[:, 0 * HIDDEN:1 * HIDDEN]
        k = qkv[:, 1 * HIDDEN:2 * HIDDEN]
        v = qkv[:, 2 * HIDDEN:3 * HIDDEN]

        # Per-head attention, statically unrolled (NUM_HEADS=4, S=8, HEAD_DIM=8).
        # TODO(synk): a full head-fold into one (S, NH*S) score matmul needs a
        # segmented softmax over lane groups; kept per-head for robustness.
        ctx_heads = []
        for h in range(NUM_HEADS):
            sl = slice(h * HEAD_DIM, (h + 1) * HEAD_DIM)
            qh, kh, vh = q[:, sl], k[:, sl], v[:, sl]        # (S, HD) each
            s_h = jnp.einsum('qd,kd->qk', qh, kh,
                             preferred_element_type=jnp.float32) * scale + bias
            m = jnp.max(s_h, axis=-1, keepdims=True)
            e = jnp.exp(s_h - m)
            p = e * pl.reciprocal(jnp.sum(e, axis=-1, keepdims=True), approx=True)
            ctx_heads.append(jnp.dot(p, vh, preferred_element_type=jnp.float32))
        ctx = jnp.concatenate(ctx_heads, axis=-1)            # (S, H)

        attn_out = jnp.dot(ctx, wo_ref[li],
                           preferred_element_type=jnp.float32) + bo_ref[li]
        x = _layer_norm(attn_out + x, ln1_g_ref[li], ln1_b_ref[li])

        h1 = jnp.dot(x, w1_ref[li],
                     preferred_element_type=jnp.float32) + b1_ref[li]      # (S, FFN)
        h1 = _gelu(h1)
        ffn = jnp.dot(h1, w2_ref[li],
                      preferred_element_type=jnp.float32) + b2_ref[li]     # (S, H)
        x = _layer_norm(ffn + x, ln2_g_ref[li], ln2_b_ref[li])

    # Classifier head on the CLS token. dropout(p=0.1) -> identity at inference.
    logits_all = jnp.dot(x, fc_w_ref[...],
                         preferred_element_type=jnp.float32) + fc_b_ref[...]  # (S, 128)
    o_ref[0] = logits_all[0:1, :]                            # CLS row, lane-dense store


# ---------------- parameters (deterministic, synthetic, pre-stacked/padded) --------
def init_params(key):
    keys = jax.random.split(key, 4 + NUM_LAYERS)

    def nrm(k, shape):
        return 0.02 * jax.random.normal(k, shape, jnp.float32)

    wqkv, wo, w1, w2 = [], [], [], []
    for li in range(NUM_LAYERS):
        lk = jax.random.split(keys[4 + li], 6)
        wq = nrm(lk[0], (HIDDEN, HIDDEN))
        wk = nrm(lk[1], (HIDDEN, HIDDEN))
        wv = nrm(lk[2], (HIDDEN, HIDDEN))
        wqkv.append(jnp.pad(jnp.concatenate([wq, wk, wv], axis=1),
                            ((0, 0), (0, QKV_PAD - 3 * HIDDEN))))
        wo.append(nrm(lk[3], (HIDDEN, HIDDEN)))
        w1.append(nrm(lk[4], (HIDDEN, FFN)))
        w2.append(nrm(lk[5], (FFN, HIDDEN)))

    params = {
        'word_emb': nrm(keys[0], (VOCAB, HIDDEN)),
        'pos_emb': nrm(keys[1], (MAX_POS, HIDDEN)),
        'type_emb': nrm(keys[2], (1, HIDDEN)),
        'emb_ln_g': jnp.ones((1, HIDDEN), jnp.float32),
        'emb_ln_b': jnp.zeros((1, HIDDEN), jnp.float32),
        'wqkv': jnp.stack(wqkv),                                  # (L, H, 128)
        'bqkv': jnp.zeros((NUM_LAYERS, 1, QKV_PAD), jnp.float32),
        'wo': jnp.stack(wo),                                      # (L, H, H)
        'bo': jnp.zeros((NUM_LAYERS, 1, HIDDEN), jnp.float32),
        'ln1_g': jnp.ones((NUM_LAYERS, 1, HIDDEN), jnp.float32),
        'ln1_b': jnp.zeros((NUM_LAYERS, 1, HIDDEN), jnp.float32),
        'w1': jnp.stack(w1),                                      # (L, H, FFN)
        'b1': jnp.zeros((NUM_LAYERS, 1, FFN), jnp.float32),
        'w2': jnp.stack(w2),                                      # (L, FFN, H)
        'b2': jnp.zeros((NUM_LAYERS, 1, HIDDEN), jnp.float32),
        'ln2_g': jnp.ones((NUM_LAYERS, 1, HIDDEN), jnp.float32),
        'ln2_b': jnp.zeros((NUM_LAYERS, 1, HIDDEN), jnp.float32),
        'fc_w': jnp.pad(nrm(keys[3], (HIDDEN, NUM_CLASSES)),
                        ((0, 0), (0, CLS_PAD - NUM_CLASSES))),    # (H, 128)
        'fc_b': jnp.zeros((1, CLS_PAD), jnp.float32),
    }
    return params


# ---------------- forward (gathers in JAX, everything else in one Pallas call) ------
def roberta_classifier_forward(params, input_ids, attention_mask):
    b, s = input_ids.shape
    mask_f = attention_mask.astype(jnp.float32).reshape(b, 1, s)

    # RoBERTa position ids: offset by padding_idx (=1), derived from the mask.
    pos_ids = jnp.cumsum(attention_mask, axis=1) * attention_mask + 1
    emb = (params['word_emb'][input_ids]
           + params['pos_emb'][pos_ids]
           + params['type_emb'][jnp.zeros_like(input_ids)])          # (B, S, H)

    full3 = lambda i: (0, 0, 0)
    full2 = lambda i: (0, 0)

    logits_pad = pl.pallas_call(
        _fused_kernel,
        out_shape=jax.ShapeDtypeStruct((b, 1, CLS_PAD), jnp.float32),
        grid=(b,),
        in_specs=[
            pl.BlockSpec((1, s, HIDDEN), lambda i: (i, 0, 0)),        # emb (per batch)
            pl.BlockSpec((1, 1, s), lambda i: (i, 0, 0)),             # mask (per batch)
            pl.BlockSpec((1, HIDDEN), full2),                         # emb_ln_g
            pl.BlockSpec((1, HIDDEN), full2),                         # emb_ln_b
            pl.BlockSpec((NUM_LAYERS, HIDDEN, QKV_PAD), full3),       # wqkv
            pl.BlockSpec((NUM_LAYERS, 1, QKV_PAD), full3),            # bqkv
            pl.BlockSpec((NUM_LAYERS, HIDDEN, HIDDEN), full3),        # wo
            pl.BlockSpec((NUM_LAYERS, 1, HIDDEN), full3),             # bo
            pl.BlockSpec((NUM_LAYERS, 1, HIDDEN), full3),             # ln1_g
            pl.BlockSpec((NUM_LAYERS, 1, HIDDEN), full3),             # ln1_b
            pl.BlockSpec((NUM_LAYERS, HIDDEN, FFN), full3),           # w1
            pl.BlockSpec((NUM_LAYERS, 1, FFN), full3),                # b1
            pl.BlockSpec((NUM_LAYERS, FFN, HIDDEN), full3),           # w2
            pl.BlockSpec((NUM_LAYERS, 1, HIDDEN), full3),             # b2
            pl.BlockSpec((NUM_LAYERS, 1, HIDDEN), full3),             # ln2_g
            pl.BlockSpec((NUM_LAYERS, 1, HIDDEN), full3),             # ln2_b
            pl.BlockSpec((HIDDEN, CLS_PAD), full2),                   # fc_w (padded)
            pl.BlockSpec((1, CLS_PAD), full2),                        # fc_b (padded)
        ],
        out_specs=pl.BlockSpec((1, 1, CLS_PAD), lambda i: (i, 0, 0)),
        compiler_params=pltpu.CompilerParams(
            dimension_semantics=("parallel",)),
    )(emb, mask_f,
      params['emb_ln_g'], params['emb_ln_b'],
      params['wqkv'], params['bqkv'], params['wo'], params['bo'],
      params['ln1_g'], params['ln1_b'],
      params['w1'], params['b1'], params['w2'], params['b2'],
      params['ln2_g'], params['ln2_b'],
      params['fc_w'], params['fc_b'])

    return logits_pad[:, 0, :NUM_CLASSES]


if __name__ == "__main__":
    key = jax.random.PRNGKey(0)
    pkey, dkey = jax.random.split(key)
    params = init_params(pkey)

    B, S = 2, 8
    input_ids = jax.random.randint(dkey, (B, S), 0, VOCAB, dtype=jnp.int32)
    attention_mask = jnp.array([[1] * S, [1] * 6 + [0] * 2], dtype=jnp.int32)

    logits = jax.jit(roberta_classifier_forward)(params, input_ids, attention_mask)
    logits = jax.block_until_ready(logits)

    assert logits.shape == (B, NUM_CLASSES), logits.shape
    assert logits.dtype == jnp.float32
    assert bool(jnp.all(jnp.isfinite(logits)))
    print("KERNEL_OK")
</pallas_src>

<mosaic_0001>
module attributes {stable_mosaic.version = 11 : i64} {
  func.func @_fused_kernel(%arg0: i32, %arg1: memref<1x8x32xf32, #tpu.memory_space<vmem>>, %arg2: memref<1x1x8xf32, #tpu.memory_space<vmem>>, %arg3: memref<1x32xf32, #tpu.memory_space<vmem>>, %arg4: memref<1x32xf32, #tpu.memory_space<vmem>>, %arg5: memref<2x32x128xf32, #tpu.memory_space<vmem>>, %arg6: memref<2x1x128xf32, #tpu.memory_space<vmem>>, %arg7: memref<2x32x32xf32, #tpu.memory_space<vmem>>, %arg8: memref<2x1x32xf32, #tpu.memory_space<vmem>>, %arg9: memref<2x1x32xf32, #tpu.memory_space<vmem>>, %arg10: memref<2x1x32xf32, #tpu.memory_space<vmem>>, %arg11: memref<2x32x64xf32, #tpu.memory_space<vmem>>, %arg12: memref<2x1x64xf32, #tpu.memory_space<vmem>>, %arg13: memref<2x64x32xf32, #tpu.memory_space<vmem>>, %arg14: memref<2x1x32xf32, #tpu.memory_space<vmem>>, %arg15: memref<2x1x32xf32, #tpu.memory_space<vmem>>, %arg16: memref<2x1x32xf32, #tpu.memory_space<vmem>>, %arg17: memref<32x128xf32, #tpu.memory_space<vmem>>, %arg18: memref<1x128xf32, #tpu.memory_space<vmem>>, %arg19: memref<1x1x128xf32, #tpu.memory_space<vmem>>) attributes {dimension_semantics = [#tpu.dimension_semantics<parallel>], iteration_bounds = array<i64: 2>, scalar_prefetch = 0 : i64, scratch_operands = 0 : i64, tpu.core_type = #tpu.core_type<tc>, window_params = [{transform_indices = @transform_0, window_bounds = array<i64: 1, 8, 32>}, {transform_indices = @transform_1, window_bounds = array<i64: 1, 1, 8>}, {pipeline_mode = #tpu.pipeline_mode<synchronous>, transform_indices = @transform_2, window_bounds = array<i64: 1, 32>}, {pipeline_mode = #tpu.pipeline_mode<synchronous>, transform_indices = @transform_3, window_bounds = array<i64: 1, 32>}, {pipeline_mode = #tpu.pipeline_mode<synchronous>, transform_indices = @transform_4, window_bounds = array<i64: 2, 32, 128>}, {pipeline_mode = #tpu.pipeline_mode<synchronous>, transform_indices = @transform_5, window_bounds = array<i64: 2, 1, 128>}, {pipeline_mode = #tpu.pipeline_mode<synchronous>, transform_indices = @transform_6, window_bounds = array<i64: 2, 32, 32>}, {pipeline_mode = #tpu.pipeline_mode<synchronous>, transform_indices = @transform_7, window_bounds = array<i64: 2, 1, 32>}, {pipeline_mode = #tpu.pipeline_mode<synchronous>, transform_indices = @transform_8, window_bounds = array<i64: 2, 1, 32>}, {pipeline_mode = #tpu.pipeline_mode<synchronous>, transform_indices = @transform_9, window_bounds = array<i64: 2, 1, 32>}, {pipeline_mode = #tpu.pipeline_mode<synchronous>, transform_indices = @transform_10, window_bounds = array<i64: 2, 32, 64>}, {pipeline_mode = #tpu.pipeline_mode<synchronous>, transform_indices = @transform_11, window_bounds = array<i64: 2, 1, 64>}, {pipeline_mode = #tpu.pipeline_mode<synchronous>, transform_indices = @transform_12, window_bounds = array<i64: 2, 64, 32>}, {pipeline_mode = #tpu.pipeline_mode<synchronous>, transform_indices = @transform_13, window_bounds = array<i64: 2, 1, 32>}, {pipeline_mode = #tpu.pipeline_mode<synchronous>, transform_indices = @transform_14, window_bounds = array<i64: 2, 1, 32>}, {pipeline_mode = #tpu.pipeline_mode<synchronous>, transform_indices = @transform_15, window_bounds = array<i64: 2, 1, 32>}, {pipeline_mode = #tpu.pipeline_mode<synchronous>, transform_indices = @transform_16, window_bounds = array<i64: 32, 128>}, {pipeline_mode = #tpu.pipeline_mode<synchronous>, transform_indices = @transform_17, window_bounds = array<i64: 1, 128>}, {transform_indices = @transform_18, window_bounds = array<i64: 1, 1, 128>}]} {
    %c0 = arith.constant 0 : index
    %c0_0 = arith.constant 0 : index
    %c0_1 = arith.constant 0 : index
    %0 = vector.load %arg1[%c0, %c0_0, %c0_1] : memref<1x8x32xf32, #tpu.memory_space<vmem>>, vector<1x8x32xf32>
    %1 = vector.shape_cast %0 : vector<1x8x32xf32> to vector<8x32xf32>
    %c0_2 = arith.constant 0 : index
    %c0_3 = arith.constant 0 : index
    %2 = vector.load %arg3[%c0_2, %c0_3] : memref<1x32xf32, #tpu.memory_space<vmem>>, vector<1x32xf32>
    %c0_4 = arith.constant 0 : index
    %c0_5 = arith.constant 0 : index
    %3 = vector.load %arg4[%c0_4, %c0_5] : memref<1x32xf32, #tpu.memory_space<vmem>>, vector<1x32xf32>
    %cst = arith.constant dense<0.000000e+00> : vector<8xf32>
    %4 = vector.multi_reduction <add>, %1, %cst [1] : vector<8x32xf32> to vector<8xf32>
    %5 = vector.shape_cast %4 : vector<8xf32> to vector<8x1xf32>
    %cst_6 = arith.constant 3.200000e+01 : f32
    %6 = vector.broadcast %cst_6 : f32 to vector<8x1xf32>
    %7 = arith.divf %5, %6 : vector<8x1xf32>
    %8 = vector.broadcast %7 : vector<8x1xf32> to vector<8x32xf32>
    %9 = arith.subf %1, %8 : vector<8x32xf32>
    %10 = arith.mulf %9, %9 : vector<8x32xf32>
    %cst_7 = arith.constant dense<0.000000e+00> : vector<8xf32>
    %11 = vector.multi_reduction <add>, %10, %cst_7 [1] : vector<8x32xf32> to vector<8xf32>
    %12 = vector.shape_cast %11 : vector<8xf32> to vector<8x1xf32>
    %cst_8 = arith.constant 3.200000e+01 : f32
    %13 = vector.broadcast %cst_8 : f32 to vector<8x1xf32>
    %14 = arith.divf %12, %13 : vector<8x1xf32>
    %15 = vector.broadcast %7 : vector<8x1xf32> to vector<8x32xf32>
    %16 = arith.subf %1, %15 : vector<8x32xf32>
    %cst_9 = arith.constant 9.99999974E-6 : f32
    %17 = vector.broadcast %cst_9 : f32 to vector<8x1xf32>
    %18 = arith.addf %14, %17 : vector<8x1xf32>
    %19 = math.rsqrt %18 : vector<8x1xf32>
    %20 = vector.broadcast %19 : vector<8x1xf32> to vector<8x32xf32>
    %21 = arith.mulf %16, %20 : vector<8x32xf32>
    %22 = vector.broadcast %2 : vector<1x32xf32> to vector<8x32xf32>
    %23 = arith.mulf %21, %22 : vector<8x32xf32>
    %24 = vector.broadcast %3 : vector<1x32xf32> to vector<8x32xf32>
    %25 = arith.addf %23, %24 : vector<8x32xf32>
    %c0_10 = arith.constant 0 : index
    %c0_11 = arith.constant 0 : index
    %c0_12 = arith.constant 0 : index
    %26 = vector.load %arg2[%c0_10, %c0_11, %c0_12] : memref<1x1x8xf32, #tpu.memory_space<vmem>>, vector<1x1x8xf32>
    %27 = vector.shape_cast %26 : vector<1x1x8xf32> to vector<1x8xf32>
    %cst_13 = arith.constant 1.000000e+00 : f32
    %28 = vector.broadcast %cst_13 : f32 to vector<1x8xf32>
    %29 = arith.subf %28, %27 : vector<1x8xf32>
    %cst_14 = arith.constant -1.000000e+09 : f32
    %30 = vector.broadcast %cst_14 : f32 to vector<1x8xf32>
    %31 = arith.mulf %29, %30 : vector<1x8xf32>
    %c0_15 = arith.constant 0 : index
    %c0_16 = arith.constant 0 : index
    %c0_17 = arith.constant 0 : index
    %32 = vector.load %arg5[%c0_15, %c0_16, %c0_17] : memref<2x32x128xf32, #tpu.memory_space<vmem>>, vector<1x32x128xf32>
    %33 = vector.shape_cast %32 : vector<1x32x128xf32> to vector<32x128xf32>
    %cst_18 = arith.constant dense<0.000000e+00> : vector<8x128xf32>
    %34 = tpu.matmul %25, %33, %cst_18 {dimension_numbers = #tpu.dot_dimension_numbers<[1], [0], [0], [1], [0, 0, 1, 1], [], []>} : vector<8x32xf32>, vector<32x128xf32>, vector<8x128xf32> -> vector<8x128xf32>
    %c0_19 = arith.constant 0 : index
    %c0_20 = arith.constant 0 : index
    %c0_21 = arith.constant 0 : index
    %35 = vector.load %arg6[%c0_19, %c0_20, %c0_21] : memref<2x1x128xf32, #tpu.memory_space<vmem>>, vector<1x1x128xf32>
    %36 = vector.shape_cast %35 : vector<1x1x128xf32> to vector<1x128xf32>
    %37 = vector.broadcast %36 : vector<1x128xf32> to vector<8x128xf32>
    %38 = arith.addf %34, %37 : vector<8x128xf32>
    %39 = vector.extract_strided_slice %38 {offsets = [0, 0], sizes = [8, 32], strides = [1, 1]} : vector<8x128xf32> to vector<8x32xf32>
    %40 = vector.extract_strided_slice %38 {offsets = [0, 32], sizes = [8, 32], strides = [1, 1]} : vector<8x128xf32> to vector<8x32xf32>
    %41 = vector.extract_strided_slice %38 {offsets = [0, 64], sizes = [8, 32], strides = [1, 1]} : vector<8x128xf32> to vector<8x32xf32>
    %42 = vector.extract_strided_slice %39 {offsets = [0, 0], sizes = [8, 8], strides = [1, 1]} : vector<8x32xf32> to vector<8x8xf32>
    %43 = vector.extract_strided_slice %40 {offsets = [0, 0], sizes = [8, 8], strides = [1, 1]} : vector<8x32xf32> to vector<8x8xf32>
    %44 = vector.extract_strided_slice %41 {offsets = [0, 0], sizes = [8, 8], strides = [1, 1]} : vector<8x32xf32> to vector<8x8xf32>
    "tpu.trace_start"() <{level = 10 : i32, message = "qd,kd->qk"}> : () -> ()
    %cst_22 = arith.constant dense<0.000000e+00> : vector<8x8xf32>
    %45 = tpu.matmul %42, %43, %cst_22 {dimension_numbers = #tpu.dot_dimension_numbers<[1], [1], [0], [0], [0, 0, 1, 0], [], []>} : vector<8x8xf32>, vector<8x8xf32>, vector<8x8xf32> -> vector<8x8xf32>
    "tpu.trace_stop"() : () -> ()
    %cst_23 = arith.constant 0.353553385 : f32
    %46 = vector.broadcast %cst_23 : f32 to vector<8x8xf32>
    %47 = arith.mulf %45, %46 : vector<8x8xf32>
    %48 = vector.broadcast %31 : vector<1x8xf32> to vector<8x8xf32>
    %49 = arith.addf %47, %48 : vector<8x8xf32>
    %cst_24 = arith.constant dense<0xFF800000> : vector<8xf32>
    %50 = vector.multi_reduction <maximumf>, %49, %cst_24 [1] : vector<8x8xf32> to vector<8xf32>
    %51 = vector.shape_cast %50 : vector<8xf32> to vector<8x1xf32>
    %52 = vector.broadcast %51 : vector<8x1xf32> to vector<8x8xf32>
    %53 = arith.subf %49, %52 : vector<8x8xf32>
    %54 = math.exp %53 : vector<8x8xf32>
    %cst_25 = arith.constant dense<0.000000e+00> : vector<8xf32>
    %55 = vector.multi_reduction <add>, %54, %cst_25 [1] : vector<8x8xf32> to vector<8xf32>
    %56 = vector.shape_cast %55 : vector<8xf32> to vector<8x1xf32>
    %57 = tpu.reciprocal %56 {approx = true} : vector<8x1xf32> -> vector<8x1xf32>
    %58 = vector.broadcast %57 : vector<8x1xf32> to vector<8x8xf32>
    %59 = arith.mulf %54, %58 : vector<8x8xf32>
    %cst_26 = arith.constant dense<0.000000e+00> : vector<8x8xf32>
    %60 = tpu.matmul %59, %44, %cst_26 {dimension_numbers = #tpu.dot_dimension_numbers<[1], [0], [0], [1], [0, 0, 1, 1], [], []>} : vector<8x8xf32>, vector<8x8xf32>, vector<8x8xf32> -> vector<8x8xf32>
    %61 = vector.extract_strided_slice %39 {offsets = [0, 8], sizes = [8, 8], strides = [1, 1]} : vector<8x32xf32> to vector<8x8xf32>
    %62 = vector.extract_strided_slice %40 {offsets = [0, 8], sizes = [8, 8], strides = [1, 1]} : vector<8x32xf32> to vector<8x8xf32>
    %63 = vector.extract_strided_slice %41 {offsets = [0, 8], sizes = [8, 8], strides = [1, 1]} : vector<8x32xf32> to vector<8x8xf32>
    "tpu.trace_start"() <{level = 10 : i32, message = "qd,kd->qk"}> : () -> ()
    %cst_27 = arith.constant dense<0.000000e+00> : vector<8x8xf32>
    %64 = tpu.matmul %61, %62, %cst_27 {dimension_numbers = #tpu.dot_dimension_numbers<[1], [1], [0], [0], [0, 0, 1, 0], [], []>} : vector<8x8xf32>, vector<8x8xf32>, vector<8x8xf32> -> vector<8x8xf32>
    "tpu.trace_stop"() : () -> ()
    %cst_28 = arith.constant 0.353553385 : f32
    %65 = vector.broadcast %cst_28 : f32 to vector<8x8xf32>
    %66 = arith.mulf %64, %65 : vector<8x8xf32>
    %67 = vector.broadcast %31 : vector<1x8xf32> to vector<8x8xf32>
    %68 = arith.addf %66, %67 : vector<8x8xf32>
    %cst_29 = arith.constant dense<0xFF800000> : vector<8xf32>
    %69 = vector.multi_reduction <maximumf>, %68, %cst_29 [1] : vector<8x8xf32> to vector<8xf32>
    %70 = vector.shape_cast %69 : vector<8xf32> to vector<8x1xf32>
    %71 = vector.broadcast %70 : vector<8x1xf32> to vector<8x8xf32>
    %72 = arith.subf %68, %71 : vector<8x8xf32>
    %73 = math.exp %72 : vector<8x8xf32>
    %cst_30 = arith.constant dense<0.000000e+00> : vector<8xf32>
    %74 = vector.multi_reduction <add>, %73, %cst_30 [1] : vector<8x8xf32> to vector<8xf32>
    %75 = vector.shape_cast %74 : vector<8xf32> to vector<8x1xf32>
    %76 = tpu.reciprocal %75 {approx = true} : vector<8x1xf32> -> vector<8x1xf32>
    %77 = vector.broadcast %76 : vector<8x1xf32> to vector<8x8xf32>
    %78 = arith.mulf %73, %77 : vector<8x8xf32>
    %cst_31 = arith.constant dense<0.000000e+00> : vector<8x8xf32>
    %79 = tpu.matmul %78, %63, %cst_31 {dimension_numbers = #tpu.dot_dimension_numbers<[1], [0], [0], [1], [0, 0, 1, 1], [], []>} : vector<8x8xf32>, vector<8x8xf32>, vector<8x8xf32> -> vector<8x8xf32>
    %80 = vector.extract_strided_slice %39 {offsets = [0, 16], sizes = [8, 8], strides = [1, 1]} : vector<8x32xf32> to vector<8x8xf32>
    %81 = vector.extract_strided_slice %40 {offsets = [0, 16], sizes = [8, 8], strides = [1, 1]} : vector<8x32xf32> to vector<8x8xf32>
    %82 = vector.extract_strided_slice %41 {offsets = [0, 16], sizes = [8, 8], strides = [1, 1]} : vector<8x32xf32> to vector<8x8xf32>
    "tpu.trace_start"() <{level = 10 : i32, message = "qd,kd->qk"}> : () -> ()
    %cst_32 = arith.constant dense<0.000000e+00> : vector<8x8xf32>
    %83 = tpu.matmul %80, %81, %cst_32 {dimension_numbers = #tpu.dot_dimension_numbers<[1], [1], [0], [0], [0, 0, 1, 0], [], []>} : vector<8x8xf32>, vector<8x8xf32>, vector<8x8xf32> -> vector<8x8xf32>
    "tpu.trace_stop"() : () -> ()
    %cst_33 = arith.constant 0.353553385 : f32
    %84 = vector.broadcast %cst_33 : f32 to vector<8x8xf32>
    %85 = arith.mulf %83, %84 : vector<8x8xf32>
    %86 = vector.broadcast %31 : vector<1x8xf32> to vector<8x8xf32>
    %87 = arith.addf %85, %86 : vector<8x8xf32>
    %cst_34 = arith.constant dense<0xFF800000> : vector<8xf32>
    %88 = vector.multi_reduction <maximumf>, %87, %cst_34 [1] : vector<8x8xf32> to vector<8xf32>
    %89 = vector.shape_cast %88 : vector<8xf32> to vector<8x1xf32>
    %90 = vector.broadcast %89 : vector<8x1xf32> to vector<8x8xf32>
    %91 = arith.subf %87, %90 : vector<8x8xf32>
    %92 = math.exp %91 : vector<8x8xf32>
    %cst_35 = arith.constant dense<0.000000e+00> : vector<8xf32>
    %93 = vector.multi_reduction <add>, %92, %cst_35 [1] : vector<8x8xf32> to vector<8xf32>
    %94 = vector.shape_cast %93 : vector<8xf32> to vector<8x1xf32>
    %95 = tpu.reciprocal %94 {approx = true} : vector<8x1xf32> -> vector<8x1xf32>
    %96 = vector.broadcast %95 : vector<8x1xf32> to vector<8x8xf32>
    %97 = arith.mulf %92, %96 : vector<8x8xf32>
    %cst_36 = arith.constant dense<0.000000e+00> : vector<8x8xf32>
    %98 = tpu.matmul %97, %82, %cst_36 {dimension_numbers = #tpu.dot_dimension_numbers<[1], [0], [0], [1], [0, 0, 1, 1], [], []>} : vector<8x8xf32>, vector<8x8xf32>, vector<8x8xf32> -> vector<8x8xf32>
    %99 = vector.extract_strided_slice %39 {offsets = [0, 24], sizes = [8, 8], strides = [1, 1]} : vector<8x32xf32> to vector<8x8xf32>
    %100 = vector.extract_strided_slice %40 {offsets = [0, 24], sizes = [8, 8], strides = [1, 1]} : vector<8x32xf32> to vector<8x8xf32>
    %101 = vector.extract_strided_slice %41 {offsets = [0, 24], sizes = [8, 8], strides = [1, 1]} : vector<8x32xf32> to vector<8x8xf32>
    "tpu.trace_start"() <{level = 10 : i32, message = "qd,kd->qk"}> : () -> ()
    %cst_37 = arith.constant dense<0.000000e+00> : vector<8x8xf32>
    %102 = tpu.matmul %99, %100, %cst_37 {dimension_numbers = #tpu.dot_dimension_numbers<[1], [1], [0], [0], [0, 0, 1, 0], [], []>} : vector<8x8xf32>, vector<8x8xf32>, vector<8x8xf32> -> vector<8x8xf32>
    "tpu.trace_stop"() : () -> ()
    %cst_38 = arith.constant 0.353553385 : f32
    %103 = vector.broadcast %cst_38 : f32 to vector<8x8xf32>
    %104 = arith.mulf %102, %103 : vector<8x8xf32>
    %105 = vector.broadcast %31 : vector<1x8xf32> to vector<8x8xf32>
    %106 = arith.addf %104, %105 : vector<8x8xf32>
    %cst_39 = arith.constant dense<0xFF800000> : vector<8xf32>
    %107 = vector.multi_reduction <maximumf>, %106, %cst_39 [1] : vector<8x8xf32> to vector<8xf32>
    %108 = vector.shape_cast %107 : vector<8xf32> to vector<8x1xf32>
    %109 = vector.broadcast %108 : vector<8x1xf32> to vector<8x8xf32>
    %110 = arith.subf %106, %109 : vector<8x8xf32>
    %111 = math.exp %110 : vector<8x8xf32>
    %cst_40 = arith.constant dense<0.000000e+00> : vector<8xf32>
    %112 = vector.multi_reduction <add>, %111, %cst_40 [1] : vector<8x8xf32> to vector<8xf32>
    %113 = vector.shape_cast %112 : vector<8xf32> to vector<8x1xf32>
    %114 = tpu.reciprocal %113 {approx = true} : vector<8x1xf32> -> vector<8x1xf32>
    %115 = vector.broadcast %114 : vector<8x1xf32> to vector<8x8xf32>
    %116 = arith.mulf %111, %115 : vector<8x8xf32>
    %cst_41 = arith.constant dense<0.000000e+00> : vector<8x8xf32>
    %117 = tpu.matmul %116, %101, %cst_41 {dimension_numbers = #tpu.dot_dimension_numbers<[1], [0], [0], [1], [0, 0, 1, 1], [], []>} : vector<8x8xf32>, vector<8x8xf32>, vector<8x8xf32> -> vector<8x8xf32>
    %118 = tpu.concatenate %60, %79, %98, %117 in 1 : vector<8x8xf32>, vector<8x8xf32>, vector<8x8xf32>, vector<8x8xf32> -> vector<8x32xf32>
    %c0_42 = arith.constant 0 : index
    %c0_43 = arith.constant 0 : index
    %c0_44 = arith.constant 0 : index
    %119 = vector.load %arg7[%c0_42, %c0_43, %c0_44] : memref<2x32x32xf32, #tpu.memory_space<vmem>>, vector<1x32x32xf32>
    %120 = vector.shape_cast %119 : vector<1x32x32xf32> to vector<32x32xf32>
    %cst_45 = arith.constant dense<0.000000e+00> : vector<8x32xf32>
    %121 = tpu.matmul %118, %120, %cst_45 {dimension_numbers = #tpu.dot_dimension_numbers<[1], [0], [0], [1], [0, 0, 1, 1], [], []>} : vector<8x32xf32>, vector<32x32xf32>, vector<8x32xf32> -> vector<8x32xf32>
    %c0_46 = arith.constant 0 : index
    %c0_47 = arith.constant 0 : index
    %c0_48 = arith.constant 0 : index
    %122 = vector.load %arg8[%c0_46, %c0_47, %c0_48] : memref<2x1x32xf32, #tpu.memory_space<vmem>>, vector<1x1x32xf32>
    %123 = vector.shape_cast %122 : vector<1x1x32xf32> to vector<1x32xf32>
    %124 = vector.broadcast %123 : vector<1x32xf32> to vector<8x32xf32>
    %125 = arith.addf %121, %124 : vector<8x32xf32>
    %126 = arith.addf %125, %25 : vector<8x32xf32>
    %c0_49 = arith.constant 0 : index
    %c0_50 = arith.constant 0 : index
    %c0_51 = arith.constant 0 : index
    %127 = vector.load %arg9[%c0_49, %c0_50, %c0_51] : memref<2x1x32xf32, #tpu.memory_space<vmem>>, vector<1x1x32xf32>
    %128 = vector.shape_cast %127 : vector<1x1x32xf32> to vector<1x32xf32>
    %c0_52 = arith.constant 0 : index
    %c0_53 = arith.constant 0 : index
    %c0_54 = arith.constant 0 : index
    %129 = vector.load %arg10[%c0_52, %c0_53, %c0_54] : memref<2x1x32xf32, #tpu.memory_space<vmem>>, vector<1x1x32xf32>
    %130 = vector.shape_cast %129 : vector<1x1x32xf32> to vector<1x32xf32>
    %cst_55 = arith.constant dense<0.000000e+00> : vector<8xf32>
    %131 = vector.multi_reduction <add>, %126, %cst_55 [1] : vector<8x32xf32> to vector<8xf32>
    %132 = vector.shape_cast %131 : vector<8xf32> to vector<8x1xf32>
    %cst_56 = arith.constant 3.200000e+01 : f32
    %133 = vector.broadcast %cst_56 : f32 to vector<8x1xf32>
    %134 = arith.divf %132, %133 : vector<8x1xf32>
    %135 = vector.broadcast %134 : vector<8x1xf32> to vector<8x32xf32>
    %136 = arith.subf %126, %135 : vector<8x32xf32>
    %137 = arith.mulf %136, %136 : vector<8x32xf32>
    %cst_57 = arith.constant dense<0.000000e+00> : vector<8xf32>
    %138 = vector.multi_reduction <add>, %137, %cst_57 [1] : vector<8x32xf32> to vector<8xf32>
    %139 = vector.shape_cast %138 : vector<8xf32> to vector<8x1xf32>
    %cst_58 = arith.constant 3.200000e+01 : f32
    %140 = vector.broadcast %cst_58 : f32 to vector<8x1xf32>
    %141 = arith.divf %139, %140 : vector<8x1xf32>
    %142 = vector.broadcast %134 : vector<8x1xf32> to vector<8x32xf32>
    %143 = arith.subf %126, %142 : vector<8x32xf32>
    %cst_59 = arith.constant 9.99999974E-6 : f32
    %144 = vector.broadcast %cst_59 : f32 to vector<8x1xf32>
    %145 = arith.addf %141, %144 : vector<8x1xf32>
    %146 = math.rsqrt %145 : vector<8x1xf32>
    %147 = vector.broadcast %146 : vector<8x1xf32> to vector<8x32xf32>
    %148 = arith.mulf %143, %147 : vector<8x32xf32>
    %149 = vector.broadcast %128 : vector<1x32xf32> to vector<8x32xf32>
    %150 = arith.mulf %148, %149 : vector<8x32xf32>
    %151 = vector.broadcast %130 : vector<1x32xf32> to vector<8x32xf32>
    %152 = arith.addf %150, %151 : vector<8x32xf32>
    %c0_60 = arith.constant 0 : index
    %c0_61 = arith.constant 0 : index
    %c0_62 = arith.constant 0 : index
    %153 = vector.load %arg11[%c0_60, %c0_61, %c0_62] : memref<2x32x64xf32, #tpu.memory_space<vmem>>, vector<1x32x64xf32>
    %154 = vector.shape_cast %153 : vector<1x32x64xf32> to vector<32x64xf32>
    %cst_63 = arith.constant dense<0.000000e+00> : vector<8x64xf32>
    %155 = tpu.matmul %152, %154, %cst_63 {dimension_numbers = #tpu.dot_dimension_numbers<[1], [0], [0], [1], [0, 0, 1, 1], [], []>} : vector<8x32xf32>, vector<32x64xf32>, vector<8x64xf32> -> vector<8x64xf32>
    %c0_64 = arith.constant 0 : index
    %c0_65 = arith.constant 0 : index
    %c0_66 = arith.constant 0 : index
    %156 = vector.load %arg12[%c0_64, %c0_65, %c0_66] : memref<2x1x64xf32, #tpu.memory_space<vmem>>, vector<1x1x64xf32>
    %157 = vector.shape_cast %156 : vector<1x1x64xf32> to vector<1x64xf32>
    %158 = vector.broadcast %157 : vector<1x64xf32> to vector<8x64xf32>
    %159 = arith.addf %155, %158 : vector<8x64xf32>
    %cst_67 = arith.constant 5.000000e-01 : f32
    %160 = vector.broadcast %cst_67 : f32 to vector<8x64xf32>
    %161 = arith.mulf %160, %159 : vector<8x64xf32>
    %cst_68 = arith.constant 4.471500e-02 : f32
    %162 = vector.broadcast %cst_68 : f32 to vector<8x64xf32>
    %163 = arith.mulf %162, %159 : vector<8x64xf32>
    %164 = arith.mulf %163, %159 : vector<8x64xf32>
    %165 = arith.mulf %164, %159 : vector<8x64xf32>
    %166 = arith.addf %159, %165 : vector<8x64xf32>
    %cst_69 = arith.constant 0.797884583 : f32
    %167 = vector.broadcast %cst_69 : f32 to vector<8x64xf32>
    %168 = arith.mulf %167, %166 : vector<8x64xf32>
    %169 = math.tanh %168 : vector<8x64xf32>
    %cst_70 = arith.constant 1.000000e+00 : f32
    %170 = vector.broadcast %cst_70 : f32 to vector<8x64xf32>
    %171 = arith.addf %170, %169 : vector<8x64xf32>
    %172 = arith.mulf %161, %171 : vector<8x64xf32>
    %c0_71 = arith.constant 0 : index
    %c0_72 = arith.constant 0 : index
    %c0_73 = arith.constant 0 : index
    %173 = vector.load %arg13[%c0_71, %c0_72, %c0_73] : memref<2x64x32xf32, #tpu.memory_space<vmem>>, vector<1x64x32xf32>
    %174 = vector.shape_cast %173 : vector<1x64x32xf32> to vector<64x32xf32>
    %cst_74 = arith.constant dense<0.000000e+00> : vector<8x32xf32>
    %175 = tpu.matmul %172, %174, %cst_74 {dimension_numbers = #tpu.dot_dimension_numbers<[1], [0], [0], [1], [0, 0, 1, 1], [], []>} : vector<8x64xf32>, vector<64x32xf32>, vector<8x32xf32> -> vector<8x32xf32>
    %c0_75 = arith.constant 0 : index
    %c0_76 = arith.constant 0 : index
    %c0_77 = arith.constant 0 : index
    %176 = vector.load %arg14[%c0_75, %c0_76, %c0_77] : memref<2x1x32xf32, #tpu.memory_space<vmem>>, vector<1x1x32xf32>
    %177 = vector.shape_cast %176 : vector<1x1x32xf32> to vector<1x32xf32>
    %178 = vector.broadcast %177 : vector<1x32xf32> to vector<8x32xf32>
    %179 = arith.addf %175, %178 : vector<8x32xf32>
    %180 = arith.addf %179, %152 : vector<8x32xf32>
    %c0_78 = arith.constant 0 : index
    %c0_79 = arith.constant 0 : index
    %c0_80 = arith.constant 0 : index
    %181 = vector.load %arg15[%c0_78, %c0_79, %c0_80] : memref<2x1x32xf32, #tpu.memory_space<vmem>>, vector<1x1x32xf32>
    %182 = vector.shape_cast %181 : vector<1x1x32xf32> to vector<1x32xf32>
    %c0_81 = arith.constant 0 : index
    %c0_82 = arith.constant 0 : index
    %c0_83 = arith.constant 0 : index
    %183 = vector.load %arg16[%c0_81, %c0_82, %c0_83] : memref<2x1x32xf32, #tpu.memory_space<vmem>>, vector<1x1x32xf32>
    %184 = vector.shape_cast %183 : vector<1x1x32xf32> to vector<1x32xf32>
    %cst_84 = arith.constant dense<0.000000e+00> : vector<8xf32>
    %185 = vector.multi_reduction <add>, %180, %cst_84 [1] : vector<8x32xf32> to vector<8xf32>
    %186 = vector.shape_cast %185 : vector<8xf32> to vector<8x1xf32>
    %cst_85 = arith.constant 3.200000e+01 : f32
    %187 = vector.broadcast %cst_85 : f32 to vector<8x1xf32>
    %188 = arith.divf %186, %187 : vector<8x1xf32>
    %189 = vector.broadcast %188 : vector<8x1xf32> to vector<8x32xf32>
    %190 = arith.subf %180, %189 : vector<8x32xf32>
    %191 = arith.mulf %190, %190 : vector<8x32xf32>
    %cst_86 = arith.constant dense<0.000000e+00> : vector<8xf32>
    %192 = vector.multi_reduction <add>, %191, %cst_86 [1] : vector<8x32xf32> to vector<8xf32>
    %193 = vector.shape_cast %192 : vector<8xf32> to vector<8x1xf32>
    %cst_87 = arith.constant 3.200000e+01 : f32
    %194 = vector.broadcast %cst_87 : f32 to vector<8x1xf32>
    %195 = arith.divf %193, %194 : vector<8x1xf32>
    %196 = vector.broadcast %188 : vector<8x1xf32> to vector<8x32xf32>
    %197 = arith.subf %180, %196 : vector<8x32xf32>
    %cst_88 = arith.constant 9.99999974E-6 : f32
    %198 = vector.broadcast %cst_88 : f32 to vector<8x1xf32>
    %199 = arith.addf %195, %198 : vector<8x1xf32>
    %200 = math.rsqrt %199 : vector<8x1xf32>
    %201 = vector.broadcast %200 : vector<8x1xf32> to vector<8x32xf32>
    %202 = arith.mulf %197, %201 : vector<8x32xf32>
    %203 = vector.broadcast %182 : vector<1x32xf32> to vector<8x32xf32>
    %204 = arith.mulf %202, %203 : vector<8x32xf32>
    %205 = vector.broadcast %184 : vector<1x32xf32> to vector<8x32xf32>
    %206 = arith.addf %204, %205 : vector<8x32xf32>
    %c1 = arith.constant 1 : index
    %c0_89 = arith.constant 0 : index
    %c0_90 = arith.constant 0 : index
    %207 = vector.load %arg5[%c1, %c0_89, %c0_90] : memref<2x32x128xf32, #tpu.memory_space<vmem>>, vector<1x32x128xf32>
    %208 = vector.shape_cast %207 : vector<1x32x128xf32> to vector<32x128xf32>
    %cst_91 = arith.constant dense<0.000000e+00> : vector<8x128xf32>
    %209 = tpu.matmul %206, %208, %cst_91 {dimension_numbers = #tpu.dot_dimension_numbers<[1], [0], [0], [1], [0, 0, 1, 1], [], []>} : vector<8x32xf32>, vector<32x128xf32>, vector<8x128xf32> -> vector<8x128xf32>
    %c1_92 = arith.constant 1 : index
    %c0_93 = arith.constant 0 : index
    %c0_94 = arith.constant 0 : index
    %210 = vector.load %arg6[%c1_92, %c0_93, %c0_94] : memref<2x1x128xf32, #tpu.memory_space<vmem>>, vector<1x1x128xf32>
    %211 = vector.shape_cast %210 : vector<1x1x128xf32> to vector<1x128xf32>
    %212 = vector.broadcast %211 : vector<1x128xf32> to vector<8x128xf32>
    %213 = arith.addf %209, %212 : vector<8x128xf32>
    %214 = vector.extract_strided_slice %213 {offsets = [0, 0], sizes = [8, 32], strides = [1, 1]} : vector<8x128xf32> to vector<8x32xf32>
    %215 = vector.extract_strided_slice %213 {offsets = [0, 32], sizes = [8, 32], strides = [1, 1]} : vector<8x128xf32> to vector<8x32xf32>
    %216 = vector.extract_strided_slice %213 {offsets = [0, 64], sizes = [8, 32], strides = [1, 1]} : vector<8x128xf32> to vector<8x32xf32>
    %217 = vector.extract_strided_slice %214 {offsets = [0, 0], sizes = [8, 8], strides = [1, 1]} : vector<8x32xf32> to vector<8x8xf32>
    %218 = vector.extract_strided_slice %215 {offsets = [0, 0], sizes = [8, 8], strides = [1, 1]} : vector<8x32xf32> to vector<8x8xf32>
    %219 = vector.extract_strided_slice %216 {offsets = [0, 0], sizes = [8, 8], strides = [1, 1]} : vector<8x32xf32> to vector<8x8xf32>
    "tpu.trace_start"() <{level = 10 : i32, message = "qd,kd->qk"}> : () -> ()
    %cst_95 = arith.constant dense<0.000000e+00> : vector<8x8xf32>
    %220 = tpu.matmul %217, %218, %cst_95 {dimension_numbers = #tpu.dot_dimension_numbers<[1], [1], [0], [0], [0, 0, 1, 0], [], []>} : vector<8x8xf32>, vector<8x8xf32>, vector<8x8xf32> -> vector<8x8xf32>
    "tpu.trace_stop"() : () -> ()
    %cst_96 = arith.constant 0.353553385 : f32
    %221 = vector.broadcast %cst_96 : f32 to vector<8x8xf32>
    %222 = arith.mulf %220, %221 : vector<8x8xf32>
    %223 = vector.broadcast %31 : vector<1x8xf32> to vector<8x8xf32>
    %224 = arith.addf %222, %223 : vector<8x8xf32>
    %cst_97 = arith.constant dense<0xFF800000> : vector<8xf32>
    %225 = vector.multi_reduction <maximumf>, %224, %cst_97 [1] : vector<8x8xf32> to vector<8xf32>
    %226 = vector.shape_cast %225 : vector<8xf32> to vector<8x1xf32>
    %227 = vector.broadcast %226 : vector<8x1xf32> to vector<8x8xf32>
    %228 = arith.subf %224, %227 : vector<8x8xf32>
    %229 = math.exp %228 : vector<8x8xf32>
    %cst_98 = arith.constant dense<0.000000e+00> : vector<8xf32>
    %230 = vector.multi_reduction <add>, %229, %cst_98 [1] : vector<8x8xf32> to vector<8xf32>
    %231 = vector.shape_cast %230 : vector<8xf32> to vector<8x1xf32>
    %232 = tpu.reciprocal %231 {approx = true} : vector<8x1xf32> -> vector<8x1xf32>
    %233 = vector.broadcast %232 : vector<8x1xf32> to vector<8x8xf32>
    %234 = arith.mulf %229, %233 : vector<8x8xf32>
    %cst_99 = arith.constant dense<0.000000e+00> : vector<8x8xf32>
    %235 = tpu.matmul %234, %219, %cst_99 {dimension_numbers = #tpu.dot_dimension_numbers<[1], [0], [0], [1], [0, 0, 1, 1], [], []>} : vector<8x8xf32>, vector<8x8xf32>, vector<8x8xf32> -> vector<8x8xf32>
    %236 = vector.extract_strided_slice %214 {offsets = [0, 8], sizes = [8, 8], strides = [1, 1]} : vector<8x32xf32> to vector<8x8xf32>
    %237 = vector.extract_strided_slice %215 {offsets = [0, 8], sizes = [8, 8], strides = [1, 1]} : vector<8x32xf32> to vector<8x8xf32>
    %238 = vector.extract_strided_slice %216 {offsets = [0, 8], sizes = [8, 8], strides = [1, 1]} : vector<8x32xf32> to vector<8x8xf32>
    "tpu.trace_start"() <{level = 10 : i32, message = "qd,kd->qk"}> : () -> ()
    %cst_100 = arith.constant dense<0.000000e+00> : vector<8x8xf32>
    %239 = tpu.matmul %236, %237, %cst_100 {dimension_numbers = #tpu.dot_dimension_numbers<[1], [1], [0], [0], [0, 0, 1, 0], [], []>} : vector<8x8xf32>, vector<8x8xf32>, vector<8x8xf32> -> vector<8x8xf32>
    "tpu.trace_stop"() : () -> ()
    %cst_101 = arith.constant 0.353553385 : f32
    %240 = vector.broadcast %cst_101 : f32 to vector<8x8xf32>
    %241 = arith.mulf %239, %240 : vector<8x8xf32>
    %242 = vector.broadcast %31 : vector<1x8xf32> to vector<8x8xf32>
    %243 = arith.addf %241, %242 : vector<8x8xf32>
    %cst_102 = arith.constant dense<0xFF800000> : vector<8xf32>
    %244 = vector.multi_reduction <maximumf>, %243, %cst_102 [1] : vector<8x8xf32> to vector<8xf32>
    %245 = vector.shape_cast %244 : vector<8xf32> to vector<8x1xf32>
    %246 = vector.broadcast %245 : vector<8x1xf32> to vector<8x8xf32>
    %247 = arith.subf %243, %246 : vector<8x8xf32>
    %248 = math.exp %247 : vector<8x8xf32>
    %cst_103 = arith.constant dense<0.000000e+00> : vector<8xf32>
    %249 = vector.multi_reduction <add>, %248, %cst_103 [1] : vector<8x8xf32> to vector<8xf32>
    %250 = vector.shape_cast %249 : vector<8xf32> to vector<8x1xf32>
    %251 = tpu.reciprocal %250 {approx = true} : vector<8x1xf32> -> vector<8x1xf32>
    %252 = vector.broadcast %251 : vector<8x1xf32> to vector<8x8xf32>
    %253 = arith.mulf %248, %252 : vector<8x8xf32>
    %cst_104 = arith.constant dense<0.000000e+00> : vector<8x8xf32>
    %254 = tpu.matmul %253, %238, %cst_104 {dimension_numbers = #tpu.dot_dimension_numbers<[1], [0], [0], [1], [0, 0, 1, 1], [], []>} : vector<8x8xf32>, vector<8x8xf32>, vector<8x8xf32> -> vector<8x8xf32>
    %255 = vector.extract_strided_slice %214 {offsets = [0, 16], sizes = [8, 8], strides = [1, 1]} : vector<8x32xf32> to vector<8x8xf32>
    %256 = vector.extract_strided_slice %215 {offsets = [0, 16], sizes = [8, 8], strides = [1, 1]} : vector<8x32xf32> to vector<8x8xf32>
    %257 = vector.extract_strided_slice %216 {offsets = [0, 16], sizes = [8, 8], strides = [1, 1]} : vector<8x32xf32> to vector<8x8xf32>
    "tpu.trace_start"() <{level = 10 : i32, message = "qd,kd->qk"}> : () -> ()
    %cst_105 = arith.constant dense<0.000000e+00> : vector<8x8xf32>
    %258 = tpu.matmul %255, %256, %cst_105 {dimension_numbers = #tpu.dot_dimension_numbers<[1], [1], [0], [0], [0, 0, 1, 0], [], []>} : vector<8x8xf32>, vector<8x8xf32>, vector<8x8xf32> -> vector<8x8xf32>
    "tpu.trace_stop"() : () -> ()
    %cst_106 = arith.constant 0.353553385 : f32
    %259 = vector.broadcast %cst_106 : f32 to vector<8x8xf32>
    %260 = arith.mulf %258, %259 : vector<8x8xf32>
    %261 = vector.broadcast %31 : vector<1x8xf32> to vector<8x8xf32>
    %262 = arith.addf %260, %261 : vector<8x8xf32>
    %cst_107 = arith.constant dense<0xFF800000> : vector<8xf32>
    %263 = vector.multi_reduction <maximumf>, %262, %cst_107 [1] : vector<8x8xf32> to vector<8xf32>
    %264 = vector.shape_cast %263 : vector<8xf32> to vector<8x1xf32>
    %265 = vector.broadcast %264 : vector<8x1xf32> to vector<8x8xf32>
    %266 = arith.subf %262, %265 : vector<8x8xf32>
    %267 = math.exp %266 : vector<8x8xf32>
    %cst_108 = arith.constant dense<0.000000e+00> : vector<8xf32>
    %268 = vector.multi_reduction <add>, %267, %cst_108 [1] : vector<8x8xf32> to vector<8xf32>
    %269 = vector.shape_cast %268 : vector<8xf32> to vector<8x1xf32>
    %270 = tpu.reciprocal %269 {approx = true} : vector<8x1xf32> -> vector<8x1xf32>
    %271 = vector.broadcast %270 : vector<8x1xf32> to vector<8x8xf32>
    %272 = arith.mulf %267, %271 : vector<8x8xf32>
    %cst_109 = arith.constant dense<0.000000e+00> : vector<8x8xf32>
    %273 = tpu.matmul %272, %257, %cst_109 {dimension_numbers = #tpu.dot_dimension_numbers<[1], [0], [0], [1], [0, 0, 1, 1], [], []>} : vector<8x8xf32>, vector<8x8xf32>, vector<8x8xf32> -> vector<8x8xf32>
    %274 = vector.extract_strided_slice %214 {offsets = [0, 24], sizes = [8, 8], strides = [1, 1]} : vector<8x32xf32> to vector<8x8xf32>
    %275 = vector.extract_strided_slice %215 {offsets = [0, 24], sizes = [8, 8], strides = [1, 1]} : vector<8x32xf32> to vector<8x8xf32>
    %276 = vector.extract_strided_slice %216 {offsets = [0, 24], sizes = [8, 8], strides = [1, 1]} : vector<8x32xf32> to vector<8x8xf32>
    "tpu.trace_start"() <{level = 10 : i32, message = "qd,kd->qk"}> : () -> ()
    %cst_110 = arith.constant dense<0.000000e+00> : vector<8x8xf32>
    %277 = tpu.matmul %274, %275, %cst_110 {dimension_numbers = #tpu.dot_dimension_numbers<[1], [1], [0], [0], [0, 0, 1, 0], [], []>} : vector<8x8xf32>, vector<8x8xf32>, vector<8x8xf32> -> vector<8x8xf32>
    "tpu.trace_stop"() : () -> ()
    %cst_111 = arith.constant 0.353553385 : f32
    %278 = vector.broadcast %cst_111 : f32 to vector<8x8xf32>
    %279 = arith.mulf %277, %278 : vector<8x8xf32>
    %280 = vector.broadcast %31 : vector<1x8xf32> to vector<8x8xf32>
    %281 = arith.addf %279, %280 : vector<8x8xf32>
    %cst_112 = arith.constant dense<0xFF800000> : vector<8xf32>
    %282 = vector.multi_reduction <maximumf>, %281, %cst_112 [1] : vector<8x8xf32> to vector<8xf32>
    %283 = vector.shape_cast %282 : vector<8xf32> to vector<8x1xf32>
    %284 = vector.broadcast %283 : vector<8x1xf32> to vector<8x8xf32>
    %285 = arith.subf %281, %284 : vector<8x8xf32>
    %286 = math.exp %285 : vector<8x8xf32>
    %cst_113 = arith.constant dense<0.000000e+00> : vector<8xf32>
    %287 = vector.multi_reduction <add>, %286, %cst_113 [1] : vector<8x8xf32> to vector<8xf32>
    %288 = vector.shape_cast %287 : vector<8xf32> to vector<8x1xf32>
    %289 = tpu.reciprocal %288 {approx = true} : vector<8x1xf32> -> vector<8x1xf32>
    %290 = vector.broadcast %289 : vector<8x1xf32> to vector<8x8xf32>
    %291 = arith.mulf %286, %290 : vector<8x8xf32>
    %cst_114 = arith.constant dense<0.000000e+00> : vector<8x8xf32>
    %292 = tpu.matmul %291, %276, %cst_114 {dimension_numbers = #tpu.dot_dimension_numbers<[1], [0], [0], [1], [0, 0, 1, 1], [], []>} : vector<8x8xf32>, vector<8x8xf32>, vector<8x8xf32> -> vector<8x8xf32>
    %293 = tpu.concatenate %235, %254, %273, %292 in 1 : vector<8x8xf32>, vector<8x8xf32>, vector<8x8xf32>, vector<8x8xf32> -> vector<8x32xf32>
    %c1_115 = arith.constant 1 : index
    %c0_116 = arith.constant 0 : index
    %c0_117 = arith.constant 0 : index
    %294 = vector.load %arg7[%c1_115, %c0_116, %c0_117] : memref<2x32x32xf32, #tpu.memory_space<vmem>>, vector<1x32x32xf32>
    %295 = vector.shape_cast %294 : vector<1x32x32xf32> to vector<32x32xf32>
    %cst_118 = arith.constant dense<0.000000e+00> : vector<8x32xf32>
    %296 = tpu.matmul %293, %295, %cst_118 {dimension_numbers = #tpu.dot_dimension_numbers<[1], [0], [0], [1], [0, 0, 1, 1], [], []>} : vector<8x32xf32>, vector<32x32xf32>, vector<8x32xf32> -> vector<8x32xf32>
    %c1_119 = arith.constant 1 : index
    %c0_120 = arith.constant 0 : index
    %c0_121 = arith.constant 0 : index
    %297 = vector.load %arg8[%c1_119, %c0_120, %c0_121] : memref<2x1x32xf32, #tpu.memory_space<vmem>>, vector<1x1x32xf32>
    %298 = vector.shape_cast %297 : vector<1x1x32xf32> to vector<1x32xf32>
    %299 = vector.broadcast %298 : vector<1x32xf32> to vector<8x32xf32>
    %300 = arith.addf %296, %299 : vector<8x32xf32>
    %301 = arith.addf %300, %206 : vector<8x32xf32>
    %c1_122 = arith.constant 1 : index
    %c0_123 = arith.constant 0 : index
    %c0_124 = arith.constant 0 : index
    %302 = vector.load %arg9[%c1_122, %c0_123, %c0_124] : memref<2x1x32xf32, #tpu.memory_space<vmem>>, vector<1x1x32xf32>
    %303 = vector.shape_cast %302 : vector<1x1x32xf32> to vector<1x32xf32>
    %c1_125 = arith.constant 1 : index
    %c0_126 = arith.constant 0 : index
    %c0_127 = arith.constant 0 : index
    %304 = vector.load %arg10[%c1_125, %c0_126, %c0_127] : memref<2x1x32xf32, #tpu.memory_space<vmem>>, vector<1x1x32xf32>
    %305 = vector.shape_cast %304 : vector<1x1x32xf32> to vector<1x32xf32>
    %cst_128 = arith.constant dense<0.000000e+00> : vector<8xf32>
    %306 = vector.multi_reduction <add>, %301, %cst_128 [1] : vector<8x32xf32> to vector<8xf32>
    %307 = vector.shape_cast %306 : vector<8xf32> to vector<8x1xf32>
    %cst_129 = arith.constant 3.200000e+01 : f32
    %308 = vector.broadcast %cst_129 : f32 to vector<8x1xf32>
    %309 = arith.divf %307, %308 : vector<8x1xf32>
    %310 = vector.broadcast %309 : vector<8x1xf32> to vector<8x32xf32>
    %311 = arith.subf %301, %310 : vector<8x32xf32>
    %312 = arith.mulf %311, %311 : vector<8x32xf32>
    %cst_130 = arith.constant dense<0.000000e+00> : vector<8xf32>
    %313 = vector.multi_reduction <add>, %312, %cst_130 [1] : vector<8x32xf32> to vector<8xf32>
    %314 = vector.shape_cast %313 : vector<8xf32> to vector<8x1xf32>
    %cst_131 = arith.constant 3.200000e+01 : f32
    %315 = vector.broadcast %cst_131 : f32 to vector<8x1xf32>
    %316 = arith.divf %314, %315 : vector<8x1xf32>
    %317 = vector.broadcast %309 : vector<8x1xf32> to vector<8x32xf32>
    %318 = arith.subf %301, %317 : vector<8x32xf32>
    %cst_132 = arith.constant 9.99999974E-6 : f32
    %319 = vector.broadcast %cst_132 : f32 to vector<8x1xf32>
    %320 = arith.addf %316, %319 : vector<8x1xf32>
    %321 = math.rsqrt %320 : vector<8x1xf32>
    %322 = vector.broadcast %321 : vector<8x1xf32> to vector<8x32xf32>
    %323 = arith.mulf %318, %322 : vector<8x32xf32>
    %324 = vector.broadcast %303 : vector<1x32xf32> to vector<8x32xf32>
    %325 = arith.mulf %323, %324 : vector<8x32xf32>
    %326 = vector.broadcast %305 : vector<1x32xf32> to vector<8x32xf32>
    %327 = arith.addf %325, %326 : vector<8x32xf32>
    %c1_133 = arith.constant 1 : index
    %c0_134 = arith.constant 0 : index
    %c0_135 = arith.constant 0 : index
    %328 = vector.load %arg11[%c1_133, %c0_134, %c0_135] : memref<2x32x64xf32, #tpu.memory_space<vmem>>, vector<1x32x64xf32>
    %329 = vector.shape_cast %328 : vector<1x32x64xf32> to vector<32x64xf32>
    %cst_136 = arith.constant dense<0.000000e+00> : vector<8x64xf32>
    %330 = tpu.matmul %327, %329, %cst_136 {dimension_numbers = #tpu.dot_dimension_numbers<[1], [0], [0], [1], [0, 0, 1, 1], [], []>} : vector<8x32xf32>, vector<32x64xf32>, vector<8x64xf32> -> vector<8x64xf32>
    %c1_137 = arith.constant 1 : index
    %c0_138 = arith.constant 0 : index
    %c0_139 = arith.constant 0 : index
    %331 = vector.load %arg12[%c1_137, %c0_138, %c0_139] : memref<2x1x64xf32, #tpu.memory_space<vmem>>, vector<1x1x64xf32>
    %332 = vector.shape_cast %331 : vector<1x1x64xf32> to vector<1x64xf32>
    %333 = vector.broadcast %332 : vector<1x64xf32> to vector<8x64xf32>
    %334 = arith.addf %330, %333 : vector<8x64xf32>
    %cst_140 = arith.constant 5.000000e-01 : f32
    %335 = vector.broadcast %cst_140 : f32 to vector<8x64xf32>
    %336 = arith.mulf %335, %334 : vector<8x64xf32>
    %cst_141 = arith.constant 4.471500e-02 : f32
    %337 = vector.broadcast %cst_141 : f32 to vector<8x64xf32>
    %338 = arith.mulf %337, %334 : vector<8x64xf32>
    %339 = arith.mulf %338, %334 : vector<8x64xf32>
    %340 = arith.mulf %339, %334 : vector<8x64xf32>
    %341 = arith.addf %334, %340 : vector<8x64xf32>
    %cst_142 = arith.constant 0.797884583 : f32
    %342 = vector.broadcast %cst_142 : f32 to vector<8x64xf32>
    %343 = arith.mulf %342, %341 : vector<8x64xf32>
    %344 = math.tanh %343 : vector<8x64xf32>
    %cst_143 = arith.constant 1.000000e+00 : f32
    %345 = vector.broadcast %cst_143 : f32 to vector<8x64xf32>
    %346 = arith.addf %345, %344 : vector<8x64xf32>
    %347 = arith.mulf %336, %346 : vector<8x64xf32>
    %c1_144 = arith.constant 1 : index
    %c0_145 = arith.constant 0 : index
    %c0_146 = arith.constant 0 : index
    %348 = vector.load %arg13[%c1_144, %c0_145, %c0_146] : memref<2x64x32xf32, #tpu.memory_space<vmem>>, vector<1x64x32xf32>
    %349 = vector.shape_cast %348 : vector<1x64x32xf32> to vector<64x32xf32>
    %cst_147 = arith.constant dense<0.000000e+00> : vector<8x32xf32>
    %350 = tpu.matmul %347, %349, %cst_147 {dimension_numbers = #tpu.dot_dimension_numbers<[1], [0], [0], [1], [0, 0, 1, 1], [], []>} : vector<8x64xf32>, vector<64x32xf32>, vector<8x32xf32> -> vector<8x32xf32>
    %c1_148 = arith.constant 1 : index
    %c0_149 = arith.constant 0 : index
    %c0_150 = arith.constant 0 : index
    %351 = vector.load %arg14[%c1_148, %c0_149, %c0_150] : memref<2x1x32xf32, #tpu.memory_space<vmem>>, vector<1x1x32xf32>
    %352 = vector.shape_cast %351 : vector<1x1x32xf32> to vector<1x32xf32>
    %353 = vector.broadcast %352 : vector<1x32xf32> to vector<8x32xf32>
    %354 = arith.addf %350, %353 : vector<8x32xf32>
    %355 = arith.addf %354, %327 : vector<8x32xf32>
    %c1_151 = arith.constant 1 : index
    %c0_152 = arith.constant 0 : index
    %c0_153 = arith.constant 0 : index
    %356 = vector.load %arg15[%c1_151, %c0_152, %c0_153] : memref<2x1x32xf32, #tpu.memory_space<vmem>>, vector<1x1x32xf32>
    %357 = vector.shape_cast %356 : vector<1x1x32xf32> to vector<1x32xf32>
    %c1_154 = arith.constant 1 : index
    %c0_155 = arith.constant 0 : index
    %c0_156 = arith.constant 0 : index
    %358 = vector.load %arg16[%c1_154, %c0_155, %c0_156] : memref<2x1x32xf32, #tpu.memory_space<vmem>>, vector<1x1x32xf32>
    %359 = vector.shape_cast %358 : vector<1x1x32xf32> to vector<1x32xf32>
    %cst_157 = arith.constant dense<0.000000e+00> : vector<8xf32>
    %360 = vector.multi_reduction <add>, %355, %cst_157 [1] : vector<8x32xf32> to vector<8xf32>
    %361 = vector.shape_cast %360 : vector<8xf32> to vector<8x1xf32>
    %cst_158 = arith.constant 3.200000e+01 : f32
    %362 = vector.broadcast %cst_158 : f32 to vector<8x1xf32>
    %363 = arith.divf %361, %362 : vector<8x1xf32>
    %364 = vector.broadcast %363 : vector<8x1xf32> to vector<8x32xf32>
    %365 = arith.subf %355, %364 : vector<8x32xf32>
    %366 = arith.mulf %365, %365 : vector<8x32xf32>
    %cst_159 = arith.constant dense<0.000000e+00> : vector<8xf32>
    %367 = vector.multi_reduction <add>, %366, %cst_159 [1] : vector<8x32xf32> to vector<8xf32>
    %368 = vector.shape_cast %367 : vector<8xf32> to vector<8x1xf32>
    %cst_160 = arith.constant 3.200000e+01 : f32
    %369 = vector.broadcast %cst_160 : f32 to vector<8x1xf32>
    %370 = arith.divf %368, %369 : vector<8x1xf32>
    %371 = vector.broadcast %363 : vector<8x1xf32> to vector<8x32xf32>
    %372 = arith.subf %355, %371 : vector<8x32xf32>
    %cst_161 = arith.constant 9.99999974E-6 : f32
    %373 = vector.broadcast %cst_161 : f32 to vector<8x1xf32>
    %374 = arith.addf %370, %373 : vector<8x1xf32>
    %375 = math.rsqrt %374 : vector<8x1xf32>
    %376 = vector.broadcast %375 : vector<8x1xf32> to vector<8x32xf32>
    %377 = arith.mulf %372, %376 : vector<8x32xf32>
    %378 = vector.broadcast %357 : vector<1x32xf32> to vector<8x32xf32>
    %379 = arith.mulf %377, %378 : vector<8x32xf32>
    %380 = vector.broadcast %359 : vector<1x32xf32> to vector<8x32xf32>
    %381 = arith.addf %379, %380 : vector<8x32xf32>
    %c0_162 = arith.constant 0 : index
    %c0_163 = arith.constant 0 : index
    %382 = vector.load %arg17[%c0_162, %c0_163] : memref<32x128xf32, #tpu.memory_space<vmem>>, vector<32x128xf32>
    %cst_164 = arith.constant dense<0.000000e+00> : vector<8x128xf32>
    %383 = tpu.matmul %381, %382, %cst_164 {dimension_numbers = #tpu.dot_dimension_numbers<[1], [0], [0], [1], [0, 0, 1, 1], [], []>} : vector<8x32xf32>, vector<32x128xf32>, vector<8x128xf32> -> vector<8x128xf32>
    %c0_165 = arith.constant 0 : index
    %c0_166 = arith.constant 0 : index
    %384 = vector.load %arg18[%c0_165, %c0_166] : memref<1x128xf32, #tpu.memory_space<vmem>>, vector<1x128xf32>
    %385 = vector.broadcast %384 : vector<1x128xf32> to vector<8x128xf32>
    %386 = arith.addf %383, %385 : vector<8x128xf32>
    %387 = vector.extract_strided_slice %386 {offsets = [0, 0], sizes = [1, 128], strides = [1, 1]} : vector<8x128xf32> to vector<1x128xf32>
    %c0_167 = arith.constant 0 : index
    %c0_168 = arith.constant 0 : index
    %c0_169 = arith.constant 0 : index
    %388 = vector.load %arg19[%c0_167, %c0_168, %c0_169] : memref<1x1x128xf32, #tpu.memory_space<vmem>>, vector<1x1x128xf32>
    %389 = vector.shape_cast %388 : vector<1x1x128xf32> to vector<1x128xf32>
    %390 = vector.shape_cast %387 : vector<1x128xf32> to vector<1x1x128xf32>
    tpu.vector_store %arg19[%c0_167, %c0_168, %c0_169], %390 {strides = array<i32>} : memref<1x1x128xf32, #tpu.memory_space<vmem>>, vector<1x1x128xf32>,
    return
  }
  func.func @transform_0(%arg0: i32) -> (i32, i32, i32) {
    %c0_i32 = arith.constant 0 : i32
    %c0_i32_0 = arith.constant 0 : i32
    %c0_i32_1 = arith.constant 0 : i32
    return %arg0, %c0_i32, %c0_i32_0 : i32, i32, i32
  }
  func.func @transform_1(%arg0: i32) -> (i32, i32, i32) {
    %c0_i32 = arith.constant 0 : i32
    %c0_i32_0 = arith.constant 0 : i32
    %c0_i32_1 = arith.constant 0 : i32
    return %arg0, %c0_i32, %c0_i32_0 : i32, i32, i32
  }
  func.func @transform_2(%arg0: i32) -> (i32, i32) {
    %c0_i32 = arith.constant 0 : i32
    %c0_i32_0 = arith.constant 0 : i32
    %c0_i32_1 = arith.constant 0 : i32
    return %c0_i32, %c0_i32_0 : i32, i32
  }
  func.func @transform_3(%arg0: i32) -> (i32, i32) {
    %c0_i32 = arith.constant 0 : i32
    %c0_i32_0 = arith.constant 0 : i32
    %c0_i32_1 = arith.constant 0 : i32
    return %c0_i32, %c0_i32_0 : i32, i32
  }
  func.func @transform_4(%arg0: i32) -> (i32, i32, i32) {
    %c0_i32 = arith.constant 0 : i32
    %c0_i32_0 = arith.constant 0 : i32
    %c0_i32_1 = arith.constant 0 : i32
    %c0_i32_2 = arith.constant 0 : i32
    return %c0_i32, %c0_i32_0, %c0_i32_1 : i32, i32, i32
  }
  func.func @transform_5(%arg0: i32) -> (i32, i32, i32) {
    %c0_i32 = arith.constant 0 : i32
    %c0_i32_0 = arith.constant 0 : i32
    %c0_i32_1 = arith.constant 0 : i32
    %c0_i32_2 = arith.constant 0 : i32
    return %c0_i32, %c0_i32_0, %c0_i32_1 : i32, i32, i32
  }
  func.func @transform_6(%arg0: i32) -> (i32, i32, i32) {
    %c0_i32 = arith.constant 0 : i32
    %c0_i32_0 = arith.constant 0 : i32
    %c0_i32_1 = arith.constant 0 : i32
    %c0_i32_2 = arith.constant 0 : i32
    return %c0_i32, %c0_i32_0, %c0_i32_1 : i32, i32, i32
  }
  func.func @transform_7(%arg0: i32) -> (i32, i32, i32) {
    %c0_i32 = arith.constant 0 : i32
    %c0_i32_0 = arith.constant 0 : i32
    %c0_i32_1 = arith.constant 0 : i32
    %c0_i32_2 = arith.constant 0 : i32
    return %c0_i32, %c0_i32_0, %c0_i32_1 : i32, i32, i32
  }
  func.func @transform_8(%arg0: i32) -> (i32, i32, i32) {
    %c0_i32 = arith.constant 0 : i32
    %c0_i32_0 = arith.constant 0 : i32
    %c0_i32_1 = arith.constant 0 : i32
    %c0_i32_2 = arith.constant 0 : i32
    return %c0_i32, %c0_i32_0, %c0_i32_1 : i32, i32, i32
  }
  func.func @transform_9(%arg0: i32) -> (i32, i32, i32) {
    %c0_i32 = arith.constant 0 : i32
    %c0_i32_0 = arith.constant 0 : i32
    %c0_i32_1 = arith.constant 0 : i32
    %c0_i32_2 = arith.constant 0 : i32
    return %c0_i32, %c0_i32_0, %c0_i32_1 : i32, i32, i32
  }
  func.func @transform_10(%arg0: i32) -> (i32, i32, i32) {
    %c0_i32 = arith.constant 0 : i32
    %c0_i32_0 = arith.constant 0 : i32
    %c0_i32_1 = arith.constant 0 : i32
    %c0_i32_2 = arith.constant 0 : i32
    return %c0_i32, %c0_i32_0, %c0_i32_1 : i32, i32, i32
  }
  func.func @transform_11(%arg0: i32) -> (i32, i32, i32) {
    %c0_i32 = arith.constant 0 : i32
    %c0_i32_0 = arith.constant 0 : i32
    %c0_i32_1 = arith.constant 0 : i32
    %c0_i32_2 = arith.constant 0 : i32
    return %c0_i32, %c0_i32_0, %c0_i32_1 : i32, i32, i32
  }
  func.func @transform_12(%arg0: i32) -> (i32, i32, i32) {
    %c0_i32 = arith.constant 0 : i32
    %c0_i32_0 = arith.constant 0 : i32
    %c0_i32_1 = arith.constant 0 : i32
    %c0_i32_2 = arith.constant 0 : i32
    return %c0_i32, %c0_i32_0, %c0_i32_1 : i32, i32, i32
  }
  func.func @transform_13(%arg0: i32) -> (i32, i32, i32) {
    %c0_i32 = arith.constant 0 : i32
    %c0_i32_0 = arith.constant 0 : i32
    %c0_i32_1 = arith.constant 0 : i32
    %c0_i32_2 = arith.constant 0 : i32
    return %c0_i32, %c0_i32_0, %c0_i32_1 : i32, i32, i32
  }
  func.func @transform_14(%arg0: i32) -> (i32, i32, i32) {
    %c0_i32 = arith.constant 0 : i32
    %c0_i32_0 = arith.constant 0 : i32
    %c0_i32_1 = arith.constant 0 : i32
    %c0_i32_2 = arith.constant 0 : i32
    return %c0_i32, %c0_i32_0, %c0_i32_1 : i32, i32, i32
  }
  func.func @transform_15(%arg0: i32) -> (i32, i32, i32) {
    %c0_i32 = arith.constant 0 : i32
    %c0_i32_0 = arith.constant 0 : i32
    %c0_i32_1 = arith.constant 0 : i32
    %c0_i32_2 = arith.constant 0 : i32
    return %c0_i32, %c0_i32_0, %c0_i32_1 : i32, i32, i32
  }
  func.func @transform_16(%arg0: i32) -> (i32, i32) {
    %c0_i32 = arith.constant 0 : i32
    %c0_i32_0 = arith.constant 0 : i32
    %c0_i32_1 = arith.constant 0 : i32
    return %c0_i32, %c0_i32_0 : i32, i32
  }
  func.func @transform_17(%arg0: i32) -> (i32, i32) {
    %c0_i32 = arith.constant 0 : i32
    %c0_i32_0 = arith.constant 0 : i32
    %c0_i32_1 = arith.constant 0 : i32
    return %c0_i32, %c0_i32_0 : i32, i32
  }
  func.func @transform_18(%arg0: i32) -> (i32, i32, i32) {
    %c0_i32 = arith.constant 0 : i32
    %c0_i32_0 = arith.constant 0 : i32
    %c0_i32_1 = arith.constant 0 : i32
    return %arg0, %c0_i32, %c0_i32_0 : i32, i32, i32
  }
}

</mosaic_0001>

<llo_original>
// kernel: roberta_classifier_forward.1
$region0: #{roberta_classifier_forward.1}
  #allocation0 [shape = 'u32[]', space=smem, size = 0x4, offset = 0x4, fixed_abs, tag = 'smem constant byte address 0x4 - core index']
  #allocation1 [shape = 'u32[144,128]{1,0:T(1,128)}', space=vmem, size = 0x12000, scoped, tag = 'internal scratch']
  %s0 = inlined_call_operand.vmem [shape: f32[2,8,32], index: 0, kind: input, shape index: {}]
  %s1 = inlined_call_operand.vmem [shape: f32[2,1,8], index: 1, kind: input, shape index: {}]
  %s2 = inlined_call_operand.vmem [shape: f32[1,32], index: 2, kind: input, shape index: {}]
  %s3 = inlined_call_operand.vmem [shape: f32[1,32], index: 3, kind: input, shape index: {}]
  %s4 = inlined_call_operand.vmem [shape: f32[2,32,128], index: 4, kind: input, shape index: {}]
  %s5 = inlined_call_operand.vmem [shape: f32[2,1,128], index: 5, kind: input, shape index: {}]
  %s6 = inlined_call_operand.vmem [shape: f32[2,32,32], index: 6, kind: input, shape index: {}]
  %s7 = inlined_call_operand.vmem [shape: f32[2,1,32], index: 7, kind: input, shape index: {}]
  %s8 = inlined_call_operand.vmem [shape: f32[2,1,32], index: 8, kind: input, shape index: {}]
  %s9 = inlined_call_operand.vmem [shape: f32[2,1,32], index: 9, kind: input, shape index: {}]
  %s10 = inlined_call_operand.vmem [shape: f32[2,32,64], index: 10, kind: input, shape index: {}]
  %s11 = inlined_call_operand.vmem [shape: f32[2,1,64], index: 11, kind: input, shape index: {}]
  %s12 = inlined_call_operand.vmem [shape: f32[2,64,32], index: 12, kind: input, shape index: {}]
  %s13 = inlined_call_operand.vmem [shape: f32[2,1,32], index: 13, kind: input, shape index: {}]
  %s14 = inlined_call_operand.vmem [shape: f32[2,1,32], index: 14, kind: input, shape index: {}]
  %s15 = inlined_call_operand.vmem [shape: f32[2,1,32], index: 15, kind: input, shape index: {}]
  %s16 = inlined_call_operand.vmem [shape: f32[32,128], index: 16, kind: input, shape index: {}]
  %s17 = inlined_call_operand.vmem [shape: f32[1,128], index: 17, kind: input, shape index: {}]
  %s18 = inlined_call_operand.hbm [shape: f32[2,1,128], index: 18, kind: output, shape index: {}]
  %s19 = sld [smem:[#allocation0]]
  $region105: #{roberta_classifier_forward.1} parent=0
    _
  %s21 = ssub.s32 1, %s19
  %s22 = scalar_select 0, %s21, %s19
  $region1: #{roberta_classifier_forward.1} parent=0
    #allocation2 [shape = 'u8[1024]{0}', space=vmem, size = 0x400, scoped, tag = 'output window, operand 0']
    #allocation3 [shape = 's32[2]{0}', space=sflag, size = 0x8, scoped, tag = 'scoped memory for roberta_classifier_forward.1']
    %23 = vsyncpa [#allocation3], 0
    %s24 = scalar_lea.sflag [#allocation3], 1
    %25 = vsyncpa %s24, 0
    loop: start=0, step=1, limit=4
    $region2: #{roberta_classifier_forward.1} parent=1 // loop_pre_header
      _
    $region3: #{roberta_classifier_forward.1} parent=1 // loop_header
      %s27 = sphi 0, %s31
      %p28 = scmp.ge.s32.totalorder %s27, 4
      %s37 = sphi 0, %s39
      %s40 = sphi 0, %s37
      %s41 = sphi 0, %s40
      %s57 = sphi 0, %s41
      %s63 = sphi 0, %s65
      %s66 = sphi 0, %s63
      %s67 = sphi 0, %s66
      %s83 = sphi 0, %s67
      %s87 = sphi 0, %s87
      %s89 = sphi 0, %s87
      %s90 = sphi 0, %s89
      %s104 = sphi 0, %s90
      %s108 = sphi 0, %s108
      %s110 = sphi 0, %s108
      %s111 = sphi 0, %s110
      %s125 = sphi 0, %s111
      %s129 = sphi 0, %s129
      %s131 = sphi 0, %s129
      %s132 = sphi 0, %s131
      %s146 = sphi 0, %s132
      %s150 = sphi 0, %s150
      %s152 = sphi 0, %s150
      %s153 = sphi 0, %s152
      %s167 = sphi 0, %s153
      %s171 = sphi 0, %s171
      %s173 = sphi 0, %s171
      %s174 = sphi 0, %s173
      %s188 = sphi 0, %s174
      %s192 = sphi 0, %s192
      %s194 = sphi 0, %s192
      %s195 = sphi 0, %s194
      %s209 = sphi 0, %s195
      %s213 = sphi 0, %s213
      %s215 = sphi 0, %s213
      %s216 = sphi 0, %s215
      %s230 = sphi 0, %s216
      %s234 = sphi 0, %s234
      %s236 = sphi 0, %s234
      %s237 = sphi 0, %s236
      %s251 = sphi 0, %s237
      %s255 = sphi 0, %s255
      %s257 = sphi 0, %s255
      %s258 = sphi 0, %s257
      %s272 = sphi 0, %s258
      %s276 = sphi 0, %s276
      %s278 = sphi 0, %s276
      %s279 = sphi 0, %s278
      %s293 = sphi 0, %s279
      %s297 = sphi 0, %s297
      %s299 = sphi 0, %s297
      %s300 = sphi 0, %s299
      %s314 = sphi 0, %s300
      %s318 = sphi 0, %s318
      %s320 = sphi 0, %s318
      %s321 = sphi 0, %s320
      %s335 = sphi 0, %s321
      %s339 = sphi 0, %s339
      %s341 = sphi 0, %s339
      %s342 = sphi 0, %s341
      %s356 = sphi 0, %s342
      %s360 = sphi 0, %s360
      %s362 = sphi 0, %s360
      %s363 = sphi 0, %s362
      %s377 = sphi 0, %s363
      %s381 = sphi 0, %s381
      %s383 = sphi 0, %s381
      %s384 = sphi 0, %s383
      %s398 = sphi 0, %s384
      %s402 = sphi 0, %s402
      %s404 = sphi 0, %s402
      %s405 = sphi 0, %s404
      %s419 = sphi 0, %s405
      %s425 = sphi 0, %s427
      %s428 = sphi 0, %s425
      %s429 = sphi 0, %s428
      %s445 = sphi 0, %s429
    $region4: #{roberta_classifier_forward.1} parent=1 // loop_header_branch
      %30 = sbr.rel (%p28) target = $region8
    $region5: #{roberta_classifier_forward.1} parent=1 // loop_body
      %s32 = ssub.s32 %s27, 1
      %s33 = ssub.s32 %s27, 2
      %s34 = sadd.s32 %s27, 1
      %s35 = ssub.s32 %s27, %s34
      %p36 = scmp.eq.s32.totalorder %s35, 0
      %s38 = sadd.s32 %s37, 1
      %s39 = scalar_select %p36, %s37, %s38
      %p42 = pneg %p36
      %p43 = scmp.eq.s32.totalorder %s27, 1
      %p44 = por %p42, %p43
      %p45 = scmp.ne.s32.totalorder %s37, %s40
      %p46 = scmp.eq.s32.totalorder %s27, 0
      %p47 = por %p45, %p46
      %p48 = scmp.ne.s32.totalorder %s37, %s40
      %p49 = scmp.eq.s32.totalorder %s32, 1
      %p50 = por %p48, %p49
      %p51 = scmp.ne.s32.totalorder %s40, %s41
      %p52 = scmp.eq.s32.totalorder %s32, 0
      %p53 = por %p51, %p52
      %p54 = scmp.ne.s32.totalorder %s40, %s41
      %p55 = scmp.eq.s32.totalorder %s33, 1
      %p56 = por %p54, %p55
      %p58 = scmp.ne.s32.totalorder %s41, %s57
      %p59 = scmp.eq.s32.totalorder %s33, 0
      %p60 = por %p58, %p59
      %s61 = ssub.s32 %s27, %s34
      %p62 = scmp.eq.s32.totalorder %s61, 0
      %s64 = sadd.s32 %s63, 1
      %s65 = scalar_select %p62, %s63, %s64
      %p68 = pneg %p62
      %p69 = scmp.eq.s32.totalorder %s27, 1
      %p70 = por %p68, %p69
      %p71 = scmp.ne.s32.totalorder %s63, %s66
      %p72 = scmp.eq.s32.totalorder %s27, 0
      %p73 = por %p71, %p72
      %p74 = scmp.ne.s32.totalorder %s63, %s66
      %p75 = scmp.eq.s32.totalorder %s32, 1
      %p76 = por %p74, %p75
      %p77 = scmp.ne.s32.totalorder %s66, %s67
      %p78 = scmp.eq.s32.totalorder %s32, 0
      %p79 = por %p77, %p78
      %p80 = scmp.ne.s32.totalorder %s66, %s67
      %p81 = scmp.eq.s32.totalorder %s33, 1
      %p82 = por %p80, %p81
      %p84 = scmp.ne.s32.totalorder %s67, %s83
      %p85 = scmp.eq.s32.totalorder %s33, 0
      %p86 = por %p84, %p85
      %s88 = sadd.s32 %s87, 1
      %p91 = scmp.eq.s32.totalorder %s27, 1
      %p92 = scmp.ne.s32.totalorder %s87, %s89
      %p93 = scmp.eq.s32.totalorder %s27, 0
      %p94 = por %p92, %p93
      %p95 = scmp.ne.s32.totalorder %s87, %s89
      %p96 = scmp.eq.s32.totalorder %s32, 1
      %p97 = por %p95, %p96
      %p98 = scmp.ne.s32.totalorder %s89, %s90
      %p99 = scmp.eq.s32.totalorder %s32, 0
      %p100 = por %p98, %p99
      %p101 = scmp.ne.s32.totalorder %s89, %s90
      %p102 = scmp.eq.s32.totalorder %s33, 1
      %p103 = por %p101, %p102
      %p105 = scmp.ne.s32.totalorder %s90, %s104
      %p106 = scmp.eq.s32.totalorder %s33, 0
      %p107 = por %p105, %p106
      %s109 = sadd.s32 %s108, 1
      %p112 = scmp.eq.s32.totalorder %s27, 1
      %p113 = scmp.ne.s32.totalorder %s108, %s110
      %p114 = scmp.eq.s32.totalorder %s27, 0
      %p115 = por %p113, %p114
      %p116 = scmp.ne.s32.totalorder %s108, %s110
      %p117 = scmp.eq.s32.totalorder %s32, 1
      %p118 = por %p116, %p117
      %p119 = scmp.ne.s32.totalorder %s110, %s111
      %p120 = scmp.eq.s32.totalorder %s32, 0
      %p121 = por %p119, %p120
      %p122 = scmp.ne.s32.totalorder %s110, %s111
      %p123 = scmp.eq.s32.totalorder %s33, 1
      %p124 = por %p122, %p123
      %p126 = scmp.ne.s32.totalorder %s111, %s125
      %p127 = scmp.eq.s32.totalorder %s33, 0
      %p128 = por %p126, %p127
      %s130 = sadd.s32 %s129, 1
      %p133 = scmp.eq.s32.totalorder %s27, 1
      %p134 = scmp.ne.s32.totalorder %s129, %s131
      %p135 = scmp.eq.s32.totalorder %s27, 0
      %p136 = por %p134, %p135
      %p137 = scmp.ne.s32.totalorder %s129, %s131
      %p138 = scmp.eq.s32.totalorder %s32, 1
      %p139 = por %p137, %p138
      %p140 = scmp.ne.s32.totalorder %s131, %s132
      %p141 = scmp.eq.s32.totalorder %s32, 0
      %p142 = por %p140, %p141
      %p143 = scmp.ne.s32.totalorder %s131, %s132
      %p144 = scmp.eq.s32.totalorder %s33, 1
      %p145 = por %p143, %p144
      %p147 = scmp.ne.s32.totalorder %s132, %s146
      %p148 = scmp.eq.s32.totalorder %s33, 0
      %p149 = por %p147, %p148
      %s151 = sadd.s32 %s150, 1
      %p154 = scmp.eq.s32.totalorder %s27, 1
      %p155 = scmp.ne.s32.totalorder %s150, %s152
      %p156 = scmp.eq.s32.totalorder %s27, 0
      %p157 = por %p155, %p156
      %p158 = scmp.ne.s32.totalorder %s150, %s152
      %p159 = scmp.eq.s32.totalorder %s32, 1
      %p160 = por %p158, %p159
      %p161 = scmp.ne.s32.totalorder %s152, %s153
      %p162 = scmp.eq.s32.totalorder %s32, 0
      %p163 = por %p161, %p162
      %p164 = scmp.ne.s32.totalorder %s152, %s153
      %p165 = scmp.eq.s32.totalorder %s33, 1
      %p166 = por %p164, %p165
      %p168 = scmp.ne.s32.totalorder %s153, %s167
      %p169 = scmp.eq.s32.totalorder %s33, 0
      %p170 = por %p168, %p169
      %s172 = sadd.s32 %s171, 1
      %p175 = scmp.eq.s32.totalorder %s27, 1
      %p176 = scmp.ne.s32.totalorder %s171, %s173
      %p177 = scmp.eq.s32.totalorder %s27, 0
      %p178 = por %p176, %p177
      %p179 = scmp.ne.s32.totalorder %s171, %s173
      %p180 = scmp.eq.s32.totalorder %s32, 1
      %p181 = por %p179, %p180
      %p182 = scmp.ne.s32.totalorder %s173, %s174
      %p183 = scmp.eq.s32.totalorder %s32, 0
      %p184 = por %p182, %p183
      %p185 = scmp.ne.s32.totalorder %s173, %s174
      %p186 = scmp.eq.s32.totalorder %s33, 1
      %p187 = por %p185, %p186
      %p189 = scmp.ne.s32.totalorder %s174, %s188
      %p190 = scmp.eq.s32.totalorder %s33, 0
      %p191 = por %p189, %p190
      %s193 = sadd.s32 %s192, 1
      %p196 = scmp.eq.s32.totalorder %s27, 1
      %p197 = scmp.ne.s32.totalorder %s192, %s194
      %p198 = scmp.eq.s32.totalorder %s27, 0
      %p199 = por %p197, %p198
      %p200 = scmp.ne.s32.totalorder %s192, %s194
      %p201 = scmp.eq.s32.totalorder %s32, 1
      %p202 = por %p200, %p201
      %p203 = scmp.ne.s32.totalorder %s194, %s195
      %p204 = scmp.eq.s32.totalorder %s32, 0
      %p205 = por %p203, %p204
      %p206 = scmp.ne.s32.totalorder %s194, %s195
      %p207 = scmp.eq.s32.totalorder %s33, 1
      %p208 = por %p206, %p207
      %p210 = scmp.ne.s32.totalorder %s195, %s209
      %p211 = scmp.eq.s32.totalorder %s33, 0
      %p212 = por %p210, %p211
      %s214 = sadd.s32 %s213, 1
      %p217 = scmp.eq.s32.totalorder %s27, 1
      %p218 = scmp.ne.s32.totalorder %s213, %s215
      %p219 = scmp.eq.s32.totalorder %s27, 0
      %p220 = por %p218, %p219
      %p221 = scmp.ne.s32.totalorder %s213, %s215
      %p222 = scmp.eq.s32.totalorder %s32, 1
      %p223 = por %p221, %p222
      %p224 = scmp.ne.s32.totalorder %s215, %s216
      %p225 = scmp.eq.s32.totalorder %s32, 0
      %p226 = por %p224, %p225
      %p227 = scmp.ne.s32.totalorder %s215, %s216
      %p228 = scmp.eq.s32.totalorder %s33, 1
      %p229 = por %p227, %p228
      %p231 = scmp.ne.s32.totalorder %s216, %s230
      %p232 = scmp.eq.s32.totalorder %s33, 0
      %p233 = por %p231, %p232
      %s235 = sadd.s32 %s234, 1
      %p238 = scmp.eq.s32.totalorder %s27, 1
      %p239 = scmp.ne.s32.totalorder %s234, %s236
      %p240 = scmp.eq.s32.totalorder %s27, 0
      %p241 = por %p239, %p240
      %p242 = scmp.ne.s32.totalorder %s234, %s236
      %p243 = scmp.eq.s32.totalorder %s32, 1
      %p244 = por %p242, %p243
      %p245 = scmp.ne.s32.totalorder %s236, %s237
      %p246 = scmp.eq.s32.totalorder %s32, 0
      %p247 = por %p245, %p246
      %p248 = scmp.ne.s32.totalorder %s236, %s237
      %p249 = scmp.eq.s32.totalorder %s33, 1
      %p250 = por %p248, %p249
      %p252 = scmp.ne.s32.totalorder %s237, %s251
      %p253 = scmp.eq.s32.totalorder %s33, 0
      %p254 = por %p252, %p253
      %s256 = sadd.s32 %s255, 1
      %p259 = scmp.eq.s32.totalorder %s27, 1
      %p260 = scmp.ne.s32.totalorder %s255, %s257
      %p261 = scmp.eq.s32.totalorder %s27, 0
      %p262 = por %p260, %p261
      %p263 = scmp.ne.s32.totalorder %s255, %s257
      %p264 = scmp.eq.s32.totalorder %s32, 1
      %p265 = por %p263, %p264
      %p266 = scmp.ne.s32.totalorder %s257, %s258
      %p267 = scmp.eq.s32.totalorder %s32, 0
      %p268 = por %p266, %p267
      %p269 = scmp.ne.s32.totalorder %s257, %s258
      %p270 = scmp.eq.s32.totalorder %s33, 1
      %p271 = por %p269, %p270
      %p273 = scmp.ne.s32.totalorder %s258, %s272
      %p274 = scmp.eq.s32.totalorder %s33, 0
      %p275 = por %p273, %p274
      %s277 = sadd.s32 %s276, 1
      %p280 = scmp.eq.s32.totalorder %s27, 1
      %p281 = scmp.ne.s32.totalorder %s276, %s278
      %p282 = scmp.eq.s32.totalorder %s27, 0
      %p283 = por %p281, %p282
      %p284 = scmp.ne.s32.totalorder %s276, %s278
      %p285 = scmp.eq.s32.totalorder %s32, 1
      %p286 = por %p284, %p285
      %p287 = scmp.ne.s32.totalorder %s278, %s279
      %p288 = scmp.eq.s32.totalorder %s32, 0
      %p289 = por %p287, %p288
      %p290 = scmp.ne.s32.totalorder %s278, %s279
      %p291 = scmp.eq.s32.totalorder %s33, 1
      %p292 = por %p290, %p291
      %p294 = scmp.ne.s32.totalorder %s279, %s293
      %p295 = scmp.eq.s32.totalorder %s33, 0
      %p296 = por %p294, %p295
      %s298 = sadd.s32 %s297, 1
      %p301 = scmp.eq.s32.totalorder %s27, 1
      %p302 = scmp.ne.s32.totalorder %s297, %s299
      %p303 = scmp.eq.s32.totalorder %s27, 0
      %p304 = por %p302, %p303
      %p305 = scmp.ne.s32.totalorder %s297, %s299
      %p306 = scmp.eq.s32.totalorder %s32, 1
      %p307 = por %p305, %p306
      %p308 = scmp.ne.s32.totalorder %s299, %s300
      %p309 = scmp.eq.s32.totalorder %s32, 0
      %p310 = por %p308, %p309
      %p311 = scmp.ne.s32.totalorder %s299, %s300
      %p312 = scmp.eq.s32.totalorder %s33, 1
      %p313 = por %p311, %p312
      %p315 = scmp.ne.s32.totalorder %s300, %s314
      %p316 = scmp.eq.s32.totalorder %s33, 0
      %p317 = por %p315, %p316
      %s319 = sadd.s32 %s318, 1
      %p322 = scmp.eq.s32.totalorder %s27, 1
      %p323 = scmp.ne.s32.totalorder %s318, %s320
      %p324 = scmp.eq.s32.totalorder %s27, 0
      %p325 = por %p323, %p324
      %p326 = scmp.ne.s32.totalorder %s318, %s320
      %p327 = scmp.eq.s32.totalorder %s32, 1
      %p328 = por %p326, %p327
      %p329 = scmp.ne.s32.totalorder %s320, %s321
      %p330 = scmp.eq.s32.totalorder %s32, 0
      %p331 = por %p329, %p330
      %p332 = scmp.ne.s32.totalorder %s320, %s321
      %p333 = scmp.eq.s32.totalorder %s33, 1
      %p334 = por %p332, %p333
      %p336 = scmp.ne.s32.totalorder %s321, %s335
      %p337 = scmp.eq.s32.totalorder %s33, 0
      %p338 = por %p336, %p337
      %s340 = sadd.s32 %s339, 1
      %p343 = scmp.eq.s32.totalorder %s27, 1
      %p344 = scmp.ne.s32.totalorder %s339, %s341
      %p345 = scmp.eq.s32.totalorder %s27, 0
      %p346 = por %p344, %p345
      %p347 = scmp.ne.s32.totalorder %s339, %s341
      %p348 = scmp.eq.s32.totalorder %s32, 1
      %p349 = por %p347, %p348
      %p350 = scmp.ne.s32.totalorder %s341, %s342
      %p351 = scmp.eq.s32.totalorder %s32, 0
      %p352 = por %p350, %p351
      %p353 = scmp.ne.s32.totalorder %s341, %s342
      %p354 = scmp.eq.s32.totalorder %s33, 1
      %p355 = por %p353, %p354
      %p357 = scmp.ne.s32.totalorder %s342, %s356
      %p358 = scmp.eq.s32.totalorder %s33, 0
      %p359 = por %p357, %p358
      %s361 = sadd.s32 %s360, 1
      %p364 = scmp.eq.s32.totalorder %s27, 1
      %p365 = scmp.ne.s32.totalorder %s360, %s362
      %p366 = scmp.eq.s32.totalorder %s27, 0
      %p367 = por %p365, %p366
      %p368 = scmp.ne.s32.totalorder %s360, %s362
      %p369 = scmp.eq.s32.totalorder %s32, 1
      %p370 = por %p368, %p369
      %p371 = scmp.ne.s32.totalorder %s362, %s363
      %p372 = scmp.eq.s32.totalorder %s32, 0
      %p373 = por %p371, %p372
      %p374 = scmp.ne.s32.totalorder %s362, %s363
      %p375 = scmp.eq.s32.totalorder %s33, 1
      %p376 = por %p374, %p375
      %p378 = scmp.ne.s32.totalorder %s363, %s377
      %p379 = scmp.eq.s32.totalorder %s33, 0
      %p380 = por %p378, %p379
      %s382 = sadd.s32 %s381, 1
      %p385 = scmp.eq.s32.totalorder %s27, 1
      %p386 = scmp.ne.s32.totalorder %s381, %s383
      %p387 = scmp.eq.s32.totalorder %s27, 0
      %p388 = por %p386, %p387
      %p389 = scmp.ne.s32.totalorder %s381, %s383
      %p390 = scmp.eq.s32.totalorder %s32, 1
      %p391 = por %p389, %p390
      %p392 = scmp.ne.s32.totalorder %s383, %s384
      %p393 = scmp.eq.s32.totalorder %s32, 0
      %p394 = por %p392, %p393
      %p395 = scmp.ne.s32.totalorder %s383, %s384
      %p396 = scmp.eq.s32.totalorder %s33, 1
      %p397 = por %p395, %p396
      %p399 = scmp.ne.s32.totalorder %s384, %s398
      %p400 = scmp.eq.s32.totalorder %s33, 0
      %p401 = por %p399, %p400
      %s403 = sadd.s32 %s402, 1
      %p406 = scmp.eq.s32.totalorder %s27, 1
      %p407 = scmp.ne.s32.totalorder %s402, %s404
      %p408 = scmp.eq.s32.totalorder %s27, 0
      %p409 = por %p407, %p408
      %p410 = scmp.ne.s32.totalorder %s402, %s404
      %p411 = scmp.eq.s32.totalorder %s32, 1
      %p412 = por %p410, %p411
      %p413 = scmp.ne.s32.totalorder %s404, %s405
      %p414 = scmp.eq.s32.totalorder %s32, 0
      %p415 = por %p413, %p414
      %p416 = scmp.ne.s32.totalorder %s404, %s405
      %p417 = scmp.eq.s32.totalorder %s33, 1
      %p418 = por %p416, %p417
      %p420 = scmp.ne.s32.totalorder %s405, %s419
      %p421 = scmp.eq.s32.totalorder %s33, 0
      %p422 = por %p420, %p421
      %s423 = ssub.s32 %s27, %s34
      %p424 = scmp.eq.s32.totalorder %s423, 0
      %s426 = sadd.s32 %s425, 1
      %s427 = scalar_select %p424, %s425, %s426
      %p430 = pneg %p424
      %p431 = scmp.eq.s32.totalorder %s27, 1
      %p432 = por %p430, %p431
      %p433 = scmp.ne.s32.totalorder %s425, %s428
      %p434 = scmp.eq.s32.totalorder %s27, 0
      %p435 = por %p433, %p434
      %p436 = scmp.ne.s32.totalorder %s425, %s428
      %p437 = scmp.eq.s32.totalorder %s32, 1
      %p438 = por %p436, %p437
      %p439 = scmp.ne.s32.totalorder %s428, %s429
      %p440 = scmp.eq.s32.totalorder %s32, 0
      %p441 = por %p439, %p440
      %p442 = scmp.ne.s32.totalorder %s428, %s429
      %p443 = scmp.eq.s32.totalorder %s33, 1
      %p444 = por %p442, %p443
      %p446 = scmp.ne.s32.totalorder %s429, %s445
      %p447 = scmp.eq.s32.totalorder %s33, 0
      %p448 = por %p446, %p447
      %p449 = scmp.le.s32.totalorder 1, %s27
      %p450 = scmp.lt.s32.totalorder %s27, 3
      %p451 = pnand %p449, %p450
      %p452 = pneg %p451
      // Predicated region
      $region9: #{roberta_classifier_forward.1} parent=5 // pred_check
        _
      $region10: #{roberta_classifier_forward.1} parent=5 // pred_check_branch
        %454 = sbr.rel (%p451) target = $region12
      $region11: #{roberta_classifier_forward.1} parent=5 // pred_region
        %s455 = ssub.s32 %s27, 1
        // Predicated region
        $region13: #{roberta_classifier_forward.1} parent=11 // pred_check
          %p456 = pneg %p100
        $region14: #{roberta_classifier_forward.1} parent=11 // pred_check_branch
          %458 = sbr.rel (%p456) target = $region16
        $region15: #{roberta_classifier_forward.1} parent=11 // pred_region
          _
        $region16: #{roberta_classifier_forward.1} parent=11 // pred_fallthru
          _
        // Predicated region
        $region17: #{roberta_classifier_forward.1} parent=11 // pred_check
          %p459 = pneg %p121
        $region18: #{roberta_classifier_forward.1} parent=11 // pred_check_branch
          %461 = sbr.rel (%p459) target = $region20
        $region19: #{roberta_classifier_forward.1} parent=11 // pred_region
          _
        $region20: #{roberta_classifier_forward.1} parent=11 // pred_fallthru
          _
        // Predicated region
        $region21: #{roberta_classifier_forward.1} parent=11 // pred_check
          %p462 = pneg %p142
        $region22: #{roberta_classifier_forward.1} parent=11 // pred_check_branch
          %464 = sbr.rel (%p462) target = $region24
        $region23: #{roberta_classifier_forward.1} parent=11 // pred_region
          _
        $region24: #{roberta_classifier_forward.1} parent=11 // pred_fallthru
          _
        // Predicated region
        $region25: #{roberta_classifier_forward.1} parent=11 // pred_check
          %p465 = pneg %p163
        $region26: #{roberta_classifier_forward.1} parent=11 // pred_check_branch
          %467 = sbr.rel (%p465) target = $region28
        $region27: #{roberta_classifier_forward.1} parent=11 // pred_region
          _
        $region28: #{roberta_classifier_forward.1} parent=11 // pred_fallthru
          _
        // Predicated region
        $region29: #{roberta_classifier_forward.1} parent=11 // pred_check
          %p468 = pneg %p184
        $region30: #{roberta_classifier_forward.1} parent=11 // pred_check_branch
          %470 = sbr.rel (%p468) target = $region32
        $region31: #{roberta_classifier_forward.1} parent=11 // pred_region
          _
        $region32: #{roberta_classifier_forward.1} parent=11 // pred_fallthru
          _
        // Predicated region
        $region33: #{roberta_classifier_forward.1} parent=11 // pred_check
          %p471 = pneg %p205
        $region34: #{roberta_classifier_forward.1} parent=11 // pred_check_branch
          %473 = sbr.rel (%p471) target = $region36
        $region35: #{roberta_classifier_forward.1} parent=11 // pred_region
          _
        $region36: #{roberta_classifier_forward.1} parent=11 // pred_fallthru
          _
        // Predicated region
        $region37: #{roberta_classifier_forward.1} parent=11 // pred_check
          %p474 = pneg %p226
        $region38: #{roberta_classifier_forward.1} parent=11 // pred_check_branch
          %476 = sbr.rel (%p474) target = $region40
        $region39: #{roberta_classifier_forward.1} parent=11 // pred_region
          _
        $region40: #{roberta_classifier_forward.1} parent=11 // pred_fallthru
          _
        // Predicated region
        $region41: #{roberta_classifier_forward.1} parent=11 // pred_check
          %p477 = pneg %p247
        $region42: #{roberta_classifier_forward.1} parent=11 // pred_check_branch
          %479 = sbr.rel (%p477) target = $region44
        $region43: #{roberta_classifier_forward.1} parent=11 // pred_region
          _
        $region44: #{roberta_classifier_forward.1} parent=11 // pred_fallthru
          _
        // Predicated region
        $region45: #{roberta_classifier_forward.1} parent=11 // pred_check
          %p480 = pneg %p268
        $region46: #{roberta_classifier_forward.1} parent=11 // pred_check_branch
          %482 = sbr.rel (%p480) target = $region48
        $region47: #{roberta_classifier_forward.1} parent=11 // pred_region
          _
        $region48: #{roberta_classifier_forward.1} parent=11 // pred_fallthru
          _
        // Predicated region
        $region49: #{roberta_classifier_forward.1} parent=11 // pred_check
          %p483 = pneg %p289
        $region50: #{roberta_classifier_forward.1} parent=11 // pred_check_branch
          %485 = sbr.rel (%p483) target = $region52
        $region51: #{roberta_classifier_forward.1} parent=11 // pred_region
          _
        $region52: #{roberta_classifier_forward.1} parent=11 // pred_fallthru
          _
        // Predicated region
        $region53: #{roberta_classifier_forward.1} parent=11 // pred_check
          %p486 = pneg %p310
        $region54: #{roberta_classifier_forward.1} parent=11 // pred_check_branch
          %488 = sbr.rel (%p486) target = $region56
        $region55: #{roberta_classifier_forward.1} parent=11 // pred_region
          _
        $region56: #{roberta_classifier_forward.1} parent=11 // pred_fallthru
          _
        // Predicated region
        $region57: #{roberta_classifier_forward.1} parent=11 // pred_check
          %p489 = pneg %p331
        $region58: #{roberta_classifier_forward.1} parent=11 // pred_check_branch
          %491 = sbr.rel (%p489) target = $region60
        $region59: #{roberta_classifier_forward.1} parent=11 // pred_region
          _
        $region60: #{roberta_classifier_forward.1} parent=11 // pred_fallthru
          _
        // Predicated region
        $region61: #{roberta_classifier_forward.1} parent=11 // pred_check
          %p492 = pneg %p352
        $region62: #{roberta_classifier_forward.1} parent=11 // pred_check_branch
          %494 = sbr.rel (%p492) target = $region64
        $region63: #{roberta_classifier_forward.1} parent=11 // pred_region
          _
        $region64: #{roberta_classifier_forward.1} parent=11 // pred_fallthru
          _
        // Predicated region
        $region65: #{roberta_classifier_forward.1} parent=11 // pred_check
          %p495 = pneg %p373
        $region66: #{roberta_classifier_forward.1} parent=11 // pred_check_branch
          %497 = sbr.rel (%p495) target = $region68
        $region67: #{roberta_classifier_forward.1} parent=11 // pred_region
          _
        $region68: #{roberta_classifier_forward.1} parent=11 // pred_fallthru
          _
        // Predicated region
        $region69: #{roberta_classifier_forward.1} parent=11 // pred_check
          %p498 = pneg %p394
        $region70: #{roberta_classifier_forward.1} parent=11 // pred_check_branch
          %500 = sbr.rel (%p498) target = $region72
        $region71: #{roberta_classifier_forward.1} parent=11 // pred_region
          _
        $region72: #{roberta_classifier_forward.1} parent=11 // pred_fallthru
          _
        // Predicated region
        $region73: #{roberta_classifier_forward.1} parent=11 // pred_check
          %p501 = pneg %p415
        $region74: #{roberta_classifier_forward.1} parent=11 // pred_check_branch
          %503 = sbr.rel (%p501) target = $region76
        $region75: #{roberta_classifier_forward.1} parent=11 // pred_region
          _
        $region76: #{roberta_classifier_forward.1} parent=11 // pred_fallthru
          _
      $region12: #{roberta_classifier_forward.1} parent=5 // pred_fallthru
        _
      %p504 = scmp.lt.s32.totalorder %s27, 2
      // Predicated region
      $region77: #{roberta_classifier_forward.1} parent=5 // pred_check
        %p505 = pneg %p504
      $region78: #{roberta_classifier_forward.1} parent=5 // pred_check_branch
        %507 = sbr.rel (%p505) target = $region80
      $region79: #{roberta_classifier_forward.1} parent=5 // pred_region
        // Predicated region
        $region81: #{roberta_classifier_forward.1} parent=79 // pred_check
          %p508 = pneg %p47
        $region82: #{roberta_classifier_forward.1} parent=79 // pred_check_branch
          %510 = sbr.rel (%p508) target = $region84
        $region83: #{roberta_classifier_forward.1} parent=79 // pred_region
          %p511 = scmp.lt.s32.totalorder %s27, 1
          %s512 = scalar_select %p511, %s27, 1
          %s513 = smul.addr %s512, 8
          %s514 = scalar_lea.vmem %s0, %s513
        $region84: #{roberta_classifier_forward.1} parent=79 // pred_fallthru
          _
        // Predicated region
        $region85: #{roberta_classifier_forward.1} parent=79 // pred_check
          %p515 = pneg %p73
        $region86: #{roberta_classifier_forward.1} parent=79 // pred_check_branch
          %517 = sbr.rel (%p515) target = $region88
        $region87: #{roberta_classifier_forward.1} parent=79 // pred_region
          %p518 = scmp.lt.s32.totalorder %s27, 1
          %s519 = scalar_select %p518, %s27, 1
          %s520 = scalar_lea.vmem %s1, %s519
        $region88: #{roberta_classifier_forward.1} parent=79 // pred_fallthru
          _
      $region80: #{roberta_classifier_forward.1} parent=5 // pred_fallthru
        _
      %p521 = scmp.le.s32.totalorder 1, %s27
      %p522 = scmp.lt.s32.totalorder %s27, 3
      %p523 = pnand %p521, %p522
      %p524 = pneg %p523
      // Predicated region
      $region89: #{roberta_classifier_forward.1} parent=5 // pred_check
        _
      $region90: #{roberta_classifier_forward.1} parent=5 // pred_check_branch
        %526 = sbr.rel (%p523) target = $region92
      $region91: #{roberta_classifier_forward.1} parent=5 // pred_region
        %s527 = ssub.s32 %s27, 1
        %p528 = scmp.lt.s32.totalorder %s32, 1
        %s529 = scalar_select %p528, %s32, 1
        %s530 = smul.addr %s529, 8
        %s531 = scalar_lea.vmem %s0, %s530
        %p532 = pneg %p53
        %p533 = pneg %p50
        %p534 = scmp.lt.s32.totalorder %s32, 1
        %s535 = scalar_select %p534, %s32, 1
        %s536 = scalar_lea.vmem %s1, %s535
        %p537 = pneg %p79
        %p538 = pneg %p76
        %p539 = pneg %p100
        %p540 = pneg %p97
        %p541 = pneg %p121
        %p542 = pneg %p118
        %p543 = pneg %p142
        %p544 = pneg %p139
        %p545 = pneg %p163
        %p546 = pneg %p160
        %p547 = pneg %p184
        %p548 = pneg %p181
        %p549 = pneg %p205
        %p550 = pneg %p202
        %p551 = pneg %p226
        %p552 = pneg %p223
        %p553 = pneg %p247
        %p554 = pneg %p244
        %p555 = pneg %p268
        %p556 = pneg %p265
        %p557 = pneg %p289
        %p558 = pneg %p286
        %p559 = pneg %p310
        %p560 = pneg %p307
        %p561 = pneg %p331
        %p562 = pneg %p328
        %p563 = pneg %p352
        %p564 = pneg %p349
        %p565 = pneg %p373
        %p566 = pneg %p370
        %p567 = pneg %p394
        %p568 = pneg %p391
        %p569 = pneg %p415
        %p570 = pneg %p412
        %p571 = pneg %p441
        %p572 = pneg %p438
        %s573 = sand.u32 %s428, 1
        %s574 = scalar_lea.sflag [#allocation3], %s573
        %s575 = sand.u32 %s428, 1
        %s576 = scalar_lea.vmem [#allocation2], %s575
        %p577 = scmp.lt.s32.totalorder %s32, 1
        %s578 = scalar_select %p577, %s32, 1
        %s579 = smul.addr %s578, 8
        %s580 = scalar_lea.vmem %s0, %s579
        %p581 = scmp.lt.s32.totalorder %s32, 1
        %s582 = scalar_select %p581, %s32, 1
        %s583 = scalar_lea.vmem %s1, %s582
        %v584 = vld [vmem:[%s580] sm:$0xff]
        %v585 = vld [vmem:[%s2] sm:$0x1]
        %v586 = vld [vmem:[%s3] sm:$0x1]
        %vm587 = vcmask 261120
        %v588 = vsel %vm587, %v584, 0.0
        %589 = vadd.xlane.f32.xlu0 %v588
        %v590 = vpop.xlane.xlu0 %589
        %v591 = vrcp.pop 32.0
        %v592 = vmul.f32 %v590, %v591
        %v593 = vsub.f32 %v584, %v592
        %v594 = vmul.f32 %v593, %v593
        %v595 = vsel %vm587, %v594, 0.0
        %596 = vadd.xlane.f32.xlu0 %v595
        %v597 = vpop.xlane.xlu0 %596
        %v598 = vmul.f32 %v597, %v591
        %v599 = vadd.f32 %v598, 1e-05
        %v600 = vrsqrt.pop %v599
        %v601 = vmul.f32 %v593, %v600
        %v603 = vlaneseq
        %v604 = vshrl.u32 %v603, 7
        %v605 = vsub.s32 0, %v604
        %v606 = vrot.slane %v585, %v605
        %v608 = vmul.f32 %v601, %v606
        %v610 = vlaneseq
        %v611 = vshrl.u32 %v610, 7
        %v612 = vsub.s32 0, %v611
        %v613 = vrot.slane %v586, %v612
        %v615 = vadd.f32 %v608, %v613
        %v616 = vld [vmem:[%s583] sm:$0x1]
        %v617 = vsub.f32 1.0, %v616
        %v618 = vmul.f32 %v617, -1e+09
        %v619 = vld [vmem:[%s4] sm:$0xff]
        %v620 = vld [vmem:[%s4 + $0x8] sm:$0xff]
        %v621 = vld [vmem:[%s4 + $0x10] sm:$0xff]
        %v622 = vld [vmem:[%s4 + $0x18] sm:$0xff]
        %v623 = vld [vmem:[%s5] sm:$0x1]
        %v625 = vlaneseq
        %v626 = vshrl.u32 %v625, 7
        %v627 = vsub.s32 0, %v626
        %v628 = vrot.slane %v623, %v627
        %v631 = vsel %vm587, %v615, 0
        %633 = vmatprep.subr.mxu0 0.0
        %634 = vmatpush1.msra.mxu0 %v619
        %635 = vmatprep.subr.mxu0 0.0
        %636 = vmatpush1.msra.mxu0 %v620
        %637 = vmatprep.subr.mxu0 0.0
        %638 = vmatpush1.msra.mxu0 %v621
        %639 = vmatprep.subr.mxu0 0.0
        %640 = vmatpush1.msra.mxu0 %v622
        %641 = vmatprep.subr.mxu0 0.0
        %642 = vmatpush1.msra.mxu0 0.0
        %643 = vmatprep.subr.mxu0 0.0
        %644 = vmatpush1.msra.mxu0 0.0
        %645 = vmatprep.subr.mxu0 0.0
        %646 = vmatpush1.msra.mxu0 0.0
        %647 = vmatprep.subr.mxu0 0.0
        %648 = vmatpush1.msra.mxu0 0.0
        %649 = vmatprep.subr.mxu0 0.0
        %650 = vmatpush1.msra.mxu0 0.0
        %651 = vmatprep.subr.mxu0 0.0
        %652 = vmatpush1.msra.mxu0 0.0
        %653 = vmatprep.subr.mxu0 0.0
        %654 = vmatpush1.msra.mxu0 0.0
        %655 = vmatprep.subr.mxu0 0.0
        %656 = vmatpush1.msra.mxu0 0.0
        %657 = vmatprep.subr.mxu0 0.0
        %658 = vmatpush1.msra.mxu0 0.0
        %659 = vmatprep.subr.mxu0 0.0
        %660 = vmatpush1.msra.mxu0 0.0
        %661 = vmatprep.subr.mxu0 0.0
        %662 = vmatpush1.msra.mxu0 0.0
        %663 = vmatprep.subr.mxu0 0.0
        %664 = vmatpush1.msra.mxu0 0.0
        %665 = vmatprep.subr.mxu0 0.0
        %666 = vmatpush1.msra.mxu0 0.0
        %667 = vmatprep.subr.mxu0 0.0
        %668 = vmatpush1.msra.mxu0 0.0
        %669 = vmatprep.subr.mxu0 0.0
        %670 = vmatpush1.msra.mxu0 0.0
        %671 = vmatprep.subr.mxu0 0.0
        %672 = vmatpush1.msra.mxu0 0.0
        %673 = vmatprep.subr.mxu0 0.0
        %674 = vmatpush1.msra.mxu0 0.0
        %675 = vmatprep.subr.mxu0 0.0
        %676 = vmatpush1.msra.mxu0 0.0
        %677 = vmatprep.subr.mxu0 0.0
        %678 = vmatpush1.msra.mxu0 0.0
        %679 = vmatprep.subr.mxu0 0.0
        %680 = vmatpush1.msra.mxu0 0.0
        %681 = vmatprep.subr.mxu0 0.0
        %682 = vmatpush1.msra.mxu0 0.0
        %683 = vmatprep.subr.mxu0 0.0
        %684 = vmatpush1.msra.mxu0 0.0
        %685 = vmatprep.subr.mxu0 0.0
        %686 = vmatpush1.msra.mxu0 0.0
        %687 = vmatprep.subr.mxu0 0.0
        %688 = vmatpush1.msra.mxu0 0.0
        %689 = vmatprep.subr.mxu0 0.0
        %690 = vmatpush1.msra.mxu0 0.0
        %691 = vmatprep.subr.mxu0 0.0
        %692 = vmatpush1.msra.mxu0 0.0
        %693 = vmatprep.subr.mxu0 0.0
        %694 = vmatpush1.msra.mxu0 0.0
        %695 = vmatprep.subr.mxu0 0.0
        %696 = vmatpush1.msra.mxu0 0.0
        %697 = vmatprep.mubr.f32.mxu0 0.0
        %698 = vmatmul.mubr.f32.gmra.mrb[0].mxu0 %v631
        %v699 = vpop.f32.mrb[0].mxu0
        %v700 = vadd.f32 %v628, %v699
        %v701 = vpop.f32.mrb[0].mxu0
        %702 = vdwg.mxu0
        %704 = vrot.lane.b32.xlu0 %v700, 96
        %v705 = vpop.permute.xlu0 %704
        %vm706 = vcmask 64512
        %v707 = vsel %vm706, %v700, 0
        %v709 = vsel %vm706, %v705, 0
        %711 = vmatprep.subr.mxu0 0.0
        %712 = vmatpush1.xpose.msra.mxu0 %v709
        %713 = vmatprep.subr.mxu0 0.0
        %714 = vmatpush1.xpose.msra.mxu0 0.0
        %715 = vmatprep.subr.mxu0 0.0
        %716 = vmatpush1.xpose.msra.mxu0 0.0
        %717 = vmatprep.subr.mxu0 0.0
        %718 = vmatpush1.xpose.msra.mxu0 0.0
        %719 = vmatprep.subr.mxu0 0.0
        %720 = vmatpush1.xpose.msra.mxu0 0.0
        %721 = vmatprep.subr.mxu0 0.0
        %722 = vmatpush1.xpose.msra.mxu0 0.0
        %723 = vmatprep.subr.mxu0 0.0
        %724 = vmatpush1.xpose.msra.mxu0 0.0
        %725 = vmatprep.subr.mxu0 0.0
        %726 = vmatpush1.xpose.msra.mxu0 0.0
        %727 = vmatprep.subr.mxu0 0.0
        %728 = vmatpush1.xpose.msra.mxu0 0.0
        %729 = vmatprep.subr.mxu0 0.0
        %730 = vmatpush1.xpose.msra.mxu0 0.0
        %731 = vmatprep.subr.mxu0 0.0
        %732 = vmatpush1.xpose.msra.mxu0 0.0
        %733 = vmatprep.subr.mxu0 0.0
        %734 = vmatpush1.xpose.msra.mxu0 0.0
        %735 = vmatprep.subr.mxu0 0.0
        %736 = vmatpush1.xpose.msra.mxu0 0.0
        %737 = vmatprep.subr.mxu0 0.0
        %738 = vmatpush1.xpose.msra.mxu0 0.0
        %739 = vmatprep.subr.mxu0 0.0
        %740 = vmatpush1.xpose.msra.mxu0 0.0
        %741 = vmatprep.subr.mxu0 0.0
        %742 = vmatpush1.xpose.msra.mxu0 0.0
        %743 = vmatprep.subr.mxu0 0.0
        %744 = vmatpush1.xpose.msra.mxu0 0.0
        %745 = vmatprep.subr.mxu0 0.0
        %746 = vmatpush1.xpose.msra.mxu0 0.0
        %747 = vmatprep.subr.mxu0 0.0
        %748 = vmatpush1.xpose.msra.mxu0 0.0
        %749 = vmatprep.subr.mxu0 0.0
        %750 = vmatpush1.xpose.msra.mxu0 0.0
        %751 = vmatprep.subr.mxu0 0.0
        %752 = vmatpush1.xpose.msra.mxu0 0.0
        %753 = vmatprep.subr.mxu0 0.0
        %754 = vmatpush1.xpose.msra.mxu0 0.0
        %755 = vmatprep.subr.mxu0 0.0
        %756 = vmatpush1.xpose.msra.mxu0 0.0
        %757 = vmatprep.subr.mxu0 0.0
        %758 = vmatpush1.xpose.msra.mxu0 0.0
        %759 = vmatprep.subr.mxu0 0.0
        %760 = vmatpush1.xpose.msra.mxu0 0.0
        %761 = vmatprep.subr.mxu0 0.0
        %762 = vmatpush1.xpose.msra.mxu0 0.0
        %763 = vmatprep.subr.mxu0 0.0
        %764 = vmatpush1.xpose.msra.mxu0 0.0
        %765 = vmatprep.subr.mxu0 0.0
        %766 = vmatpush1.xpose.msra.mxu0 0.0
        %767 = vmatprep.subr.mxu0 0.0
        %768 = vmatpush1.xpose.msra.mxu0 0.0
        %769 = vmatprep.subr.mxu0 0.0
        %770 = vmatpush1.xpose.msra.mxu0 0.0
        %771 = vmatprep.subr.mxu0 0.0
        %772 = vmatpush1.xpose.msra.mxu0 0.0
        %773 = vmatprep.subr.mxu0 0.0
        %774 = vmatpush1.xpose.msra.mxu0 0.0
        %775 = vmatprep.mubr.f32.mxu0 0.0
        %776 = vmatmul.mubr.f32.gmra.mrb[0].mxu0 %v707
        %v777 = vpop.f32.mrb[0].mxu0
        %v778 = vadd.f32 0.0, %v777
        %v779 = vpop.f32.mrb[0].mxu0
        %780 = vdwg.mxu0
        %v781 = vmul.f32 %v778, 0.35355338
        %v783 = vlaneseq
        %v784 = vshrl.u32 %v783, 7
        %v785 = vsub.s32 0, %v784
        %v786 = vrot.slane %v618, %v785
        %v788 = vadd.f32 %v781, %v786
        %v789 = vsel %vm706, %v788, -inf
        %790 = vmax.xlane.f32.xlu0 %v789
        %v791 = vpop.xlane.xlu0 %790
        %v792 = vsub.f32 %v788, %v791
        %v793 = vmul.f32 %v792, 1.442695
        %v794 = vpow.pop %v793
        %v795 = vsel %vm706, %v794, 0.0
        %796 = vadd.xlane.f32.xlu0 %v795
        %v797 = vpop.xlane.xlu0 %796
        %v798 = vrcp.pop %v797
        %v799 = vmul.f32 %v794, %v798
        %800 = vrot.lane.b32.xlu0 %v700, 64
        %v801 = vpop.permute.xlu0 %800
        %v804 = vsel %vm706, %v799, 0
        %806 = vmatprep.subr.mxu0 0.0
        %807 = vmatpush1.msra.mxu0 %v801
        %808 = vmatprep.subr.mxu0 0.0
        %809 = vmatpush1.msra.mxu0 0.0
        %810 = vmatprep.subr.mxu0 0.0
        %811 = vmatpush1.msra.mxu0 0.0
        %812 = vmatprep.subr.mxu0 0.0
        %813 = vmatpush1.msra.mxu0 0.0
        %814 = vmatprep.subr.mxu0 0.0
        %815 = vmatpush1.msra.mxu0 0.0
        %816 = vmatprep.subr.mxu0 0.0
        %817 = vmatpush1.msra.mxu0 0.0
        %818 = vmatprep.subr.mxu0 0.0
        %819 = vmatpush1.msra.mxu0 0.0
        %820 = vmatprep.subr.mxu0 0.0
        %821 = vmatpush1.msra.mxu0 0.0
        %822 = vmatprep.subr.mxu0 0.0
        %823 = vmatpush1.msra.mxu0 0.0
        %824 = vmatprep.subr.mxu0 0.0
        %825 = vmatpush1.msra.mxu0 0.0
        %826 = vmatprep.subr.mxu0 0.0
        %827 = vmatpush1.msra.mxu0 0.0
        %828 = vmatprep.subr.mxu0 0.0
        %829 = vmatpush1.msra.mxu0 0.0
        %830 = vmatprep.subr.mxu0 0.0
        %831 = vmatpush1.msra.mxu0 0.0
        %832 = vmatprep.subr.mxu0 0.0
        %833 = vmatpush1.msra.mxu0 0.0
        %834 = vmatprep.subr.mxu0 0.0
        %835 = vmatpush1.msra.mxu0 0.0
        %836 = vmatprep.subr.mxu0 0.0
        %837 = vmatpush1.msra.mxu0 0.0
        %838 = vmatprep.subr.mxu0 0.0
        %839 = vmatpush1.msra.mxu0 0.0
        %840 = vmatprep.subr.mxu0 0.0
        %841 = vmatpush1.msra.mxu0 0.0
        %842 = vmatprep.subr.mxu0 0.0
        %843 = vmatpush1.msra.mxu0 0.0
        %844 = vmatprep.subr.mxu0 0.0
        %845 = vmatpush1.msra.mxu0 0.0
        %846 = vmatprep.subr.mxu0 0.0
        %847 = vmatpush1.msra.mxu0 0.0
        %848 = vmatprep.subr.mxu0 0.0
        %849 = vmatpush1.msra.mxu0 0.0
        %850 = vmatprep.subr.mxu0 0.0
        %851 = vmatpush1.msra.mxu0 0.0
        %852 = vmatprep.subr.mxu0 0.0
        %853 = vmatpush1.msra.mxu0 0.0
        %854 = vmatprep.subr.mxu0 0.0
        %855 = vmatpush1.msra.mxu0 0.0
        %856 = vmatprep.subr.mxu0 0.0
        %857 = vmatpush1.msra.mxu0 0.0
        %858 = vmatprep.subr.mxu0 0.0
        %859 = vmatpush1.msra.mxu0 0.0
        %860 = vmatprep.subr.mxu0 0.0
        %861 = vmatpush1.msra.mxu0 0.0
        %862 = vmatprep.subr.mxu0 0.0
        %863 = vmatpush1.msra.mxu0 0.0
        %864 = vmatprep.subr.mxu0 0.0
        %865 = vmatpush1.msra.mxu0 0.0
        %866 = vmatprep.subr.mxu0 0.0
        %867 = vmatpush1.msra.mxu0 0.0
        %868 = vmatprep.subr.mxu0 0.0
        %869 = vmatpush1.msra.mxu0 0.0
        %870 = vmatprep.mubr.f32.mxu0 0.0
        %871 = vmatmul.mubr.f32.gmra.mrb[0].mxu0 %v804
        %v872 = vpop.f32.mrb[0].mxu0
        %v873 = vadd.f32 0.0, %v872
        %v874 = vpop.f32.mrb[0].mxu0
        %875 = vdwg.mxu0
        %876 = vrot.lane.b32.xlu0 %v700, 120
        %v877 = vpop.permute.xlu0 %876
        %878 = vrot.lane.b32.xlu0 %v700, 88
        %v879 = vpop.permute.xlu0 %878
        %v880 = vsel %vm706, %v877, 0
        %v882 = vsel %vm706, %v879, 0
        %884 = vmatprep.subr.mxu0 0.0
        %885 = vmatpush1.xpose.msra.mxu0 %v882
        %886 = vmatprep.subr.mxu0 0.0
        %887 = vmatpush1.xpose.msra.mxu0 0.0
        %888 = vmatprep.subr.mxu0 0.0
        %889 = vmatpush1.xpose.msra.mxu0 0.0
        %890 = vmatprep.subr.mxu0 0.0
        %891 = vmatpush1.xpose.msra.mxu0 0.0
        %892 = vmatprep.subr.mxu0 0.0
        %893 = vmatpush1.xpose.msra.mxu0 0.0
        %894 = vmatprep.subr.mxu0 0.0
        %895 = vmatpush1.xpose.msra.mxu0 0.0
        %896 = vmatprep.subr.mxu0 0.0
        %897 = vmatpush1.xpose.msra.mxu0 0.0
        %898 = vmatprep.subr.mxu0 0.0
        %899 = vmatpush1.xpose.msra.mxu0 0.0
        %900 = vmatprep.subr.mxu0 0.0
        %901 = vmatpush1.xpose.msra.mxu0 0.0
        %902 = vmatprep.subr.mxu0 0.0
        %903 = vmatpush1.xpose.msra.mxu0 0.0
        %904 = vmatprep.subr.mxu0 0.0
        %905 = vmatpush1.xpose.msra.mxu0 0.0
        %906 = vmatprep.subr.mxu0 0.0
        %907 = vmatpush1.xpose.msra.mxu0 0.0
        %908 = vmatprep.subr.mxu0 0.0
        %909 = vmatpush1.xpose.msra.mxu0 0.0
        %910 = vmatprep.subr.mxu0 0.0
        %911 = vmatpush1.xpose.msra.mxu0 0.0
        %912 = vmatprep.subr.mxu0 0.0
        %913 = vmatpush1.xpose.msra.mxu0 0.0
        %914 = vmatprep.subr.mxu0 0.0
        %915 = vmatpush1.xpose.msra.mxu0 0.0
        %916 = vmatprep.subr.mxu0 0.0
        %917 = vmatpush1.xpose.msra.mxu0 0.0
        %918 = vmatprep.subr.mxu0 0.0
        %919 = vmatpush1.xpose.msra.mxu0 0.0
        %920 = vmatprep.subr.mxu0 0.0
        %921 = vmatpush1.xpose.msra.mxu0 0.0
        %922 = vmatprep.subr.mxu0 0.0
        %923 = vmatpush1.xpose.msra.mxu0 0.0
        %924 = vmatprep.subr.mxu0 0.0
        %925 = vmatpush1.xpose.msra.mxu0 0.0
        %926 = vmatprep.subr.mxu0 0.0
        %927 = vmatpush1.xpose.msra.mxu0 0.0
        %928 = vmatprep.subr.mxu0 0.0
        %929 = vmatpush1.xpose.msra.mxu0 0.0
        %930 = vmatprep.subr.mxu0 0.0
        %931 = vmatpush1.xpose.msra.mxu0 0.0
        %932 = vmatprep.subr.mxu0 0.0
        %933 = vmatpush1.xpose.msra.mxu0 0.0
        %934 = vmatprep.subr.mxu0 0.0
        %935 = vmatpush1.xpose.msra.mxu0 0.0
        %936 = vmatprep.subr.mxu0 0.0
        %937 = vmatpush1.xpose.msra.mxu0 0.0
        %938 = vmatprep.subr.mxu0 0.0
        %939 = vmatpush1.xpose.msra.mxu0 0.0
        %940 = vmatprep.subr.mxu0 0.0
        %941 = vmatpush1.xpose.msra.mxu0 0.0
        %942 = vmatprep.subr.mxu0 0.0
        %943 = vmatpush1.xpose.msra.mxu0 0.0
        %944 = vmatprep.subr.mxu0 0.0
        %945 = vmatpush1.xpose.msra.mxu0 0.0
        %946 = vmatprep.subr.mxu0 0.0
        %947 = vmatpush1.xpose.msra.mxu0 0.0
        %948 = vmatprep.mubr.f32.mxu0 0.0
        %949 = vmatmul.mubr.f32.gmra.mrb[0].mxu0 %v880
        %v950 = vpop.f32.mrb[0].mxu0
        %v951 = vadd.f32 0.0, %v950
        %v952 = vpop.f32.mrb[0].mxu0
        %953 = vdwg.mxu0
        %v954 = vmul.f32 %v951, 0.35355338
        %v955 = vadd.f32 %v954, %v786
        %v956 = vsel %vm706, %v955, -inf
        %957 = vmax.xlane.f32.xlu0 %v956
        %v958 = vpop.xlane.xlu0 %957
        %v959 = vsub.f32 %v955, %v958
        %v960 = vmul.f32 %v959, 1.442695
        %v961 = vpow.pop %v960
        %v962 = vsel %vm706, %v961, 0.0
        %963 = vadd.xlane.f32.xlu0 %v962
        %v964 = vpop.xlane.xlu0 %963
        %v965 = vrcp.pop %v964
        %v966 = vmul.f32 %v961, %v965
        %967 = vrot.lane.b32.xlu0 %v700, 56
        %v968 = vpop.permute.xlu0 %967
        %v971 = vsel %vm706, %v966, 0
        %973 = vmatprep.subr.mxu0 0.0
        %974 = vmatpush1.msra.mxu0 %v968
        %975 = vmatprep.subr.mxu0 0.0
        %976 = vmatpush1.msra.mxu0 0.0
        %977 = vmatprep.subr.mxu0 0.0
        %978 = vmatpush1.msra.mxu0 0.0
        %979 = vmatprep.subr.mxu0 0.0
        %980 = vmatpush1.msra.mxu0 0.0
        %981 = vmatprep.subr.mxu0 0.0
        %982 = vmatpush1.msra.mxu0 0.0
        %983 = vmatprep.subr.mxu0 0.0
        %984 = vmatpush1.msra.mxu0 0.0
        %985 = vmatprep.subr.mxu0 0.0
        %986 = vmatpush1.msra.mxu0 0.0
        %987 = vmatprep.subr.mxu0 0.0
        %988 = vmatpush1.msra.mxu0 0.0
        %989 = vmatprep.subr.mxu0 0.0
        %990 = vmatpush1.msra.mxu0 0.0
        %991 = vmatprep.subr.mxu0 0.0
        %992 = vmatpush1.msra.mxu0 0.0
        %993 = vmatprep.subr.mxu0 0.0
        %994 = vmatpush1.msra.mxu0 0.0
        %995 = vmatprep.subr.mxu0 0.0
        %996 = vmatpush1.msra.mxu0 0.0
        %997 = vmatprep.subr.mxu0 0.0
        %998 = vmatpush1.msra.mxu0 0.0
        %999 = vmatprep.subr.mxu0 0.0
        %1000 = vmatpush1.msra.mxu0 0.0
        %1001 = vmatprep.subr.mxu0 0.0
        %1002 = vmatpush1.msra.mxu0 0.0
        %1003 = vmatprep.subr.mxu0 0.0
        %1004 = vmatpush1.msra.mxu0 0.0
        %1005 = vmatprep.subr.mxu0 0.0
        %1006 = vmatpush1.msra.mxu0 0.0
        %1007 = vmatprep.subr.mxu0 0.0
        %1008 = vmatpush1.msra.mxu0 0.0
        %1009 = vmatprep.subr.mxu0 0.0
        %1010 = vmatpush1.msra.mxu0 0.0
        %1011 = vmatprep.subr.mxu0 0.0
        %1012 = vmatpush1.msra.mxu0 0.0
        %1013 = vmatprep.subr.mxu0 0.0
        %1014 = vmatpush1.msra.mxu0 0.0
        %1015 = vmatprep.subr.mxu0 0.0
        %1016 = vmatpush1.msra.mxu0 0.0
        %1017 = vmatprep.subr.mxu0 0.0
        %1018 = vmatpush1.msra.mxu0 0.0
        %1019 = vmatprep.subr.mxu0 0.0
        %1020 = vmatpush1.msra.mxu0 0.0
        %1021 = vmatprep.subr.mxu0 0.0
        %1022 = vmatpush1.msra.mxu0 0.0
        %1023 = vmatprep.subr.mxu0 0.0
        %1024 = vmatpush1.msra.mxu0 0.0
        %1025 = vmatprep.subr.mxu0 0.0
        %1026 = vmatpush1.msra.mxu0 0.0
        %1027 = vmatprep.subr.mxu0 0.0
        %1028 = vmatpush1.msra.mxu0 0.0
        %1029 = vmatprep.subr.mxu0 0.0
        %1030 = vmatpush1.msra.mxu0 0.0
        %1031 = vmatprep.subr.mxu0 0.0
        %1032 = vmatpush1.msra.mxu0 0.0
        %1033 = vmatprep.subr.mxu0 0.0
        %1034 = vmatpush1.msra.mxu0 0.0
        %1035 = vmatprep.subr.mxu0 0.0
        %1036 = vmatpush1.msra.mxu0 0.0
        %1037 = vmatprep.mubr.f32.mxu0 0.0
        %1038 = vmatmul.mubr.f32.gmra.mrb[0].mxu0 %v971
        %v1039 = vpop.f32.mrb[0].mxu0
        %v1040 = vadd.f32 0.0, %v1039
        %v1041 = vpop.f32.mrb[0].mxu0
        %1042 = vdwg.mxu0
        %1043 = vrot.lane.b32.xlu0 %v700, 112
        %v1044 = vpop.permute.xlu0 %1043
        %1045 = vrot.lane.b32.xlu0 %v700, 80
        %v1046 = vpop.permute.xlu0 %1045
        %v1047 = vsel %vm706, %v1044, 0
        %v1049 = vsel %vm706, %v1046, 0
        %1051 = vmatprep.subr.mxu0 0.0
        %1052 = vmatpush1.xpose.msra.mxu0 %v1049
        %1053 = vmatprep.subr.mxu0 0.0
        %1054 = vmatpush1.xpose.msra.mxu0 0.0
        %1055 = vmatprep.subr.mxu0 0.0
        %1056 = vmatpush1.xpose.msra.mxu0 0.0
        %1057 = vmatprep.subr.mxu0 0.0
        %1058 = vmatpush1.xpose.msra.mxu0 0.0
        %1059 = vmatprep.subr.mxu0 0.0
        %1060 = vmatpush1.xpose.msra.mxu0 0.0
        %1061 = vmatprep.subr.mxu0 0.0
        %1062 = vmatpush1.xpose.msra.mxu0 0.0
        %1063 = vmatprep.subr.mxu0 0.0
        %1064 = vmatpush1.xpose.msra.mxu0 0.0
        %1065 = vmatprep.subr.mxu0 0.0
        %1066 = vmatpush1.xpose.msra.mxu0 0.0
        %1067 = vmatprep.subr.mxu0 0.0
        %1068 = vmatpush1.xpose.msra.mxu0 0.0
        %1069 = vmatprep.subr.mxu0 0.0
        %1070 = vmatpush1.xpose.msra.mxu0 0.0
        %1071 = vmatprep.subr.mxu0 0.0
        %1072 = vmatpush1.xpose.msra.mxu0 0.0
        %1073 = vmatprep.subr.mxu0 0.0
        %1074 = vmatpush1.xpose.msra.mxu0 0.0
        %1075 = vmatprep.subr.mxu0 0.0
        %1076 = vmatpush1.xpose.msra.mxu0 0.0
        %1077 = vmatprep.subr.mxu0 0.0
        %1078 = vmatpush1.xpose.msra.mxu0 0.0
        %1079 = vmatprep.subr.mxu0 0.0
        %1080 = vmatpush1.xpose.msra.mxu0 0.0
        %1081 = vmatprep.subr.mxu0 0.0
        %1082 = vmatpush1.xpose.msra.mxu0 0.0
        %1083 = vmatprep.subr.mxu0 0.0
        %1084 = vmatpush1.xpose.msra.mxu0 0.0
        %1085 = vmatprep.subr.mxu0 0.0
        %1086 = vmatpush1.xpose.msra.mxu0 0.0
        %1087 = vmatprep.subr.mxu0 0.0
        %1088 = vmatpush1.xpose.msra.mxu0 0.0
        %1089 = vmatprep.subr.mxu0 0.0
        %1090 = vmatpush1.xpose.msra.mxu0 0.0
        %1091 = vmatprep.subr.mxu0 0.0
        %1092 = vmatpush1.xpose.msra.mxu0 0.0
        %1093 = vmatprep.subr.mxu0 0.0
        %1094 = vmatpush1.xpose.msra.mxu0 0.0
        %1095 = vmatprep.subr.mxu0 0.0
        %1096 = vmatpush1.xpose.msra.mxu0 0.0
        %1097 = vmatprep.subr.mxu0 0.0
        %1098 = vmatpush1.xpose.msra.mxu0 0.0
        %1099 = vmatprep.subr.mxu0 0.0
        %1100 = vmatpush1.xpose.msra.mxu0 0.0
        %1101 = vmatprep.subr.mxu0 0.0
        %1102 = vmatpush1.xpose.msra.mxu0 0.0
        %1103 = vmatprep.subr.mxu0 0.0
        %1104 = vmatpush1.xpose.msra.mxu0 0.0
        %1105 = vmatprep.subr.mxu0 0.0
        %1106 = vmatpush1.xpose.msra.mxu0 0.0
        %1107 = vmatprep.subr.mxu0 0.0
        %1108 = vmatpush1.xpose.msra.mxu0 0.0
        %1109 = vmatprep.subr.mxu0 0.0
        %1110 = vmatpush1.xpose.msra.mxu0 0.0
        %1111 = vmatprep.subr.mxu0 0.0
        %1112 = vmatpush1.xpose.msra.mxu0 0.0
        %1113 = vmatprep.subr.mxu0 0.0
        %1114 = vmatpush1.xpose.msra.mxu0 0.0
        %1115 = vmatprep.mubr.f32.mxu0 0.0
        %1116 = vmatmul.mubr.f32.gmra.mrb[0].mxu0 %v1047
        %v1117 = vpop.f32.mrb[0].mxu0
        %v1118 = vadd.f32 0.0, %v1117
        %v1119 = vpop.f32.mrb[0].mxu0
        %1120 = vdwg.mxu0
        %v1121 = vmul.f32 %v1118, 0.35355338
        %v1122 = vadd.f32 %v1121, %v786
        %v1123 = vsel %vm706, %v1122, -inf
        %1124 = vmax.xlane.f32.xlu0 %v1123
        %v1125 = vpop.xlane.xlu0 %1124
        %v1126 = vsub.f32 %v1122, %v1125
        %v1127 = vmul.f32 %v1126, 1.442695
        %v1128 = vpow.pop %v1127
        %v1129 = vsel %vm706, %v1128, 0.0
        %1130 = vadd.xlane.f32.xlu0 %v1129
        %v1131 = vpop.xlane.xlu0 %1130
        %v1132 = vrcp.pop %v1131
        %v1133 = vmul.f32 %v1128, %v1132
        %1134 = vrot.lane.b32.xlu0 %v700, 48
        %v1135 = vpop.permute.xlu0 %1134
        %v1138 = vsel %vm706, %v1133, 0
        %1140 = vmatprep.subr.mxu0 0.0
        %1141 = vmatpush1.msra.mxu0 %v1135
        %1142 = vmatprep.subr.mxu0 0.0
        %1143 = vmatpush1.msra.mxu0 0.0
        %1144 = vmatprep.subr.mxu0 0.0
        %1145 = vmatpush1.msra.mxu0 0.0
        %1146 = vmatprep.subr.mxu0 0.0
        %1147 = vmatpush1.msra.mxu0 0.0
        %1148 = vmatprep.subr.mxu0 0.0
        %1149 = vmatpush1.msra.mxu0 0.0
        %1150 = vmatprep.subr.mxu0 0.0
        %1151 = vmatpush1.msra.mxu0 0.0
        %1152 = vmatprep.subr.mxu0 0.0
        %1153 = vmatpush1.msra.mxu0 0.0
        %1154 = vmatprep.subr.mxu0 0.0
        %1155 = vmatpush1.msra.mxu0 0.0
        %1156 = vmatprep.subr.mxu0 0.0
        %1157 = vmatpush1.msra.mxu0 0.0
        %1158 = vmatprep.subr.mxu0 0.0
        %1159 = vmatpush1.msra.mxu0 0.0
        %1160 = vmatprep.subr.mxu0 0.0
        %1161 = vmatpush1.msra.mxu0 0.0
        %1162 = vmatprep.subr.mxu0 0.0
        %1163 = vmatpush1.msra.mxu0 0.0
        %1164 = vmatprep.subr.mxu0 0.0
        %1165 = vmatpush1.msra.mxu0 0.0
        %1166 = vmatprep.subr.mxu0 0.0
        %1167 = vmatpush1.msra.mxu0 0.0
        %1168 = vmatprep.subr.mxu0 0.0
        %1169 = vmatpush1.msra.mxu0 0.0
        %1170 = vmatprep.subr.mxu0 0.0
        %1171 = vmatpush1.msra.mxu0 0.0
        %1172 = vmatprep.subr.mxu0 0.0
        %1173 = vmatpush1.msra.mxu0 0.0
        %1174 = vmatprep.subr.mxu0 0.0
        %1175 = vmatpush1.msra.mxu0 0.0
        %1176 = vmatprep.subr.mxu0 0.0
        %1177 = vmatpush1.msra.mxu0 0.0
        %1178 = vmatprep.subr.mxu0 0.0
        %1179 = vmatpush1.msra.mxu0 0.0
        %1180 = vmatprep.subr.mxu0 0.0
        %1181 = vmatpush1.msra.mxu0 0.0
        %1182 = vmatprep.subr.mxu0 0.0
        %1183 = vmatpush1.msra.mxu0 0.0
        %1184 = vmatprep.subr.mxu0 0.0
        %1185 = vmatpush1.msra.mxu0 0.0
        %1186 = vmatprep.subr.mxu0 0.0
        %1187 = vmatpush1.msra.mxu0 0.0
        %1188 = vmatprep.subr.mxu0 0.0
        %1189 = vmatpush1.msra.mxu0 0.0
        %1190 = vmatprep.subr.mxu0 0.0
        %1191 = vmatpush1.msra.mxu0 0.0
        %1192 = vmatprep.subr.mxu0 0.0
        %1193 = vmatpush1.msra.mxu0 0.0
        %1194 = vmatprep.subr.mxu0 0.0
        %1195 = vmatpush1.msra.mxu0 0.0
        %1196 = vmatprep.subr.mxu0 0.0
        %1197 = vmatpush1.msra.mxu0 0.0
        %1198 = vmatprep.subr.mxu0 0.0
        %1199 = vmatpush1.msra.mxu0 0.0
        %1200 = vmatprep.subr.mxu0 0.0
        %1201 = vmatpush1.msra.mxu0 0.0
        %1202 = vmatprep.subr.mxu0 0.0
        %1203 = vmatpush1.msra.mxu0 0.0
        %1204 = vmatprep.mubr.f32.mxu0 0.0
        %1205 = vmatmul.mubr.f32.gmra.mrb[0].mxu0 %v1138
        %v1206 = vpop.f32.mrb[0].mxu0
        %v1207 = vadd.f32 0.0, %v1206
        %v1208 = vpop.f32.mrb[0].mxu0
        %1209 = vdwg.mxu0
        %1210 = vrot.lane.b32.xlu0 %v700, 104
        %v1211 = vpop.permute.xlu0 %1210
        %1212 = vrot.lane.b32.xlu0 %v700, 72
        %v1213 = vpop.permute.xlu0 %1212
        %v1214 = vsel %vm706, %v1211, 0
        %v1216 = vsel %vm706, %v1213, 0
        %1218 = vmatprep.subr.mxu0 0.0
        %1219 = vmatpush1.xpose.msra.mxu0 %v1216
        %1220 = vmatprep.subr.mxu0 0.0
        %1221 = vmatpush1.xpose.msra.mxu0 0.0
        %1222 = vmatprep.subr.mxu0 0.0
        %1223 = vmatpush1.xpose.msra.mxu0 0.0
        %1224 = vmatprep.subr.mxu0 0.0
        %1225 = vmatpush1.xpose.msra.mxu0 0.0
        %1226 = vmatprep.subr.mxu0 0.0
        %1227 = vmatpush1.xpose.msra.mxu0 0.0
        %1228 = vmatprep.subr.mxu0 0.0
        %1229 = vmatpush1.xpose.msra.mxu0 0.0
        %1230 = vmatprep.subr.mxu0 0.0
        %1231 = vmatpush1.xpose.msra.mxu0 0.0
        %1232 = vmatprep.subr.mxu0 0.0
        %1233 = vmatpush1.xpose.msra.mxu0 0.0
        %1234 = vmatprep.subr.mxu0 0.0
        %1235 = vmatpush1.xpose.msra.mxu0 0.0
        %1236 = vmatprep.subr.mxu0 0.0
        %1237 = vmatpush1.xpose.msra.mxu0 0.0
        %1238 = vmatprep.subr.mxu0 0.0
        %1239 = vmatpush1.xpose.msra.mxu0 0.0
        %1240 = vmatprep.subr.mxu0 0.0
        %1241 = vmatpush1.xpose.msra.mxu0 0.0
        %1242 = vmatprep.subr.mxu0 0.0
        %1243 = vmatpush1.xpose.msra.mxu0 0.0
        %1244 = vmatprep.subr.mxu0 0.0
        %1245 = vmatpush1.xpose.msra.mxu0 0.0
        %1246 = vmatprep.subr.mxu0 0.0
        %1247 = vmatpush1.xpose.msra.mxu0 0.0
        %1248 = vmatprep.subr.mxu0 0.0
        %1249 = vmatpush1.xpose.msra.mxu0 0.0
        %1250 = vmatprep.subr.mxu0 0.0
        %1251 = vmatpush1.xpose.msra.mxu0 0.0
        %1252 = vmatprep.subr.mxu0 0.0
        %1253 = vmatpush1.xpose.msra.mxu0 0.0
        %1254 = vmatprep.subr.mxu0 0.0
        %1255 = vmatpush1.xpose.msra.mxu0 0.0
        %1256 = vmatprep.subr.mxu0 0.0
        %1257 = vmatpush1.xpose.msra.mxu0 0.0
        %1258 = vmatprep.subr.mxu0 0.0
        %1259 = vmatpush1.xpose.msra.mxu0 0.0
        %1260 = vmatprep.subr.mxu0 0.0
        %1261 = vmatpush1.xpose.msra.mxu0 0.0
        %1262 = vmatprep.subr.mxu0 0.0
        %1263 = vmatpush1.xpose.msra.mxu0 0.0
        %1264 = vmatprep.subr.mxu0 0.0
        %1265 = vmatpush1.xpose.msra.mxu0 0.0
        %1266 = vmatprep.subr.mxu0 0.0
        %1267 = vmatpush1.xpose.msra.mxu0 0.0
        %1268 = vmatprep.subr.mxu0 0.0
        %1269 = vmatpush1.xpose.msra.mxu0 0.0
        %1270 = vmatprep.subr.mxu0 0.0
        %1271 = vmatpush1.xpose.msra.mxu0 0.0
        %1272 = vmatprep.subr.mxu0 0.0
        %1273 = vmatpush1.xpose.msra.mxu0 0.0
        %1274 = vmatprep.subr.mxu0 0.0
        %1275 = vmatpush1.xpose.msra.mxu0 0.0
        %1276 = vmatprep.subr.mxu0 0.0
        %1277 = vmatpush1.xpose.msra.mxu0 0.0
        %1278 = vmatprep.subr.mxu0 0.0
        %1279 = vmatpush1.xpose.msra.mxu0 0.0
        %1280 = vmatprep.subr.mxu0 0.0
        %1281 = vmatpush1.xpose.msra.mxu0 0.0
        %1282 = vmatprep.mubr.f32.mxu0 0.0
        %1283 = vmatmul.mubr.f32.gmra.mrb[0].mxu0 %v1214
        %v1284 = vpop.f32.mrb[0].mxu0
        %v1285 = vadd.f32 0.0, %v1284
        %v1286 = vpop.f32.mrb[0].mxu0
        %1287 = vdwg.mxu0
        %v1288 = vmul.f32 %v1285, 0.35355338
        %v1289 = vadd.f32 %v1288, %v786
        %v1290 = vsel %vm706, %v1289, -inf
        %1291 = vmax.xlane.f32.xlu0 %v1290
        %v1292 = vpop.xlane.xlu0 %1291
        %v1293 = vsub.f32 %v1289, %v1292
        %v1294 = vmul.f32 %v1293, 1.442695
        %v1295 = vpow.pop %v1294
        %v1296 = vsel %vm706, %v1295, 0.0
        %1297 = vadd.xlane.f32.xlu0 %v1296
        %v1298 = vpop.xlane.xlu0 %1297
        %v1299 = vrcp.pop %v1298
        %v1300 = vmul.f32 %v1295, %v1299
        %1301 = vrot.lane.b32.xlu0 %v700, 40
        %v1302 = vpop.permute.xlu0 %1301
        %v1305 = vsel %vm706, %v1300, 0
        %1307 = vmatprep.subr.mxu0 0.0
        %1308 = vmatpush1.msra.mxu0 %v1302
        %1309 = vmatprep.subr.mxu0 0.0
        %1310 = vmatpush1.msra.mxu0 0.0
        %1311 = vmatprep.subr.mxu0 0.0
        %1312 = vmatpush1.msra.mxu0 0.0
        %1313 = vmatprep.subr.mxu0 0.0
        %1314 = vmatpush1.msra.mxu0 0.0
        %1315 = vmatprep.subr.mxu0 0.0
        %1316 = vmatpush1.msra.mxu0 0.0
        %1317 = vmatprep.subr.mxu0 0.0
        %1318 = vmatpush1.msra.mxu0 0.0
        %1319 = vmatprep.subr.mxu0 0.0
        %1320 = vmatpush1.msra.mxu0 0.0
        %1321 = vmatprep.subr.mxu0 0.0
        %1322 = vmatpush1.msra.mxu0 0.0
        %1323 = vmatprep.subr.mxu0 0.0
        %1324 = vmatpush1.msra.mxu0 0.0
        %1325 = vmatprep.subr.mxu0 0.0
        %1326 = vmatpush1.msra.mxu0 0.0
        %1327 = vmatprep.subr.mxu0 0.0
        %1328 = vmatpush1.msra.mxu0 0.0
        %1329 = vmatprep.subr.mxu0 0.0
        %1330 = vmatpush1.msra.mxu0 0.0
        %1331 = vmatprep.subr.mxu0 0.0
        %1332 = vmatpush1.msra.mxu0 0.0
        %1333 = vmatprep.subr.mxu0 0.0
        %1334 = vmatpush1.msra.mxu0 0.0
        %1335 = vmatprep.subr.mxu0 0.0
        %1336 = vmatpush1.msra.mxu0 0.0
        %1337 = vmatprep.subr.mxu0 0.0
        %1338 = vmatpush1.msra.mxu0 0.0
        %1339 = vmatprep.subr.mxu0 0.0
        %1340 = vmatpush1.msra.mxu0 0.0
        %1341 = vmatprep.subr.mxu0 0.0
        %1342 = vmatpush1.msra.mxu0 0.0
        %1343 = vmatprep.subr.mxu0 0.0
        %1344 = vmatpush1.msra.mxu0 0.0
        %1345 = vmatprep.subr.mxu0 0.0
        %1346 = vmatpush1.msra.mxu0 0.0
        %1347 = vmatprep.subr.mxu0 0.0
        %1348 = vmatpush1.msra.mxu0 0.0
        %1349 = vmatprep.subr.mxu0 0.0
        %1350 = vmatpush1.msra.mxu0 0.0
        %1351 = vmatprep.subr.mxu0 0.0
        %1352 = vmatpush1.msra.mxu0 0.0
        %1353 = vmatprep.subr.mxu0 0.0
        %1354 = vmatpush1.msra.mxu0 0.0
        %1355 = vmatprep.subr.mxu0 0.0
        %1356 = vmatpush1.msra.mxu0 0.0
        %1357 = vmatprep.subr.mxu0 0.0
        %1358 = vmatpush1.msra.mxu0 0.0
        %1359 = vmatprep.subr.mxu0 0.0
        %1360 = vmatpush1.msra.mxu0 0.0
        %1361 = vmatprep.subr.mxu0 0.0
        %1362 = vmatpush1.msra.mxu0 0.0
        %1363 = vmatprep.subr.mxu0 0.0
        %1364 = vmatpush1.msra.mxu0 0.0
        %1365 = vmatprep.subr.mxu0 0.0
        %1366 = vmatpush1.msra.mxu0 0.0
        %1367 = vmatprep.subr.mxu0 0.0
        %1368 = vmatpush1.msra.mxu0 0.0
        %1369 = vmatprep.subr.mxu0 0.0
        %1370 = vmatpush1.msra.mxu0 0.0
        %1371 = vmatprep.mubr.f32.mxu0 0.0
        %1372 = vmatmul.mubr.f32.gmra.mrb[0].mxu0 %v1305
        %v1373 = vpop.f32.mrb[0].mxu0
        %v1374 = vadd.f32 0.0, %v1373
        %v1375 = vpop.f32.mrb[0].mxu0
        %1376 = vdwg.mxu0
        %1378 = vrot.lane.b32.xlu0 %v1040, 8
        %v1379 = vpop.permute.xlu0 %1378
        %1382 = vrot.lane.b32.xlu0 %v1207, 16
        %v1383 = vpop.permute.xlu0 %1382
        %1386 = vrot.lane.b32.xlu0 %v1374, 24
        %v1387 = vpop.permute.xlu0 %1386
        %v1389 = vsel %vm706, %v873, %v1379
        %vm1390 = vcmask 130048
        %v1391 = vsel %vm1390, %v1389, %v1383
        %vm1392 = vcmask 195584
        %v1393 = vsel %vm1392, %v1391, %v1387
        %v1394 = vld [vmem:[%s6] sm:$0xff]
        %v1395 = vld [vmem:[%s6 + $0x8] sm:$0xff]
        %v1396 = vld [vmem:[%s6 + $0x10] sm:$0xff]
        %v1397 = vld [vmem:[%s6 + $0x18] sm:$0xff]
        %v1398 = vld [vmem:[%s7] sm:$0x1]
        %v1400 = vlaneseq
        %v1401 = vshrl.u32 %v1400, 7
        %v1402 = vsub.s32 0, %v1401
        %v1403 = vrot.slane %v1398, %v1402
        %v1406 = vsel %vm587, %v1393, 0
        %1408 = vmatprep.subr.mxu0 0.0
        %1409 = vmatpush1.msra.mxu0 %v1394
        %1410 = vmatprep.subr.mxu0 0.0
        %1411 = vmatpush1.msra.mxu0 %v1395
        %1412 = vmatprep.subr.mxu0 0.0
        %1413 = vmatpush1.msra.mxu0 %v1396
        %1414 = vmatprep.subr.mxu0 0.0
        %1415 = vmatpush1.msra.mxu0 %v1397
        %1416 = vmatprep.subr.mxu0 0.0
        %1417 = vmatpush1.msra.mxu0 0.0
        %1418 = vmatprep.subr.mxu0 0.0
        %1419 = vmatpush1.msra.mxu0 0.0
        %1420 = vmatprep.subr.mxu0 0.0
        %1421 = vmatpush1.msra.mxu0 0.0
        %1422 = vmatprep.subr.mxu0 0.0
        %1423 = vmatpush1.msra.mxu0 0.0
        %1424 = vmatprep.subr.mxu0 0.0
        %1425 = vmatpush1.msra.mxu0 0.0
        %1426 = vmatprep.subr.mxu0 0.0
        %1427 = vmatpush1.msra.mxu0 0.0
        %1428 = vmatprep.subr.mxu0 0.0
        %1429 = vmatpush1.msra.mxu0 0.0
        %1430 = vmatprep.subr.mxu0 0.0
        %1431 = vmatpush1.msra.mxu0 0.0
        %1432 = vmatprep.subr.mxu0 0.0
        %1433 = vmatpush1.msra.mxu0 0.0
        %1434 = vmatprep.subr.mxu0 0.0
        %1435 = vmatpush1.msra.mxu0 0.0
        %1436 = vmatprep.subr.mxu0 0.0
        %1437 = vmatpush1.msra.mxu0 0.0
        %1438 = vmatprep.subr.mxu0 0.0
        %1439 = vmatpush1.msra.mxu0 0.0
        %1440 = vmatprep.subr.mxu0 0.0
        %1441 = vmatpush1.msra.mxu0 0.0
        %1442 = vmatprep.subr.mxu0 0.0
        %1443 = vmatpush1.msra.mxu0 0.0
        %1444 = vmatprep.subr.mxu0 0.0
        %1445 = vmatpush1.msra.mxu0 0.0
        %1446 = vmatprep.subr.mxu0 0.0
        %1447 = vmatpush1.msra.mxu0 0.0
        %1448 = vmatprep.subr.mxu0 0.0
        %1449 = vmatpush1.msra.mxu0 0.0
        %1450 = vmatprep.subr.mxu0 0.0
        %1451 = vmatpush1.msra.mxu0 0.0
        %1452 = vmatprep.subr.mxu0 0.0
        %1453 = vmatpush1.msra.mxu0 0.0
        %1454 = vmatprep.subr.mxu0 0.0
        %1455 = vmatpush1.msra.mxu0 0.0
        %1456 = vmatprep.subr.mxu0 0.0
        %1457 = vmatpush1.msra.mxu0 0.0
        %1458 = vmatprep.subr.mxu0 0.0
        %1459 = vmatpush1.msra.mxu0 0.0
        %1460 = vmatprep.subr.mxu0 0.0
        %1461 = vmatpush1.msra.mxu0 0.0
        %1462 = vmatprep.subr.mxu0 0.0
        %1463 = vmatpush1.msra.mxu0 0.0
        %1464 = vmatprep.subr.mxu0 0.0
        %1465 = vmatpush1.msra.mxu0 0.0
        %1466 = vmatprep.subr.mxu0 0.0
        %1467 = vmatpush1.msra.mxu0 0.0
        %1468 = vmatprep.subr.mxu0 0.0
        %1469 = vmatpush1.msra.mxu0 0.0
        %1470 = vmatprep.subr.mxu0 0.0
        %1471 = vmatpush1.msra.mxu0 0.0
        %1472 = vmatprep.mubr.f32.mxu0 0.0
        %1473 = vmatmul.mubr.f32.gmra.mrb[0].mxu0 %v1406
        %v1474 = vpop.f32.mrb[0].mxu0
        %v1475 = vadd.f32 %v1403, %v1474
        %v1476 = vpop.f32.mrb[0].mxu0
        %1477 = vdwg.mxu0
        %v1478 = vadd.f32 %v1475, %v615
        %v1479 = vld [vmem:[%s8] sm:$0x1]
        %v1480 = vld [vmem:[%s9] sm:$0x1]
        %v1481 = vsel %vm587, %v1478, 0.0
        %1482 = vadd.xlane.f32.xlu0 %v1481
        %v1483 = vpop.xlane.xlu0 %1482
        %v1484 = vmul.f32 %v1483, %v591
        %v1485 = vsub.f32 %v1478, %v1484
        %v1486 = vmul.f32 %v1485, %v1485
        %v1487 = vsel %vm587, %v1486, 0.0
        %1488 = vadd.xlane.f32.xlu0 %v1487
        %v1489 = vpop.xlane.xlu0 %1488
        %v1490 = vmul.f32 %v1489, %v591
        %v1491 = vadd.f32 %v1490, 1e-05
        %v1492 = vrsqrt.pop %v1491
        %v1493 = vmul.f32 %v1485, %v1492
        %v1495 = vlaneseq
        %v1496 = vshrl.u32 %v1495, 7
        %v1497 = vsub.s32 0, %v1496
        %v1498 = vrot.slane %v1479, %v1497
        %v1500 = vmul.f32 %v1493, %v1498
        %v1502 = vlaneseq
        %v1503 = vshrl.u32 %v1502, 7
        %v1504 = vsub.s32 0, %v1503
        %v1505 = vrot.slane %v1480, %v1504
        %v1507 = vadd.f32 %v1500, %v1505
        %v1508 = vld [vmem:[%s10] sm:$0xff]
        %v1509 = vld [vmem:[%s10 + $0x8] sm:$0xff]
        %v1510 = vld [vmem:[%s10 + $0x10] sm:$0xff]
        %v1511 = vld [vmem:[%s10 + $0x18] sm:$0xff]
        %v1512 = vld [vmem:[%s11] sm:$0x1]
        %v1514 = vlaneseq
        %v1515 = vshrl.u32 %v1514, 7
        %v1516 = vsub.s32 0, %v1515
        %v1517 = vrot.slane %v1512, %v1516
        %v1520 = vsel %vm587, %v1507, 0
        %1522 = vmatprep.subr.mxu0 0.0
        %1523 = vmatpush1.msra.mxu0 %v1508
        %1524 = vmatprep.subr.mxu0 0.0
        %1525 = vmatpush1.msra.mxu0 %v1509
        %1526 = vmatprep.subr.mxu0 0.0
        %1527 = vmatpush1.msra.mxu0 %v1510
        %1528 = vmatprep.subr.mxu0 0.0
        %1529 = vmatpush1.msra.mxu0 %v1511
        %1530 = vmatprep.subr.mxu0 0.0
        %1531 = vmatpush1.msra.mxu0 0.0
        %1532 = vmatprep.subr.mxu0 0.0
        %1533 = vmatpush1.msra.mxu0 0.0
        %1534 = vmatprep.subr.mxu0 0.0
        %1535 = vmatpush1.msra.mxu0 0.0
        %1536 = vmatprep.subr.mxu0 0.0
        %1537 = vmatpush1.msra.mxu0 0.0
        %1538 = vmatprep.subr.mxu0 0.0
        %1539 = vmatpush1.msra.mxu0 0.0
        %1540 = vmatprep.subr.mxu0 0.0
        %1541 = vmatpush1.msra.mxu0 0.0
        %1542 = vmatprep.subr.mxu0 0.0
        %1543 = vmatpush1.msra.mxu0 0.0
        %1544 = vmatprep.subr.mxu0 0.0
        %1545 = vmatpush1.msra.mxu0 0.0
        %1546 = vmatprep.subr.mxu0 0.0
        %1547 = vmatpush1.msra.mxu0 0.0
        %1548 = vmatprep.subr.mxu0 0.0
        %1549 = vmatpush1.msra.mxu0 0.0
        %1550 = vmatprep.subr.mxu0 0.0
        %1551 = vmatpush1.msra.mxu0 0.0
        %1552 = vmatprep.subr.mxu0 0.0
        %1553 = vmatpush1.msra.mxu0 0.0
        %1554 = vmatprep.subr.mxu0 0.0
        %1555 = vmatpush1.msra.mxu0 0.0
        %1556 = vmatprep.subr.mxu0 0.0
        %1557 = vmatpush1.msra.mxu0 0.0
        %1558 = vmatprep.subr.mxu0 0.0
        %1559 = vmatpush1.msra.mxu0 0.0
        %1560 = vmatprep.subr.mxu0 0.0
        %1561 = vmatpush1.msra.mxu0 0.0
        %1562 = vmatprep.subr.mxu0 0.0
        %1563 = vmatpush1.msra.mxu0 0.0
        %1564 = vmatprep.subr.mxu0 0.0
        %1565 = vmatpush1.msra.mxu0 0.0
        %1566 = vmatprep.subr.mxu0 0.0
        %1567 = vmatpush1.msra.mxu0 0.0
        %1568 = vmatprep.subr.mxu0 0.0
        %1569 = vmatpush1.msra.mxu0 0.0
        %1570 = vmatprep.subr.mxu0 0.0
        %1571 = vmatpush1.msra.mxu0 0.0
        %1572 = vmatprep.subr.mxu0 0.0
        %1573 = vmatpush1.msra.mxu0 0.0
        %1574 = vmatprep.subr.mxu0 0.0
        %1575 = vmatpush1.msra.mxu0 0.0
        %1576 = vmatprep.subr.mxu0 0.0
        %1577 = vmatpush1.msra.mxu0 0.0
        %1578 = vmatprep.subr.mxu0 0.0
        %1579 = vmatpush1.msra.mxu0 0.0
        %1580 = vmatprep.subr.mxu0 0.0
        %1581 = vmatpush1.msra.mxu0 0.0
        %1582 = vmatprep.subr.mxu0 0.0
        %1583 = vmatpush1.msra.mxu0 0.0
        %1584 = vmatprep.subr.mxu0 0.0
        %1585 = vmatpush1.msra.mxu0 0.0
        %1586 = vmatprep.mubr.f32.mxu0 0.0
        %1587 = vmatmul.mubr.f32.gmra.mrb[0].mxu0 %v1520
        %v1588 = vpop.f32.mrb[0].mxu0
        %v1589 = vadd.f32 %v1517, %v1588
        %v1590 = vpop.f32.mrb[0].mxu0
        %1591 = vdwg.mxu0
        %v1592 = vmul.f32 %v1589, 0.5
        %v1593 = vmul.f32 %v1589, 0.044715
        %v1594 = vmul.f32 %v1593, %v1589
        %v1595 = vmul.f32 %v1594, %v1589
        %v1596 = vadd.f32 %v1589, %v1595
        %v1597 = vmul.f32 %v1596, 0.7978846
        %v1598 = vtanh.pop %v1597
        %v1599 = vadd.f32 %v1598, 1.0
        %v1600 = vmul.f32 %v1592, %v1599
        %v1601 = vld [vmem:[%s12] sm:$0xff]
        %v1602 = vld [vmem:[%s12 + $0x8] sm:$0xff]
        %v1603 = vld [vmem:[%s12 + $0x10] sm:$0xff]
        %v1604 = vld [vmem:[%s12 + $0x18] sm:$0xff]
        %v1605 = vld [vmem:[%s12 + $0x20] sm:$0xff]
        %v1606 = vld [vmem:[%s12 + $0x28] sm:$0xff]
        %v1607 = vld [vmem:[%s12 + $0x30] sm:$0xff]
        %v1608 = vld [vmem:[%s12 + $0x38] sm:$0xff]
        %v1609 = vld [vmem:[%s13] sm:$0x1]
        %v1611 = vlaneseq
        %v1612 = vshrl.u32 %v1611, 7
        %v1613 = vsub.s32 0, %v1612
        %v1614 = vrot.slane %v1609, %v1613
        %vm1616 = vcmask 523264
        %v1618 = vsel %vm1616, %v1600, 0
        %1620 = vmatprep.subr.mxu0 0.0
        %1621 = vmatpush1.msra.mxu0 %v1601
        %1622 = vmatprep.subr.mxu0 0.0
        %1623 = vmatpush1.msra.mxu0 %v1602
        %1624 = vmatprep.subr.mxu0 0.0
        %1625 = vmatpush1.msra.mxu0 %v1603
        %1626 = vmatprep.subr.mxu0 0.0
        %1627 = vmatpush1.msra.mxu0 %v1604
        %1628 = vmatprep.subr.mxu0 0.0
        %1629 = vmatpush1.msra.mxu0 %v1605
        %1630 = vmatprep.subr.mxu0 0.0
        %1631 = vmatpush1.msra.mxu0 %v1606
        %1632 = vmatprep.subr.mxu0 0.0
        %1633 = vmatpush1.msra.mxu0 %v1607
        %1634 = vmatprep.subr.mxu0 0.0
        %1635 = vmatpush1.msra.mxu0 %v1608
        %1636 = vmatprep.subr.mxu0 0.0
        %1637 = vmatpush1.msra.mxu0 0.0
        %1638 = vmatprep.subr.mxu0 0.0
        %1639 = vmatpush1.msra.mxu0 0.0
        %1640 = vmatprep.subr.mxu0 0.0
        %1641 = vmatpush1.msra.mxu0 0.0
        %1642 = vmatprep.subr.mxu0 0.0
        %1643 = vmatpush1.msra.mxu0 0.0
        %1644 = vmatprep.subr.mxu0 0.0
        %1645 = vmatpush1.msra.mxu0 0.0
        %1646 = vmatprep.subr.mxu0 0.0
        %1647 = vmatpush1.msra.mxu0 0.0
        %1648 = vmatprep.subr.mxu0 0.0
        %1649 = vmatpush1.msra.mxu0 0.0
        %1650 = vmatprep.subr.mxu0 0.0
        %1651 = vmatpush1.msra.mxu0 0.0
        %1652 = vmatprep.subr.mxu0 0.0
        %1653 = vmatpush1.msra.mxu0 0.0
        %1654 = vmatprep.subr.mxu0 0.0
        %1655 = vmatpush1.msra.mxu0 0.0
        %1656 = vmatprep.subr.mxu0 0.0
        %1657 = vmatpush1.msra.mxu0 0.0
        %1658 = vmatprep.subr.mxu0 0.0
        %1659 = vmatpush1.msra.mxu0 0.0
        %1660 = vmatprep.subr.mxu0 0.0
        %1661 = vmatpush1.msra.mxu0 0.0
        %1662 = vmatprep.subr.mxu0 0.0
        %1663 = vmatpush1.msra.mxu0 0.0
        %1664 = vmatprep.subr.mxu0 0.0
        %1665 = vmatpush1.msra.mxu0 0.0
        %1666 = vmatprep.subr.mxu0 0.0
        %1667 = vmatpush1.msra.mxu0 0.0
        %1668 = vmatprep.subr.mxu0 0.0
        %1669 = vmatpush1.msra.mxu0 0.0
        %1670 = vmatprep.subr.mxu0 0.0
        %1671 = vmatpush1.msra.mxu0 0.0
        %1672 = vmatprep.subr.mxu0 0.0
        %1673 = vmatpush1.msra.mxu0 0.0
        %1674 = vmatprep.subr.mxu0 0.0
        %1675 = vmatpush1.msra.mxu0 0.0
        %1676 = vmatprep.subr.mxu0 0.0
        %1677 = vmatpush1.msra.mxu0 0.0
        %1678 = vmatprep.subr.mxu0 0.0
        %1679 = vmatpush1.msra.mxu0 0.0
        %1680 = vmatprep.subr.mxu0 0.0
        %1681 = vmatpush1.msra.mxu0 0.0
        %1682 = vmatprep.subr.mxu0 0.0
        %1683 = vmatpush1.msra.mxu0 0.0
        %1684 = vmatprep.mubr.f32.mxu0 0.0
        %1685 = vmatmul.mubr.f32.gmra.mrb[0].mxu0 %v1618
        %v1686 = vpop.f32.mrb[0].mxu0
        %v1687 = vadd.f32 %v1614, %v1686
        %v1688 = vpop.f32.mrb[0].mxu0
        %1689 = vdwg.mxu0
        %v1690 = vadd.f32 %v1687, %v1507
        %v1691 = vld [vmem:[%s14] sm:$0x1]
        %v1692 = vld [vmem:[%s15] sm:$0x1]
        %v1693 = vsel %vm587, %v1690, 0.0
        %1694 = vadd.xlane.f32.xlu0 %v1693
        %v1695 = vpop.xlane.xlu0 %1694
        %v1696 = vmul.f32 %v1695, %v591
        %v1697 = vsub.f32 %v1690, %v1696
        %v1698 = vmul.f32 %v1697, %v1697
        %v1699 = vsel %vm587, %v1698, 0.0
        %1700 = vadd.xlane.f32.xlu0 %v1699
        %v1701 = vpop.xlane.xlu0 %1700
        %v1702 = vmul.f32 %v1701, %v591
        %v1703 = vadd.f32 %v1702, 1e-05
        %v1704 = vrsqrt.pop %v1703
        %v1705 = vmul.f32 %v1697, %v1704
        %v1707 = vlaneseq
        %v1708 = vshrl.u32 %v1707, 7
        %v1709 = vsub.s32 0, %v1708
        %v1710 = vrot.slane %v1691, %v1709
        %v1712 = vmul.f32 %v1705, %v1710
        %v1714 = vlaneseq
        %v1715 = vshrl.u32 %v1714, 7
        %v1716 = vsub.s32 0, %v1715
        %v1717 = vrot.slane %v1692, %v1716
        %v1719 = vadd.f32 %v1712, %v1717
        %s1720 = scalar_lea.vmem %s4, 32
        %v1721 = vld [vmem:[%s1720] sm:$0xff]
        %v1722 = vld [vmem:[%s1720 + $0x8] sm:$0xff]
        %v1723 = vld [vmem:[%s1720 + $0x10] sm:$0xff]
        %v1724 = vld [vmem:[%s1720 + $0x18] sm:$0xff]
        %s1725 = scalar_lea.vmem %s5, 1
        %v1726 = vld [vmem:[%s1725] sm:$0x1]
        %v1728 = vlaneseq
        %v1729 = vshrl.u32 %v1728, 7
        %v1730 = vsub.s32 0, %v1729
        %v1731 = vrot.slane %v1726, %v1730
        %v1734 = vsel %vm587, %v1719, 0
        %1736 = vmatprep.subr.mxu0 0.0
        %1737 = vmatpush1.msra.mxu0 %v1721
        %1738 = vmatprep.subr.mxu0 0.0
        %1739 = vmatpush1.msra.mxu0 %v1722
        %1740 = vmatprep.subr.mxu0 0.0
        %1741 = vmatpush1.msra.mxu0 %v1723
        %1742 = vmatprep.subr.mxu0 0.0
        %1743 = vmatpush1.msra.mxu0 %v1724
        %1744 = vmatprep.subr.mxu0 0.0
        %1745 = vmatpush1.msra.mxu0 0.0
        %1746 = vmatprep.subr.mxu0 0.0
        %1747 = vmatpush1.msra.mxu0 0.0
        %1748 = vmatprep.subr.mxu0 0.0
        %1749 = vmatpush1.msra.mxu0 0.0
        %1750 = vmatprep.subr.mxu0 0.0
        %1751 = vmatpush1.msra.mxu0 0.0
        %1752 = vmatprep.subr.mxu0 0.0
        %1753 = vmatpush1.msra.mxu0 0.0
        %1754 = vmatprep.subr.mxu0 0.0
        %1755 = vmatpush1.msra.mxu0 0.0
        %1756 = vmatprep.subr.mxu0 0.0
        %1757 = vmatpush1.msra.mxu0 0.0
        %1758 = vmatprep.subr.mxu0 0.0
        %1759 = vmatpush1.msra.mxu0 0.0
        %1760 = vmatprep.subr.mxu0 0.0
        %1761 = vmatpush1.msra.mxu0 0.0
        %1762 = vmatprep.subr.mxu0 0.0
        %1763 = vmatpush1.msra.mxu0 0.0
        %1764 = vmatprep.subr.mxu0 0.0
        %1765 = vmatpush1.msra.mxu0 0.0
        %1766 = vmatprep.subr.mxu0 0.0
        %1767 = vmatpush1.msra.mxu0 0.0
        %1768 = vmatprep.subr.mxu0 0.0
        %1769 = vmatpush1.msra.mxu0 0.0
        %1770 = vmatprep.subr.mxu0 0.0
        %1771 = vmatpush1.msra.mxu0 0.0
        %1772 = vmatprep.subr.mxu0 0.0
        %1773 = vmatpush1.msra.mxu0 0.0
        %1774 = vmatprep.subr.mxu0 0.0
        %1775 = vmatpush1.msra.mxu0 0.0
        %1776 = vmatprep.subr.mxu0 0.0
        %1777 = vmatpush1.msra.mxu0 0.0
        %1778 = vmatprep.subr.mxu0 0.0
        %1779 = vmatpush1.msra.mxu0 0.0
        %1780 = vmatprep.subr.mxu0 0.0
        %1781 = vmatpush1.msra.mxu0 0.0
        %1782 = vmatprep.subr.mxu0 0.0
        %1783 = vmatpush1.msra.mxu0 0.0
        %1784 = vmatprep.subr.mxu0 0.0
        %1785 = vmatpush1.msra.mxu0 0.0
        %1786 = vmatprep.subr.mxu0 0.0
        %1787 = vmatpush1.msra.mxu0 0.0
        %1788 = vmatprep.subr.mxu0 0.0
        %1789 = vmatpush1.msra.mxu0 0.0
        %1790 = vmatprep.subr.mxu0 0.0
        %1791 = vmatpush1.msra.mxu0 0.0
        %1792 = vmatprep.subr.mxu0 0.0
        %1793 = vmatpush1.msra.mxu0 0.0
        %1794 = vmatprep.subr.mxu0 0.0
        %1795 = vmatpush1.msra.mxu0 0.0
        %1796 = vmatprep.subr.mxu0 0.0
        %1797 = vmatpush1.msra.mxu0 0.0
        %1798 = vmatprep.subr.mxu0 0.0
        %1799 = vmatpush1.msra.mxu0 0.0
        %1800 = vmatprep.mubr.f32.mxu0 0.0
        %1801 = vmatmul.mubr.f32.gmra.mrb[0].mxu0 %v1734
        %v1802 = vpop.f32.mrb[0].mxu0
        %v1803 = vadd.f32 %v1731, %v1802
        %v1804 = vpop.f32.mrb[0].mxu0
        %1805 = vdwg.mxu0
        %1807 = vrot.lane.b32.xlu0 %v1803, 96
        %v1808 = vpop.permute.xlu0 %1807
        %v1809 = vsel %vm706, %v1803, 0
        %v1811 = vsel %vm706, %v1808, 0
        %1813 = vmatprep.subr.mxu0 0.0
        %1814 = vmatpush1.xpose.msra.mxu0 %v1811
        %1815 = vmatprep.subr.mxu0 0.0
        %1816 = vmatpush1.xpose.msra.mxu0 0.0
        %1817 = vmatprep.subr.mxu0 0.0
        %1818 = vmatpush1.xpose.msra.mxu0 0.0
        %1819 = vmatprep.subr.mxu0 0.0
        %1820 = vmatpush1.xpose.msra.mxu0 0.0
        %1821 = vmatprep.subr.mxu0 0.0
        %1822 = vmatpush1.xpose.msra.mxu0 0.0
        %1823 = vmatprep.subr.mxu0 0.0
        %1824 = vmatpush1.xpose.msra.mxu0 0.0
        %1825 = vmatprep.subr.mxu0 0.0
        %1826 = vmatpush1.xpose.msra.mxu0 0.0
        %1827 = vmatprep.subr.mxu0 0.0
        %1828 = vmatpush1.xpose.msra.mxu0 0.0
        %1829 = vmatprep.subr.mxu0 0.0
        %1830 = vmatpush1.xpose.msra.mxu0 0.0
        %1831 = vmatprep.subr.mxu0 0.0
        %1832 = vmatpush1.xpose.msra.mxu0 0.0
        %1833 = vmatprep.subr.mxu0 0.0
        %1834 = vmatpush1.xpose.msra.mxu0 0.0
        %1835 = vmatprep.subr.mxu0 0.0
        %1836 = vmatpush1.xpose.msra.mxu0 0.0
        %1837 = vmatprep.subr.mxu0 0.0
        %1838 = vmatpush1.xpose.msra.mxu0 0.0
        %1839 = vmatprep.subr.mxu0 0.0
        %1840 = vmatpush1.xpose.msra.mxu0 0.0
        %1841 = vmatprep.subr.mxu0 0.0
        %1842 = vmatpush1.xpose.msra.mxu0 0.0
        %1843 = vmatprep.subr.mxu0 0.0
        %1844 = vmatpush1.xpose.msra.mxu0 0.0
        %1845 = vmatprep.subr.mxu0 0.0
        %1846 = vmatpush1.xpose.msra.mxu0 0.0
        %1847 = vmatprep.subr.mxu0 0.0
        %1848 = vmatpush1.xpose.msra.mxu0 0.0
        %1849 = vmatprep.subr.mxu0 0.0
        %1850 = vmatpush1.xpose.msra.mxu0 0.0
        %1851 = vmatprep.subr.mxu0 0.0
        %1852 = vmatpush1.xpose.msra.mxu0 0.0
        %1853 = vmatprep.subr.mxu0 0.0
        %1854 = vmatpush1.xpose.msra.mxu0 0.0
        %1855 = vmatprep.subr.mxu0 0.0
        %1856 = vmatpush1.xpose.msra.mxu0 0.0
        %1857 = vmatprep.subr.mxu0 0.0
        %1858 = vmatpush1.xpose.msra.mxu0 0.0
        %1859 = vmatprep.subr.mxu0 0.0
        %1860 = vmatpush1.xpose.msra.mxu0 0.0
        %1861 = vmatprep.subr.mxu0 0.0
        %1862 = vmatpush1.xpose.msra.mxu0 0.0
        %1863 = vmatprep.subr.mxu0 0.0
        %1864 = vmatpush1.xpose.msra.mxu0 0.0
        %1865 = vmatprep.subr.mxu0 0.0
        %1866 = vmatpush1.xpose.msra.mxu0 0.0
        %1867 = vmatprep.subr.mxu0 0.0
        %1868 = vmatpush1.xpose.msra.mxu0 0.0
        %1869 = vmatprep.subr.mxu0 0.0
        %1870 = vmatpush1.xpose.msra.mxu0 0.0
        %1871 = vmatprep.subr.mxu0 0.0
        %1872 = vmatpush1.xpose.msra.mxu0 0.0
        %1873 = vmatprep.subr.mxu0 0.0
        %1874 = vmatpush1.xpose.msra.mxu0 0.0
        %1875 = vmatprep.subr.mxu0 0.0
        %1876 = vmatpush1.xpose.msra.mxu0 0.0
        %1877 = vmatprep.mubr.f32.mxu0 0.0
        %1878 = vmatmul.mubr.f32.gmra.mrb[0].mxu0 %v1809
        %v1879 = vpop.f32.mrb[0].mxu0
        %v1880 = vadd.f32 0.0, %v1879
        %v1881 = vpop.f32.mrb[0].mxu0
        %1882 = vdwg.mxu0
        %v1883 = vmul.f32 %v1880, 0.35355338
        %v1884 = vadd.f32 %v1883, %v786
        %v1885 = vsel %vm706, %v1884, -inf
        %1886 = vmax.xlane.f32.xlu0 %v1885
        %v1887 = vpop.xlane.xlu0 %1886
        %v1888 = vsub.f32 %v1884, %v1887
        %v1889 = vmul.f32 %v1888, 1.442695
        %v1890 = vpow.pop %v1889
        %v1891 = vsel %vm706, %v1890, 0.0
        %1892 = vadd.xlane.f32.xlu0 %v1891
        %v1893 = vpop.xlane.xlu0 %1892
        %v1894 = vrcp.pop %v1893
        %v1895 = vmul.f32 %v1890, %v1894
        %1896 = vrot.lane.b32.xlu0 %v1803, 64
        %v1897 = vpop.permute.xlu0 %1896
        %v1900 = vsel %vm706, %v1895, 0
        %1902 = vmatprep.subr.mxu0 0.0
        %1903 = vmatpush1.msra.mxu0 %v1897
        %1904 = vmatprep.subr.mxu0 0.0
        %1905 = vmatpush1.msra.mxu0 0.0
        %1906 = vmatprep.subr.mxu0 0.0
        %1907 = vmatpush1.msra.mxu0 0.0
        %1908 = vmatprep.subr.mxu0 0.0
        %1909 = vmatpush1.msra.mxu0 0.0
        %1910 = vmatprep.subr.mxu0 0.0
        %1911 = vmatpush1.msra.mxu0 0.0
        %1912 = vmatprep.subr.mxu0 0.0
        %1913 = vmatpush1.msra.mxu0 0.0
        %1914 = vmatprep.subr.mxu0 0.0
        %1915 = vmatpush1.msra.mxu0 0.0
        %1916 = vmatprep.subr.mxu0 0.0
        %1917 = vmatpush1.msra.mxu0 0.0
        %1918 = vmatprep.subr.mxu0 0.0
        %1919 = vmatpush1.msra.mxu0 0.0
        %1920 = vmatprep.subr.mxu0 0.0
        %1921 = vmatpush1.msra.mxu0 0.0
        %1922 = vmatprep.subr.mxu0 0.0
        %1923 = vmatpush1.msra.mxu0 0.0
        %1924 = vmatprep.subr.mxu0 0.0
        %1925 = vmatpush1.msra.mxu0 0.0
        %1926 = vmatprep.subr.mxu0 0.0
        %1927 = vmatpush1.msra.mxu0 0.0
        %1928 = vmatprep.subr.mxu0 0.0
        %1929 = vmatpush1.msra.mxu0 0.0
        %1930 = vmatprep.subr.mxu0 0.0
        %1931 = vmatpush1.msra.mxu0 0.0
        %1932 = vmatprep.subr.mxu0 0.0
        %1933 = vmatpush1.msra.mxu0 0.0
        %1934 = vmatprep.subr.mxu0 0.0
        %1935 = vmatpush1.msra.mxu0 0.0
        %1936 = vmatprep.subr.mxu0 0.0
        %1937 = vmatpush1.msra.mxu0 0.0
        %1938 = vmatprep.subr.mxu0 0.0
        %1939 = vmatpush1.msra.mxu0 0.0
        %1940 = vmatprep.subr.mxu0 0.0
        %1941 = vmatpush1.msra.mxu0 0.0
        %1942 = vmatprep.subr.mxu0 0.0
        %1943 = vmatpush1.msra.mxu0 0.0
        %1944 = vmatprep.subr.mxu0 0.0
        %1945 = vmatpush1.msra.mxu0 0.0
        %1946 = vmatprep.subr.mxu0 0.0
        %1947 = vmatpush1.msra.mxu0 0.0
        %1948 = vmatprep.subr.mxu0 0.0
        %1949 = vmatpush1.msra.mxu0 0.0
        %1950 = vmatprep.subr.mxu0 0.0
        %1951 = vmatpush1.msra.mxu0 0.0
        %1952 = vmatprep.subr.mxu0 0.0
        %1953 = vmatpush1.msra.mxu0 0.0
        %1954 = vmatprep.subr.mxu0 0.0
        %1955 = vmatpush1.msra.mxu0 0.0
        %1956 = vmatprep.subr.mxu0 0.0
        %1957 = vmatpush1.msra.mxu0 0.0
        %1958 = vmatprep.subr.mxu0 0.0
        %1959 = vmatpush1.msra.mxu0 0.0
        %1960 = vmatprep.subr.mxu0 0.0
        %1961 = vmatpush1.msra.mxu0 0.0
        %1962 = vmatprep.subr.mxu0 0.0
        %1963 = vmatpush1.msra.mxu0 0.0
        %1964 = vmatprep.subr.mxu0 0.0
        %1965 = vmatpush1.msra.mxu0 0.0
        %1966 = vmatprep.mubr.f32.mxu0 0.0
        %1967 = vmatmul.mubr.f32.gmra.mrb[0].mxu0 %v1900
        %v1968 = vpop.f32.mrb[0].mxu0
        %v1969 = vadd.f32 0.0, %v1968
        %v1970 = vpop.f32.mrb[0].mxu0
        %1971 = vdwg.mxu0
        %1972 = vrot.lane.b32.xlu0 %v1803, 120
        %v1973 = vpop.permute.xlu0 %1972
        %1974 = vrot.lane.b32.xlu0 %v1803, 88
        %v1975 = vpop.permute.xlu0 %1974
        %v1976 = vsel %vm706, %v1973, 0
        %v1978 = vsel %vm706, %v1975, 0
        %1980 = vmatprep.subr.mxu0 0.0
        %1981 = vmatpush1.xpose.msra.mxu0 %v1978
        %1982 = vmatprep.subr.mxu0 0.0
        %1983 = vmatpush1.xpose.msra.mxu0 0.0
        %1984 = vmatprep.subr.mxu0 0.0
        %1985 = vmatpush1.xpose.msra.mxu0 0.0
        %1986 = vmatprep.subr.mxu0 0.0
        %1987 = vmatpush1.xpose.msra.mxu0 0.0
        %1988 = vmatprep.subr.mxu0 0.0
        %1989 = vmatpush1.xpose.msra.mxu0 0.0
        %1990 = vmatprep.subr.mxu0 0.0
        %1991 = vmatpush1.xpose.msra.mxu0 0.0
        %1992 = vmatprep.subr.mxu0 0.0
        %1993 = vmatpush1.xpose.msra.mxu0 0.0
        %1994 = vmatprep.subr.mxu0 0.0
        %1995 = vmatpush1.xpose.msra.mxu0 0.0
        %1996 = vmatprep.subr.mxu0 0.0
        %1997 = vmatpush1.xpose.msra.mxu0 0.0
        %1998 = vmatprep.subr.mxu0 0.0
        %1999 = vmatpush1.xpose.msra.mxu0 0.0
        %2000 = vmatprep.subr.mxu0 0.0
        %2001 = vmatpush1.xpose.msra.mxu0 0.0
        %2002 = vmatprep.subr.mxu0 0.0
        %2003 = vmatpush1.xpose.msra.mxu0 0.0
        %2004 = vmatprep.subr.mxu0 0.0
        %2005 = vmatpush1.xpose.msra.mxu0 0.0
        %2006 = vmatprep.subr.mxu0 0.0
        %2007 = vmatpush1.xpose.msra.mxu0 0.0
        %2008 = vmatprep.subr.mxu0 0.0
        %2009 = vmatpush1.xpose.msra.mxu0 0.0
        %2010 = vmatprep.subr.mxu0 0.0
        %2011 = vmatpush1.xpose.msra.mxu0 0.0
        %2012 = vmatprep.subr.mxu0 0.0
        %2013 = vmatpush1.xpose.msra.mxu0 0.0
        %2014 = vmatprep.subr.mxu0 0.0
        %2015 = vmatpush1.xpose.msra.mxu0 0.0
        %2016 = vmatprep.subr.mxu0 0.0
        %2017 = vmatpush1.xpose.msra.mxu0 0.0
        %2018 = vmatprep.subr.mxu0 0.0
        %2019 = vmatpush1.xpose.msra.mxu0 0.0
        %2020 = vmatprep.subr.mxu0 0.0
        %2021 = vmatpush1.xpose.msra.mxu0 0.0
        %2022 = vmatprep.subr.mxu0 0.0
        %2023 = vmatpush1.xpose.msra.mxu0 0.0
        %2024 = vmatprep.subr.mxu0 0.0
        %2025 = vmatpush1.xpose.msra.mxu0 0.0
        %2026 = vmatprep.subr.mxu0 0.0
        %2027 = vmatpush1.xpose.msra.mxu0 0.0
        %2028 = vmatprep.subr.mxu0 0.0
        %2029 = vmatpush1.xpose.msra.mxu0 0.0
        %2030 = vmatprep.subr.mxu0 0.0
        %2031 = vmatpush1.xpose.msra.mxu0 0.0
        %2032 = vmatprep.subr.mxu0 0.0
        %2033 = vmatpush1.xpose.msra.mxu0 0.0
        %2034 = vmatprep.subr.mxu0 0.0
        %2035 = vmatpush1.xpose.msra.mxu0 0.0
        %2036 = vmatprep.subr.mxu0 0.0
        %2037 = vmatpush1.xpose.msra.mxu0 0.0
        %2038 = vmatprep.subr.mxu0 0.0
        %2039 = vmatpush1.xpose.msra.mxu0 0.0
        %2040 = vmatprep.subr.mxu0 0.0
        %2041 = vmatpush1.xpose.msra.mxu0 0.0
        %2042 = vmatprep.subr.mxu0 0.0
        %2043 = vmatpush1.xpose.msra.mxu0 0.0
        %2044 = vmatprep.mubr.f32.mxu0 0.0
        %2045 = vmatmul.mubr.f32.gmra.mrb[0].mxu0 %v1976
        %v2046 = vpop.f32.mrb[0].mxu0
        %v2047 = vadd.f32 0.0, %v2046
        %v2048 = vpop.f32.mrb[0].mxu0
        %2049 = vdwg.mxu0
        %v2050 = vmul.f32 %v2047, 0.35355338
        %v2051 = vadd.f32 %v2050, %v786
        %v2052 = vsel %vm706, %v2051, -inf
        %2053 = vmax.xlane.f32.xlu0 %v2052
        %v2054 = vpop.xlane.xlu0 %2053
        %v2055 = vsub.f32 %v2051, %v2054
        %v2056 = vmul.f32 %v2055, 1.442695
        %v2057 = vpow.pop %v2056
        %v2058 = vsel %vm706, %v2057, 0.0
        %2059 = vadd.xlane.f32.xlu0 %v2058
        %v2060 = vpop.xlane.xlu0 %2059
        %v2061 = vrcp.pop %v2060
        %v2062 = vmul.f32 %v2057, %v2061
        %2063 = vrot.lane.b32.xlu0 %v1803, 56
        %v2064 = vpop.permute.xlu0 %2063
        %v2067 = vsel %vm706, %v2062, 0
        %2069 = vmatprep.subr.mxu0 0.0
        %2070 = vmatpush1.msra.mxu0 %v2064
        %2071 = vmatprep.subr.mxu0 0.0
        %2072 = vmatpush1.msra.mxu0 0.0
        %2073 = vmatprep.subr.mxu0 0.0
        %2074 = vmatpush1.msra.mxu0 0.0
        %2075 = vmatprep.subr.mxu0 0.0
        %2076 = vmatpush1.msra.mxu0 0.0
        %2077 = vmatprep.subr.mxu0 0.0
        %2078 = vmatpush1.msra.mxu0 0.0
        %2079 = vmatprep.subr.mxu0 0.0
        %2080 = vmatpush1.msra.mxu0 0.0
        %2081 = vmatprep.subr.mxu0 0.0
        %2082 = vmatpush1.msra.mxu0 0.0
        %2083 = vmatprep.subr.mxu0 0.0
        %2084 = vmatpush1.msra.mxu0 0.0
        %2085 = vmatprep.subr.mxu0 0.0
        %2086 = vmatpush1.msra.mxu0 0.0
        %2087 = vmatprep.subr.mxu0 0.0
        %2088 = vmatpush1.msra.mxu0 0.0
        %2089 = vmatprep.subr.mxu0 0.0
        %2090 = vmatpush1.msra.mxu0 0.0
        %2091 = vmatprep.subr.mxu0 0.0
        %2092 = vmatpush1.msra.mxu0 0.0
        %2093 = vmatprep.subr.mxu0 0.0
        %2094 = vmatpush1.msra.mxu0 0.0
        %2095 = vmatprep.subr.mxu0 0.0
        %2096 = vmatpush1.msra.mxu0 0.0
        %2097 = vmatprep.subr.mxu0 0.0
        %2098 = vmatpush1.msra.mxu0 0.0
        %2099 = vmatprep.subr.mxu0 0.0
        %2100 = vmatpush1.msra.mxu0 0.0
        %2101 = vmatprep.subr.mxu0 0.0
        %2102 = vmatpush1.msra.mxu0 0.0
        %2103 = vmatprep.subr.mxu0 0.0
        %2104 = vmatpush1.msra.mxu0 0.0
        %2105 = vmatprep.subr.mxu0 0.0
        %2106 = vmatpush1.msra.mxu0 0.0
        %2107 = vmatprep.subr.mxu0 0.0
        %2108 = vmatpush1.msra.mxu0 0.0
        %2109 = vmatprep.subr.mxu0 0.0
        %2110 = vmatpush1.msra.mxu0 0.0
        %2111 = vmatprep.subr.mxu0 0.0
        %2112 = vmatpush1.msra.mxu0 0.0
        %2113 = vmatprep.subr.mxu0 0.0
        %2114 = vmatpush1.msra.mxu0 0.0
        %2115 = vmatprep.subr.mxu0 0.0
        %2116 = vmatpush1.msra.mxu0 0.0
        %2117 = vmatprep.subr.mxu0 0.0
        %2118 = vmatpush1.msra.mxu0 0.0
        %2119 = vmatprep.subr.mxu0 0.0
        %2120 = vmatpush1.msra.mxu0 0.0
        %2121 = vmatprep.subr.mxu0 0.0
        %2122 = vmatpush1.msra.mxu0 0.0
        %2123 = vmatprep.subr.mxu0 0.0
        %2124 = vmatpush1.msra.mxu0 0.0
        %2125 = vmatprep.subr.mxu0 0.0
        %2126 = vmatpush1.msra.mxu0 0.0
        %2127 = vmatprep.subr.mxu0 0.0
        %2128 = vmatpush1.msra.mxu0 0.0
        %2129 = vmatprep.subr.mxu0 0.0
        %2130 = vmatpush1.msra.mxu0 0.0
        %2131 = vmatprep.subr.mxu0 0.0
        %2132 = vmatpush1.msra.mxu0 0.0
        %2133 = vmatprep.mubr.f32.mxu0 0.0
        %2134 = vmatmul.mubr.f32.gmra.mrb[0].mxu0 %v2067
        %v2135 = vpop.f32.mrb[0].mxu0
        %v2136 = vadd.f32 0.0, %v2135
        %v2137 = vpop.f32.mrb[0].mxu0
        %2138 = vdwg.mxu0
        %2139 = vrot.lane.b32.xlu0 %v1803, 112
        %v2140 = vpop.permute.xlu0 %2139
        %2141 = vrot.lane.b32.xlu0 %v1803, 80
        %v2142 = vpop.permute.xlu0 %2141
        %v2143 = vsel %vm706, %v2140, 0
        %v2145 = vsel %vm706, %v2142, 0
        %2147 = vmatprep.subr.mxu0 0.0
        %2148 = vmatpush1.xpose.msra.mxu0 %v2145
        %2149 = vmatprep.subr.mxu0 0.0
        %2150 = vmatpush1.xpose.msra.mxu0 0.0
        %2151 = vmatprep.subr.mxu0 0.0
        %2152 = vmatpush1.xpose.msra.mxu0 0.0
        %2153 = vmatprep.subr.mxu0 0.0
        %2154 = vmatpush1.xpose.msra.mxu0 0.0
        %2155 = vmatprep.subr.mxu0 0.0
        %2156 = vmatpush1.xpose.msra.mxu0 0.0
        %2157 = vmatprep.subr.mxu0 0.0
        %2158 = vmatpush1.xpose.msra.mxu0 0.0
        %2159 = vmatprep.subr.mxu0 0.0
        %2160 = vmatpush1.xpose.msra.mxu0 0.0
        %2161 = vmatprep.subr.mxu0 0.0
        %2162 = vmatpush1.xpose.msra.mxu0 0.0
        %2163 = vmatprep.subr.mxu0 0.0
        %2164 = vmatpush1.xpose.msra.mxu0 0.0
        %2165 = vmatprep.subr.mxu0 0.0
        %2166 = vmatpush1.xpose.msra.mxu0 0.0
        %2167 = vmatprep.subr.mxu0 0.0
        %2168 = vmatpush1.xpose.msra.mxu0 0.0
        %2169 = vmatprep.subr.mxu0 0.0
        %2170 = vmatpush1.xpose.msra.mxu0 0.0
        %2171 = vmatprep.subr.mxu0 0.0
        %2172 = vmatpush1.xpose.msra.mxu0 0.0
        %2173 = vmatprep.subr.mxu0 0.0
        %2174 = vmatpush1.xpose.msra.mxu0 0.0
        %2175 = vmatprep.subr.mxu0 0.0
        %2176 = vmatpush1.xpose.msra.mxu0 0.0
        %2177 = vmatprep.subr.mxu0 0.0
        %2178 = vmatpush1.xpose.msra.mxu0 0.0
        %2179 = vmatprep.subr.mxu0 0.0
        %2180 = vmatpush1.xpose.msra.mxu0 0.0
        %2181 = vmatprep.subr.mxu0 0.0
        %2182 = vmatpush1.xpose.msra.mxu0 0.0
        %2183 = vmatprep.subr.mxu0 0.0
        %2184 = vmatpush1.xpose.msra.mxu0 0.0
        %2185 = vmatprep.subr.mxu0 0.0
        %2186 = vmatpush1.xpose.msra.mxu0 0.0
        %2187 = vmatprep.subr.mxu0 0.0
        %2188 = vmatpush1.xpose.msra.mxu0 0.0
        %2189 = vmatprep.subr.mxu0 0.0
        %2190 = vmatpush1.xpose.msra.mxu0 0.0
        %2191 = vmatprep.subr.mxu0 0.0
        %2192 = vmatpush1.xpose.msra.mxu0 0.0
        %2193 = vmatprep.subr.mxu0 0.0
        %2194 = vmatpush1.xpose.msra.mxu0 0.0
        %2195 = vmatprep.subr.mxu0 0.0
        %2196 = vmatpush1.xpose.msra.mxu0 0.0
        %2197 = vmatprep.subr.mxu0 0.0
        %2198 = vmatpush1.xpose.msra.mxu0 0.0
        %2199 = vmatprep.subr.mxu0 0.0
        %2200 = vmatpush1.xpose.msra.mxu0 0.0
        %2201 = vmatprep.subr.mxu0 0.0
        %2202 = vmatpush1.xpose.msra.mxu0 0.0
        %2203 = vmatprep.subr.mxu0 0.0
        %2204 = vmatpush1.xpose.msra.mxu0 0.0
        %2205 = vmatprep.subr.mxu0 0.0
        %2206 = vmatpush1.xpose.msra.mxu0 0.0
        %2207 = vmatprep.subr.mxu0 0.0
        %2208 = vmatpush1.xpose.msra.mxu0 0.0
        %2209 = vmatprep.subr.mxu0 0.0
        %2210 = vmatpush1.xpose.msra.mxu0 0.0
        %2211 = vmatprep.mubr.f32.mxu0 0.0
        %2212 = vmatmul.mubr.f32.gmra.mrb[0].mxu0 %v2143
        %v2213 = vpop.f32.mrb[0].mxu0
        %v2214 = vadd.f32 0.0, %v2213
        %v2215 = vpop.f32.mrb[0].mxu0
        %2216 = vdwg.mxu0
        %v2217 = vmul.f32 %v2214, 0.35355338
        %v2218 = vadd.f32 %v2217, %v786
        %v2219 = vsel %vm706, %v2218, -inf
        %2220 = vmax.xlane.f32.xlu0 %v2219
        %v2221 = vpop.xlane.xlu0 %2220
        %v2222 = vsub.f32 %v2218, %v2221
        %v2223 = vmul.f32 %v2222, 1.442695
        %v2224 = vpow.pop %v2223
        %v2225 = vsel %vm706, %v2224, 0.0
        %2226 = vadd.xlane.f32.xlu0 %v2225
        %v2227 = vpop.xlane.xlu0 %2226
        %v2228 = vrcp.pop %v2227
        %v2229 = vmul.f32 %v2224, %v2228
        %2230 = vrot.lane.b32.xlu0 %v1803, 48
        %v2231 = vpop.permute.xlu0 %2230
        %v2234 = vsel %vm706, %v2229, 0
        %2236 = vmatprep.subr.mxu0 0.0
        %2237 = vmatpush1.msra.mxu0 %v2231
        %2238 = vmatprep.subr.mxu0 0.0
        %2239 = vmatpush1.msra.mxu0 0.0
        %2240 = vmatprep.subr.mxu0 0.0
        %2241 = vmatpush1.msra.mxu0 0.0
        %2242 = vmatprep.subr.mxu0 0.0
        %2243 = vmatpush1.msra.mxu0 0.0
        %2244 = vmatprep.subr.mxu0 0.0
        %2245 = vmatpush1.msra.mxu0 0.0
        %2246 = vmatprep.subr.mxu0 0.0
        %2247 = vmatpush1.msra.mxu0 0.0
        %2248 = vmatprep.subr.mxu0 0.0
        %2249 = vmatpush1.msra.mxu0 0.0
        %2250 = vmatprep.subr.mxu0 0.0
        %2251 = vmatpush1.msra.mxu0 0.0
        %2252 = vmatprep.subr.mxu0 0.0
        %2253 = vmatpush1.msra.mxu0 0.0
        %2254 = vmatprep.subr.mxu0 0.0
        %2255 = vmatpush1.msra.mxu0 0.0
        %2256 = vmatprep.subr.mxu0 0.0
        %2257 = vmatpush1.msra.mxu0 0.0
        %2258 = vmatprep.subr.mxu0 0.0
        %2259 = vmatpush1.msra.mxu0 0.0
        %2260 = vmatprep.subr.mxu0 0.0
        %2261 = vmatpush1.msra.mxu0 0.0
        %2262 = vmatprep.subr.mxu0 0.0
        %2263 = vmatpush1.msra.mxu0 0.0
        %2264 = vmatprep.subr.mxu0 0.0
        %2265 = vmatpush1.msra.mxu0 0.0
        %2266 = vmatprep.subr.mxu0 0.0
        %2267 = vmatpush1.msra.mxu0 0.0
        %2268 = vmatprep.subr.mxu0 0.0
        %2269 = vmatpush1.msra.mxu0 0.0
        %2270 = vmatprep.subr.mxu0 0.0
        %2271 = vmatpush1.msra.mxu0 0.0
        %2272 = vmatprep.subr.mxu0 0.0
        %2273 = vmatpush1.msra.mxu0 0.0
        %2274 = vmatprep.subr.mxu0 0.0
        %2275 = vmatpush1.msra.mxu0 0.0
        %2276 = vmatprep.subr.mxu0 0.0
        %2277 = vmatpush1.msra.mxu0 0.0
        %2278 = vmatprep.subr.mxu0 0.0
        %2279 = vmatpush1.msra.mxu0 0.0
        %2280 = vmatprep.subr.mxu0 0.0
        %2281 = vmatpush1.msra.mxu0 0.0
        %2282 = vmatprep.subr.mxu0 0.0
        %2283 = vmatpush1.msra.mxu0 0.0
        %2284 = vmatprep.subr.mxu0 0.0
        %2285 = vmatpush1.msra.mxu0 0.0
        %2286 = vmatprep.subr.mxu0 0.0
        %2287 = vmatpush1.msra.mxu0 0.0
        %2288 = vmatprep.subr.mxu0 0.0
        %2289 = vmatpush1.msra.mxu0 0.0
        %2290 = vmatprep.subr.mxu0 0.0
        %2291 = vmatpush1.msra.mxu0 0.0
        %2292 = vmatprep.subr.mxu0 0.0
        %2293 = vmatpush1.msra.mxu0 0.0
        %2294 = vmatprep.subr.mxu0 0.0
        %2295 = vmatpush1.msra.mxu0 0.0
        %2296 = vmatprep.subr.mxu0 0.0
        %2297 = vmatpush1.msra.mxu0 0.0
        %2298 = vmatprep.subr.mxu0 0.0
        %2299 = vmatpush1.msra.mxu0 0.0
        %2300 = vmatprep.mubr.f32.mxu0 0.0
        %2301 = vmatmul.mubr.f32.gmra.mrb[0].mxu0 %v2234
        %v2302 = vpop.f32.mrb[0].mxu0
        %v2303 = vadd.f32 0.0, %v2302
        %v2304 = vpop.f32.mrb[0].mxu0
        %2305 = vdwg.mxu0
        %2306 = vrot.lane.b32.xlu0 %v1803, 104
        %v2307 = vpop.permute.xlu0 %2306
        %2308 = vrot.lane.b32.xlu0 %v1803, 72
        %v2309 = vpop.permute.xlu0 %2308
        %v2310 = vsel %vm706, %v2307, 0
        %v2312 = vsel %vm706, %v2309, 0
        %2314 = vmatprep.subr.mxu0 0.0
        %2315 = vmatpush1.xpose.msra.mxu0 %v2312
        %2316 = vmatprep.subr.mxu0 0.0
        %2317 = vmatpush1.xpose.msra.mxu0 0.0
        %2318 = vmatprep.subr.mxu0 0.0
        %2319 = vmatpush1.xpose.msra.mxu0 0.0
        %2320 = vmatprep.subr.mxu0 0.0
        %2321 = vmatpush1.xpose.msra.mxu0 0.0
        %2322 = vmatprep.subr.mxu0 0.0
        %2323 = vmatpush1.xpose.msra.mxu0 0.0
        %2324 = vmatprep.subr.mxu0 0.0
        %2325 = vmatpush1.xpose.msra.mxu0 0.0
        %2326 = vmatprep.subr.mxu0 0.0
        %2327 = vmatpush1.xpose.msra.mxu0 0.0
        %2328 = vmatprep.subr.mxu0 0.0
        %2329 = vmatpush1.xpose.msra.mxu0 0.0
        %2330 = vmatprep.subr.mxu0 0.0
        %2331 = vmatpush1.xpose.msra.mxu0 0.0
        %2332 = vmatprep.subr.mxu0 0.0
        %2333 = vmatpush1.xpose.msra.mxu0 0.0
        %2334 = vmatprep.subr.mxu0 0.0
        %2335 = vmatpush1.xpose.msra.mxu0 0.0
        %2336 = vmatprep.subr.mxu0 0.0
        %2337 = vmatpush1.xpose.msra.mxu0 0.0
        %2338 = vmatprep.subr.mxu0 0.0
        %2339 = vmatpush1.xpose.msra.mxu0 0.0
        %2340 = vmatprep.subr.mxu0 0.0
        %2341 = vmatpush1.xpose.msra.mxu0 0.0
        %2342 = vmatprep.subr.mxu0 0.0
        %2343 = vmatpush1.xpose.msra.mxu0 0.0
        %2344 = vmatprep.subr.mxu0 0.0
        %2345 = vmatpush1.xpose.msra.mxu0 0.0
        %2346 = vmatprep.subr.mxu0 0.0
        %2347 = vmatpush1.xpose.msra.mxu0 0.0
        %2348 = vmatprep.subr.mxu0 0.0
        %2349 = vmatpush1.xpose.msra.mxu0 0.0
        %2350 = vmatprep.subr.mxu0 0.0
        %2351 = vmatpush1.xpose.msra.mxu0 0.0
        %2352 = vmatprep.subr.mxu0 0.0
        %2353 = vmatpush1.xpose.msra.mxu0 0.0
        %2354 = vmatprep.subr.mxu0 0.0
        %2355 = vmatpush1.xpose.msra.mxu0 0.0
        %2356 = vmatprep.subr.mxu0 0.0
        %2357 = vmatpush1.xpose.msra.mxu0 0.0
        %2358 = vmatprep.subr.mxu0 0.0
        %2359 = vmatpush1.xpose.msra.mxu0 0.0
        %2360 = vmatprep.subr.mxu0 0.0
        %2361 = vmatpush1.xpose.msra.mxu0 0.0
        %2362 = vmatprep.subr.mxu0 0.0
        %2363 = vmatpush1.xpose.msra.mxu0 0.0
        %2364 = vmatprep.subr.mxu0 0.0
        %2365 = vmatpush1.xpose.msra.mxu0 0.0
        %2366 = vmatprep.subr.mxu0 0.0
        %2367 = vmatpush1.xpose.msra.mxu0 0.0
        %2368 = vmatprep.subr.mxu0 0.0
        %2369 = vmatpush1.xpose.msra.mxu0 0.0
        %2370 = vmatprep.subr.mxu0 0.0
        %2371 = vmatpush1.xpose.msra.mxu0 0.0
        %2372 = vmatprep.subr.mxu0 0.0
        %2373 = vmatpush1.xpose.msra.mxu0 0.0
        %2374 = vmatprep.subr.mxu0 0.0
        %2375 = vmatpush1.xpose.msra.mxu0 0.0
        %2376 = vmatprep.subr.mxu0 0.0
        %2377 = vmatpush1.xpose.msra.mxu0 0.0
        %2378 = vmatprep.mubr.f32.mxu0 0.0
        %2379 = vmatmul.mubr.f32.gmra.mrb[0].mxu0 %v2310
        %v2380 = vpop.f32.mrb[0].mxu0
        %v2381 = vadd.f32 0.0, %v2380
        %v2382 = vpop.f32.mrb[0].mxu0
        %2383 = vdwg.mxu0
        %v2384 = vmul.f32 %v2381, 0.35355338
        %v2385 = vadd.f32 %v2384, %v786
        %v2386 = vsel %vm706, %v2385, -inf
        %2387 = vmax.xlane.f32.xlu0 %v2386
        %v2388 = vpop.xlane.xlu0 %2387
        %v2389 = vsub.f32 %v2385, %v2388
        %v2390 = vmul.f32 %v2389, 1.442695
        %v2391 = vpow.pop %v2390
        %v2392 = vsel %vm706, %v2391, 0.0
        %2393 = vadd.xlane.f32.xlu0 %v2392
        %v2394 = vpop.xlane.xlu0 %2393
        %v2395 = vrcp.pop %v2394
        %v2396 = vmul.f32 %v2391, %v2395
        %2397 = vrot.lane.b32.xlu0 %v1803, 40
        %v2398 = vpop.permute.xlu0 %2397
        %v2401 = vsel %vm706, %v2396, 0
        %2403 = vmatprep.subr.mxu0 0.0
        %2404 = vmatpush1.msra.mxu0 %v2398
        %2405 = vmatprep.subr.mxu0 0.0
        %2406 = vmatpush1.msra.mxu0 0.0
        %2407 = vmatprep.subr.mxu0 0.0
        %2408 = vmatpush1.msra.mxu0 0.0
        %2409 = vmatprep.subr.mxu0 0.0
        %2410 = vmatpush1.msra.mxu0 0.0
        %2411 = vmatprep.subr.mxu0 0.0
        %2412 = vmatpush1.msra.mxu0 0.0
        %2413 = vmatprep.subr.mxu0 0.0
        %2414 = vmatpush1.msra.mxu0 0.0
        %2415 = vmatprep.subr.mxu0 0.0
        %2416 = vmatpush1.msra.mxu0 0.0
        %2417 = vmatprep.subr.mxu0 0.0
        %2418 = vmatpush1.msra.mxu0 0.0
        %2419 = vmatprep.subr.mxu0 0.0
        %2420 = vmatpush1.msra.mxu0 0.0
        %2421 = vmatprep.subr.mxu0 0.0
        %2422 = vmatpush1.msra.mxu0 0.0
        %2423 = vmatprep.subr.mxu0 0.0
        %2424 = vmatpush1.msra.mxu0 0.0
        %2425 = vmatprep.subr.mxu0 0.0
        %2426 = vmatpush1.msra.mxu0 0.0
        %2427 = vmatprep.subr.mxu0 0.0
        %2428 = vmatpush1.msra.mxu0 0.0
        %2429 = vmatprep.subr.mxu0 0.0
        %2430 = vmatpush1.msra.mxu0 0.0
        %2431 = vmatprep.subr.mxu0 0.0
        %2432 = vmatpush1.msra.mxu0 0.0
        %2433 = vmatprep.subr.mxu0 0.0
        %2434 = vmatpush1.msra.mxu0 0.0
        %2435 = vmatprep.subr.mxu0 0.0
        %2436 = vmatpush1.msra.mxu0 0.0
        %2437 = vmatprep.subr.mxu0 0.0
        %2438 = vmatpush1.msra.mxu0 0.0
        %2439 = vmatprep.subr.mxu0 0.0
        %2440 = vmatpush1.msra.mxu0 0.0
        %2441 = vmatprep.subr.mxu0 0.0
        %2442 = vmatpush1.msra.mxu0 0.0
        %2443 = vmatprep.subr.mxu0 0.0
        %2444 = vmatpush1.msra.mxu0 0.0
        %2445 = vmatprep.subr.mxu0 0.0
        %2446 = vmatpush1.msra.mxu0 0.0
        %2447 = vmatprep.subr.mxu0 0.0
        %2448 = vmatpush1.msra.mxu0 0.0
        %2449 = vmatprep.subr.mxu0 0.0
        %2450 = vmatpush1.msra.mxu0 0.0
        %2451 = vmatprep.subr.mxu0 0.0
        %2452 = vmatpush1.msra.mxu0 0.0
        %2453 = vmatprep.subr.mxu0 0.0
        %2454 = vmatpush1.msra.mxu0 0.0
        %2455 = vmatprep.subr.mxu0 0.0
        %2456 = vmatpush1.msra.mxu0 0.0
        %2457 = vmatprep.subr.mxu0 0.0
        %2458 = vmatpush1.msra.mxu0 0.0
        %2459 = vmatprep.subr.mxu0 0.0
        %2460 = vmatpush1.msra.mxu0 0.0
        %2461 = vmatprep.subr.mxu0 0.0
        %2462 = vmatpush1.msra.mxu0 0.0
        %2463 = vmatprep.subr.mxu0 0.0
        %2464 = vmatpush1.msra.mxu0 0.0
        %2465 = vmatprep.subr.mxu0 0.0
        %2466 = vmatpush1.msra.mxu0 0.0
        %2467 = vmatprep.mubr.f32.mxu0 0.0
        %2468 = vmatmul.mubr.f32.gmra.mrb[0].mxu0 %v2401
        %v2469 = vpop.f32.mrb[0].mxu0
        %v2470 = vadd.f32 0.0, %v2469
        %v2471 = vpop.f32.mrb[0].mxu0
        %2472 = vdwg.mxu0
        %2474 = vrot.lane.b32.xlu0 %v2136, 8
        %v2475 = vpop.permute.xlu0 %2474
        %2478 = vrot.lane.b32.xlu0 %v2303, 16
        %v2479 = vpop.permute.xlu0 %2478
        %2482 = vrot.lane.b32.xlu0 %v2470, 24
        %v2483 = vpop.permute.xlu0 %2482
        %v2485 = vsel %vm706, %v1969, %v2475
        %v2486 = vsel %vm1390, %v2485, %v2479
        %v2487 = vsel %vm1392, %v2486, %v2483
        %s2488 = scalar_lea.vmem %s6, 32
        %v2489 = vld [vmem:[%s2488] sm:$0xff]
        %v2490 = vld [vmem:[%s2488 + $0x8] sm:$0xff]
        %v2491 = vld [vmem:[%s2488 + $0x10] sm:$0xff]
        %v2492 = vld [vmem:[%s2488 + $0x18] sm:$0xff]
        %s2493 = scalar_lea.vmem %s7, 1
        %v2494 = vld [vmem:[%s2493] sm:$0x1]
        %v2496 = vlaneseq
        %v2497 = vshrl.u32 %v2496, 7
        %v2498 = vsub.s32 0, %v2497
        %v2499 = vrot.slane %v2494, %v2498
        %v2502 = vsel %vm587, %v2487, 0
        %2504 = vmatprep.subr.mxu0 0.0
        %2505 = vmatpush1.msra.mxu0 %v2489
        %2506 = vmatprep.subr.mxu0 0.0
        %2507 = vmatpush1.msra.mxu0 %v2490
        %2508 = vmatprep.subr.mxu0 0.0
        %2509 = vmatpush1.msra.mxu0 %v2491
        %2510 = vmatprep.subr.mxu0 0.0
        %2511 = vmatpush1.msra.mxu0 %v2492
        %2512 = vmatprep.subr.mxu0 0.0
        %2513 = vmatpush1.msra.mxu0 0.0
        %2514 = vmatprep.subr.mxu0 0.0
        %2515 = vmatpush1.msra.mxu0 0.0
        %2516 = vmatprep.subr.mxu0 0.0
        %2517 = vmatpush1.msra.mxu0 0.0
        %2518 = vmatprep.subr.mxu0 0.0
        %2519 = vmatpush1.msra.mxu0 0.0
        %2520 = vmatprep.subr.mxu0 0.0
        %2521 = vmatpush1.msra.mxu0 0.0
        %2522 = vmatprep.subr.mxu0 0.0
        %2523 = vmatpush1.msra.mxu0 0.0
        %2524 = vmatprep.subr.mxu0 0.0
        %2525 = vmatpush1.msra.mxu0 0.0
        %2526 = vmatprep.subr.mxu0 0.0
        %2527 = vmatpush1.msra.mxu0 0.0
        %2528 = vmatprep.subr.mxu0 0.0
        %2529 = vmatpush1.msra.mxu0 0.0
        %2530 = vmatprep.subr.mxu0 0.0
        %2531 = vmatpush1.msra.mxu0 0.0
        %2532 = vmatprep.subr.mxu0 0.0
        %2533 = vmatpush1.msra.mxu0 0.0
        %2534 = vmatprep.subr.mxu0 0.0
        %2535 = vmatpush1.msra.mxu0 0.0
        %2536 = vmatprep.subr.mxu0 0.0
        %2537 = vmatpush1.msra.mxu0 0.0
        %2538 = vmatprep.subr.mxu0 0.0
        %2539 = vmatpush1.msra.mxu0 0.0
        %2540 = vmatprep.subr.mxu0 0.0
        %2541 = vmatpush1.msra.mxu0 0.0
        %2542 = vmatprep.subr.mxu0 0.0
        %2543 = vmatpush1.msra.mxu0 0.0
        %2544 = vmatprep.subr.mxu0 0.0
        %2545 = vmatpush1.msra.mxu0 0.0
        %2546 = vmatprep.subr.mxu0 0.0
        %2547 = vmatpush1.msra.mxu0 0.0
        %2548 = vmatprep.subr.mxu0 0.0
        %2549 = vmatpush1.msra.mxu0 0.0
        %2550 = vmatprep.subr.mxu0 0.0
        %2551 = vmatpush1.msra.mxu0 0.0
        %2552 = vmatprep.subr.mxu0 0.0
        %2553 = vmatpush1.msra.mxu0 0.0
        %2554 = vmatprep.subr.mxu0 0.0
        %2555 = vmatpush1.msra.mxu0 0.0
        %2556 = vmatprep.subr.mxu0 0.0
        %2557 = vmatpush1.msra.mxu0 0.0
        %2558 = vmatprep.subr.mxu0 0.0
        %2559 = vmatpush1.msra.mxu0 0.0
        %2560 = vmatprep.subr.mxu0 0.0
        %2561 = vmatpush1.msra.mxu0 0.0
        %2562 = vmatprep.subr.mxu0 0.0
        %2563 = vmatpush1.msra.mxu0 0.0
        %2564 = vmatprep.subr.mxu0 0.0
        %2565 = vmatpush1.msra.mxu0 0.0
        %2566 = vmatprep.subr.mxu0 0.0
        %2567 = vmatpush1.msra.mxu0 0.0
        %2568 = vmatprep.mubr.f32.mxu0 0.0
        %2569 = vmatmul.mubr.f32.gmra.mrb[0].mxu0 %v2502
        %v2570 = vpop.f32.mrb[0].mxu0
        %v2571 = vadd.f32 %v2499, %v2570
        %v2572 = vpop.f32.mrb[0].mxu0
        %2573 = vdwg.mxu0
        %v2574 = vadd.f32 %v2571, %v1719
        %s2575 = scalar_lea.vmem %s8, 1
        %v2576 = vld [vmem:[%s2575] sm:$0x1]
        %s2577 = scalar_lea.vmem %s9, 1
        %v2578 = vld [vmem:[%s2577] sm:$0x1]
        %v2579 = vsel %vm587, %v2574, 0.0
        %2580 = vadd.xlane.f32.xlu0 %v2579
        %v2581 = vpop.xlane.xlu0 %2580
        %v2582 = vmul.f32 %v2581, %v591
        %v2583 = vsub.f32 %v2574, %v2582
        %v2584 = vmul.f32 %v2583, %v2583
        %v2585 = vsel %vm587, %v2584, 0.0
        %2586 = vadd.xlane.f32.xlu0 %v2585
        %v2587 = vpop.xlane.xlu0 %2586
        %v2588 = vmul.f32 %v2587, %v591
        %v2589 = vadd.f32 %v2588, 1e-05
        %v2590 = vrsqrt.pop %v2589
        %v2591 = vmul.f32 %v2583, %v2590
        %v2593 = vlaneseq
        %v2594 = vshrl.u32 %v2593, 7
        %v2595 = vsub.s32 0, %v2594
        %v2596 = vrot.slane %v2576, %v2595
        %v2598 = vmul.f32 %v2591, %v2596
        %v2600 = vlaneseq
        %v2601 = vshrl.u32 %v2600, 7
        %v2602 = vsub.s32 0, %v2601
        %v2603 = vrot.slane %v2578, %v2602
        %v2605 = vadd.f32 %v2598, %v2603
        %s2606 = scalar_lea.vmem %s10, 32
        %v2607 = vld [vmem:[%s2606] sm:$0xff]
        %v2608 = vld [vmem:[%s2606 + $0x8] sm:$0xff]
        %v2609 = vld [vmem:[%s2606 + $0x10] sm:$0xff]
        %v2610 = vld [vmem:[%s2606 + $0x18] sm:$0xff]
        %s2611 = scalar_lea.vmem %s11, 1
        %v2612 = vld [vmem:[%s2611] sm:$0x1]
        %v2614 = vlaneseq
        %v2615 = vshrl.u32 %v2614, 7
        %v2616 = vsub.s32 0, %v2615
        %v2617 = vrot.slane %v2612, %v2616
        %v2620 = vsel %vm587, %v2605, 0
        %2622 = vmatprep.subr.mxu0 0.0
        %2623 = vmatpush1.msra.mxu0 %v2607
        %2624 = vmatprep.subr.mxu0 0.0
        %2625 = vmatpush1.msra.mxu0 %v2608
        %2626 = vmatprep.subr.mxu0 0.0
        %2627 = vmatpush1.msra.mxu0 %v2609
        %2628 = vmatprep.subr.mxu0 0.0
        %2629 = vmatpush1.msra.mxu0 %v2610
        %2630 = vmatprep.subr.mxu0 0.0
        %2631 = vmatpush1.msra.mxu0 0.0
        %2632 = vmatprep.subr.mxu0 0.0
        %2633 = vmatpush1.msra.mxu0 0.0
        %2634 = vmatprep.subr.mxu0 0.0
        %2635 = vmatpush1.msra.mxu0 0.0
        %2636 = vmatprep.subr.mxu0 0.0
        %2637 = vmatpush1.msra.mxu0 0.0
        %2638 = vmatprep.subr.mxu0 0.0
        %2639 = vmatpush1.msra.mxu0 0.0
        %2640 = vmatprep.subr.mxu0 0.0
        %2641 = vmatpush1.msra.mxu0 0.0
        %2642 = vmatprep.subr.mxu0 0.0
        %2643 = vmatpush1.msra.mxu0 0.0
        %2644 = vmatprep.subr.mxu0 0.0
        %2645 = vmatpush1.msra.mxu0 0.0
        %2646 = vmatprep.subr.mxu0 0.0
        %2647 = vmatpush1.msra.mxu0 0.0
        %2648 = vmatprep.subr.mxu0 0.0
        %2649 = vmatpush1.msra.mxu0 0.0
        %2650 = vmatprep.subr.mxu0 0.0
        %2651 = vmatpush1.msra.mxu0 0.0
        %2652 = vmatprep.subr.mxu0 0.0
        %2653 = vmatpush1.msra.mxu0 0.0
        %2654 = vmatprep.subr.mxu0 0.0
        %2655 = vmatpush1.msra.mxu0 0.0
        %2656 = vmatprep.subr.mxu0 0.0
        %2657 = vmatpush1.msra.mxu0 0.0
        %2658 = vmatprep.subr.mxu0 0.0
        %2659 = vmatpush1.msra.mxu0 0.0
        %2660 = vmatprep.subr.mxu0 0.0
        %2661 = vmatpush1.msra.mxu0 0.0
        %2662 = vmatprep.subr.mxu0 0.0
        %2663 = vmatpush1.msra.mxu0 0.0
        %2664 = vmatprep.subr.mxu0 0.0
        %2665 = vmatpush1.msra.mxu0 0.0
        %2666 = vmatprep.subr.mxu0 0.0
        %2667 = vmatpush1.msra.mxu0 0.0
        %2668 = vmatprep.subr.mxu0 0.0
        %2669 = vmatpush1.msra.mxu0 0.0
        %2670 = vmatprep.subr.mxu0 0.0
        %2671 = vmatpush1.msra.mxu0 0.0
        %2672 = vmatprep.subr.mxu0 0.0
        %2673 = vmatpush1.msra.mxu0 0.0
        %2674 = vmatprep.subr.mxu0 0.0
        %2675 = vmatpush1.msra.mxu0 0.0
        %2676 = vmatprep.subr.mxu0 0.0
        %2677 = vmatpush1.msra.mxu0 0.0
        %2678 = vmatprep.subr.mxu0 0.0
        %2679 = vmatpush1.msra.mxu0 0.0
        %2680 = vmatprep.subr.mxu0 0.0
        %2681 = vmatpush1.msra.mxu0 0.0
        %2682 = vmatprep.subr.mxu0 0.0
        %2683 = vmatpush1.msra.mxu0 0.0
        %2684 = vmatprep.subr.mxu0 0.0
        %2685 = vmatpush1.msra.mxu0 0.0
        %2686 = vmatprep.mubr.f32.mxu0 0.0
        %2687 = vmatmul.mubr.f32.gmra.mrb[0].mxu0 %v2620
        %v2688 = vpop.f32.mrb[0].mxu0
        %v2689 = vadd.f32 %v2617, %v2688
        %v2690 = vpop.f32.mrb[0].mxu0
        %2691 = vdwg.mxu0
        %v2692 = vmul.f32 %v2689, 0.5
        %v2693 = vmul.f32 %v2689, 0.044715
        %v2694 = vmul.f32 %v2693, %v2689
        %v2695 = vmul.f32 %v2694, %v2689
        %v2696 = vadd.f32 %v2689, %v2695
        %v2697 = vmul.f32 %v2696, 0.7978846
        %v2698 = vtanh.pop %v2697
        %v2699 = vadd.f32 %v2698, 1.0
        %v2700 = vmul.f32 %v2692, %v2699
        %s2701 = scalar_lea.vmem %s12, 64
        %v2702 = vld [vmem:[%s2701] sm:$0xff]
        %v2703 = vld [vmem:[%s2701 + $0x8] sm:$0xff]
        %v2704 = vld [vmem:[%s2701 + $0x10] sm:$0xff]
        %v2705 = vld [vmem:[%s2701 + $0x18] sm:$0xff]
        %v2706 = vld [vmem:[%s2701 + $0x20] sm:$0xff]
        %v2707 = vld [vmem:[%s2701 + $0x28] sm:$0xff]
        %v2708 = vld [vmem:[%s2701 + $0x30] sm:$0xff]
        %v2709 = vld [vmem:[%s2701 + $0x38] sm:$0xff]
        %s2710 = scalar_lea.vmem %s13, 1
        %v2711 = vld [vmem:[%s2710] sm:$0x1]
        %v2713 = vlaneseq
        %v2714 = vshrl.u32 %v2713, 7
        %v2715 = vsub.s32 0, %v2714
        %v2716 = vrot.slane %v2711, %v2715
        %v2719 = vsel %vm1616, %v2700, 0
        %2721 = vmatprep.subr.mxu0 0.0
        %2722 = vmatpush1.msra.mxu0 %v2702
        %2723 = vmatprep.subr.mxu0 0.0
        %2724 = vmatpush1.msra.mxu0 %v2703
        %2725 = vmatprep.subr.mxu0 0.0
        %2726 = vmatpush1.msra.mxu0 %v2704
        %2727 = vmatprep.subr.mxu0 0.0
        %2728 = vmatpush1.msra.mxu0 %v2705
        %2729 = vmatprep.subr.mxu0 0.0
        %2730 = vmatpush1.msra.mxu0 %v2706
        %2731 = vmatprep.subr.mxu0 0.0
        %2732 = vmatpush1.msra.mxu0 %v2707
        %2733 = vmatprep.subr.mxu0 0.0
        %2734 = vmatpush1.msra.mxu0 %v2708
        %2735 = vmatprep.subr.mxu0 0.0
        %2736 = vmatpush1.msra.mxu0 %v2709
        %2737 = vmatprep.subr.mxu0 0.0
        %2738 = vmatpush1.msra.mxu0 0.0
        %2739 = vmatprep.subr.mxu0 0.0
        %2740 = vmatpush1.msra.mxu0 0.0
        %2741 = vmatprep.subr.mxu0 0.0
        %2742 = vmatpush1.msra.mxu0 0.0
        %2743 = vmatprep.subr.mxu0 0.0
        %2744 = vmatpush1.msra.mxu0 0.0
        %2745 = vmatprep.subr.mxu0 0.0
        %2746 = vmatpush1.msra.mxu0 0.0
        %2747 = vmatprep.subr.mxu0 0.0
        %2748 = vmatpush1.msra.mxu0 0.0
        %2749 = vmatprep.subr.mxu0 0.0
        %2750 = vmatpush1.msra.mxu0 0.0
        %2751 = vmatprep.subr.mxu0 0.0
        %2752 = vmatpush1.msra.mxu0 0.0
        %2753 = vmatprep.subr.mxu0 0.0
        %2754 = vmatpush1.msra.mxu0 0.0
        %2755 = vmatprep.subr.mxu0 0.0
        %2756 = vmatpush1.msra.mxu0 0.0
        %2757 = vmatprep.subr.mxu0 0.0
        %2758 = vmatpush1.msra.mxu0 0.0
        %2759 = vmatprep.subr.mxu0 0.0
        %2760 = vmatpush1.msra.mxu0 0.0
        %2761 = vmatprep.subr.mxu0 0.0
        %2762 = vmatpush1.msra.mxu0 0.0
        %2763 = vmatprep.subr.mxu0 0.0
        %2764 = vmatpush1.msra.mxu0 0.0
        %2765 = vmatprep.subr.mxu0 0.0
        %2766 = vmatpush1.msra.mxu0 0.0
        %2767 = vmatprep.subr.mxu0 0.0
        %2768 = vmatpush1.msra.mxu0 0.0
        %2769 = vmatprep.subr.mxu0 0.0
        %2770 = vmatpush1.msra.mxu0 0.0
        %2771 = vmatprep.subr.mxu0 0.0
        %2772 = vmatpush1.msra.mxu0 0.0
        %2773 = vmatprep.subr.mxu0 0.0
        %2774 = vmatpush1.msra.mxu0 0.0
        %2775 = vmatprep.subr.mxu0 0.0
        %2776 = vmatpush1.msra.mxu0 0.0
        %2777 = vmatprep.subr.mxu0 0.0
        %2778 = vmatpush1.msra.mxu0 0.0
        %2779 = vmatprep.subr.mxu0 0.0
        %2780 = vmatpush1.msra.mxu0 0.0
        %2781 = vmatprep.subr.mxu0 0.0
        %2782 = vmatpush1.msra.mxu0 0.0
        %2783 = vmatprep.subr.mxu0 0.0
        %2784 = vmatpush1.msra.mxu0 0.0
        %2785 = vmatprep.mubr.f32.mxu0 0.0
        %2786 = vmatmul.mubr.f32.gmra.mrb[0].mxu0 %v2719
        %v2787 = vpop.f32.mrb[0].mxu0
        %v2788 = vadd.f32 %v2716, %v2787
        %v2789 = vpop.f32.mrb[0].mxu0
        %2790 = vdwg.mxu0
        %v2791 = vadd.f32 %v2788, %v2605
        %s2792 = scalar_lea.vmem %s14, 1
        %v2793 = vld [vmem:[%s2792] sm:$0x1]
        %s2794 = scalar_lea.vmem %s15, 1
        %v2795 = vld [vmem:[%s2794] sm:$0x1]
        %v2796 = vsel %vm587, %v2791, 0.0
        %2797 = vadd.xlane.f32.xlu0 %v2796
        %v2798 = vpop.xlane.xlu0 %2797
        %v2799 = vmul.f32 %v2798, %v591
        %v2800 = vsub.f32 %v2791, %v2799
        %v2801 = vmul.f32 %v2800, %v2800
        %v2802 = vsel %vm587, %v2801, 0.0
        %2803 = vadd.xlane.f32.xlu0 %v2802
        %v2804 = vpop.xlane.xlu0 %2803
        %v2805 = vmul.f32 %v2804, %v591
        %v2806 = vadd.f32 %v2805, 1e-05
        %v2807 = vrsqrt.pop %v2806
        %v2808 = vmul.f32 %v2800, %v2807
        %v2810 = vlaneseq
        %v2811 = vshrl.u32 %v2810, 7
        %v2812 = vsub.s32 0, %v2811
        %v2813 = vrot.slane %v2793, %v2812
        %v2815 = vmul.f32 %v2808, %v2813
        %v2817 = vlaneseq
        %v2818 = vshrl.u32 %v2817, 7
        %v2819 = vsub.s32 0, %v2818
        %v2820 = vrot.slane %v2795, %v2819
        %v2822 = vadd.f32 %v2815, %v2820
        %v2823 = vld [vmem:[%s16] sm:$0xff]
        %v2824 = vld [vmem:[%s16 + $0x8] sm:$0xff]
        %v2825 = vld [vmem:[%s16 + $0x10] sm:$0xff]
        %v2826 = vld [vmem:[%s16 + $0x18] sm:$0xff]
        %v2827 = vld [vmem:[%s17] sm:$0x1]
        %v2829 = vlaneseq
        %v2830 = vshrl.u32 %v2829, 7
        %v2831 = vsub.s32 0, %v2830
        %v2832 = vrot.slane %v2827, %v2831
        %v2835 = vsel %vm587, %v2822, 0
        %2837 = vmatprep.subr.mxu0 0.0
        %2838 = vmatpush1.msra.mxu0 %v2823
        %2839 = vmatprep.subr.mxu0 0.0
        %2840 = vmatpush1.msra.mxu0 %v2824
        %2841 = vmatprep.subr.mxu0 0.0
        %2842 = vmatpush1.msra.mxu0 %v2825
        %2843 = vmatprep.subr.mxu0 0.0
        %2844 = vmatpush1.msra.mxu0 %v2826
        %2845 = vmatprep.subr.mxu0 0.0
        %2846 = vmatpush1.msra.mxu0 0.0
        %2847 = vmatprep.subr.mxu0 0.0
        %2848 = vmatpush1.msra.mxu0 0.0
        %2849 = vmatprep.subr.mxu0 0.0
        %2850 = vmatpush1.msra.mxu0 0.0
        %2851 = vmatprep.subr.mxu0 0.0
        %2852 = vmatpush1.msra.mxu0 0.0
        %2853 = vmatprep.subr.mxu0 0.0
        %2854 = vmatpush1.msra.mxu0 0.0
        %2855 = vmatprep.subr.mxu0 0.0
        %2856 = vmatpush1.msra.mxu0 0.0
        %2857 = vmatprep.subr.mxu0 0.0
        %2858 = vmatpush1.msra.mxu0 0.0
        %2859 = vmatprep.subr.mxu0 0.0
        %2860 = vmatpush1.msra.mxu0 0.0
        %2861 = vmatprep.subr.mxu0 0.0
        %2862 = vmatpush1.msra.mxu0 0.0
        %2863 = vmatprep.subr.mxu0 0.0
        %2864 = vmatpush1.msra.mxu0 0.0
        %2865 = vmatprep.subr.mxu0 0.0
        %2866 = vmatpush1.msra.mxu0 0.0
        %2867 = vmatprep.subr.mxu0 0.0
        %2868 = vmatpush1.msra.mxu0 0.0
        %2869 = vmatprep.subr.mxu0 0.0
        %2870 = vmatpush1.msra.mxu0 0.0
        %2871 = vmatprep.subr.mxu0 0.0
        %2872 = vmatpush1.msra.mxu0 0.0
        %2873 = vmatprep.subr.mxu0 0.0
        %2874 = vmatpush1.msra.mxu0 0.0
        %2875 = vmatprep.subr.mxu0 0.0
        %2876 = vmatpush1.msra.mxu0 0.0
        %2877 = vmatprep.subr.mxu0 0.0
        %2878 = vmatpush1.msra.mxu0 0.0
        %2879 = vmatprep.subr.mxu0 0.0
        %2880 = vmatpush1.msra.mxu0 0.0
        %2881 = vmatprep.subr.mxu0 0.0
        %2882 = vmatpush1.msra.mxu0 0.0
        %2883 = vmatprep.subr.mxu0 0.0
        %2884 = vmatpush1.msra.mxu0 0.0
        %2885 = vmatprep.subr.mxu0 0.0
        %2886 = vmatpush1.msra.mxu0 0.0
        %2887 = vmatprep.subr.mxu0 0.0
        %2888 = vmatpush1.msra.mxu0 0.0
        %2889 = vmatprep.subr.mxu0 0.0
        %2890 = vmatpush1.msra.mxu0 0.0
        %2891 = vmatprep.subr.mxu0 0.0
        %2892 = vmatpush1.msra.mxu0 0.0
        %2893 = vmatprep.subr.mxu0 0.0
        %2894 = vmatpush1.msra.mxu0 0.0
        %2895 = vmatprep.subr.mxu0 0.0
        %2896 = vmatpush1.msra.mxu0 0.0
        %2897 = vmatprep.subr.mxu0 0.0
        %2898 = vmatpush1.msra.mxu0 0.0
        %2899 = vmatprep.subr.mxu0 0.0
        %2900 = vmatpush1.msra.mxu0 0.0
        %2901 = vmatprep.mubr.f32.mxu0 0.0
        %2902 = vmatmul.mubr.f32.gmra.mrb[0].mxu0 %v2835
        %v2903 = vpop.f32.mrb[0].mxu0
        %v2904 = vadd.f32 %v2832, %v2903
        %v2905 = vpop.f32.mrb[0].mxu0
        %2906 = vdwg.mxu0
        %2907 = vst [vmem:[%s576] sm:$0x1] %v2904
        %s2908 = sand.u32 %s428, 1
        %s2909 = scalar_lea.sflag [#allocation3], %s2908
        %s2910 = sand.u32 %s428, 1
        %s2911 = scalar_lea.vmem [#allocation2], %s2910
        // Predicated region
        $region93: #{roberta_classifier_forward.1} parent=91 // pred_check
          %p2912 = pneg %p438
        $region94: #{roberta_classifier_forward.1} parent=91 // pred_check_branch
          %2914 = sbr.rel (%p2912) target = $region96
        $region95: #{roberta_classifier_forward.1} parent=91 // pred_region
          %s2916 = ssub.s32 16, 16
          %2917 = vsyncadd %s2909, %s2916
          %s2918 = smul.addr %s32, 16
          %s2919 = scalar_lea.hbm %s18, %s2918
          %s2921 = sshll.u32 %s2911, 4
          %s2922 = int_to_ptr.vmem [resolvable:$true] %s2921
          %2924 = dma.vmem_to_hbm [thread:$0]  %s2922, 16, %s2919, %s2909
        $region96: #{roberta_classifier_forward.1} parent=91 // pred_fallthru
          _
      $region92: #{roberta_classifier_forward.1} parent=5 // pred_fallthru
        _
      %p2925 = scmp.le.s32.totalorder 2, %s27
      // Predicated region
      $region97: #{roberta_classifier_forward.1} parent=5 // pred_check
        %p2926 = pneg %p2925
      $region98: #{roberta_classifier_forward.1} parent=5 // pred_check_branch
        %2928 = sbr.rel (%p2926) target = $region100
      $region99: #{roberta_classifier_forward.1} parent=5 // pred_region
        %s2929 = ssub.s32 %s27, 2
        // Predicated region
        $region101: #{roberta_classifier_forward.1} parent=99 // pred_check
          %p2930 = pneg %p444
        $region102: #{roberta_classifier_forward.1} parent=99 // pred_check_branch
          %2932 = sbr.rel (%p2930) target = $region104
        $region103: #{roberta_classifier_forward.1} parent=99 // pred_region
          %s2933 = sand.u32 %s429, 1
          %s2934 = scalar_lea.sflag [#allocation3], %s2933
          %s2935 = sand.u32 %s429, 1
          %s2936 = scalar_lea.vmem [#allocation2], %s2935
          %2937 = dma.done %s2934, 16
        $region104: #{roberta_classifier_forward.1} parent=99 // pred_fallthru
          _
      $region100: #{roberta_classifier_forward.1} parent=5 // pred_fallthru
        _
    $region6: #{roberta_classifier_forward.1} parent=1 // loop_footer
      %s31 = sadd.s32 1, %s27
    $region7: #{roberta_classifier_forward.1} parent=1 // loop_footer_branch
      %26 = sbr.rel target = $region3
    $region8: #{roberta_classifier_forward.1} parent=1 // loop_exit
      _
    %2938 = vsyncpa [#allocation3], 1
    %s2939 = scalar_lea.sflag [#allocation3], 1
    %2940 = vsyncpa %s2939, 1

</llo_original>
